<compile_context>
chip_gen: v5e
topology: v5e:2x2
jax: 0.10.0
libtpu: 0.0.40
codegen_flags: <defaults>
</compile_context>

<pallas_src>
import jax
import jax.numpy as jnp
from jax.experimental import pallas as pl
from jax.experimental.pallas import tpu as pltpu

_HIGHEST = jax.lax.Precision.HIGHEST


def mlp_kernel(x_ref, w1_ref, b1_ref, w2_ref, b2_ref, w3_ref, b3_ref, o_ref):
    x = x_ref[...]                       # (TB, 2)  f32
    w1 = w1_ref[...]                     # (2, 64)  f32

    # Layer 1 (2 -> 64): K=2 contraction as two VPU FMAs, no MXU involvement.
    h1 = x[:, 0:1] * w1[0:1, :] + x[:, 1:2] * w1[1:2, :] + b1_ref[...]
    h1 = jnp.maximum(h1, 0.0)

    # Layer 2 (64 -> 256): f32 MXU matmul (kernel is DMA/overhead bound; precision is free).
    h2 = jnp.dot(h1, w2_ref[...],
                 preferred_element_type=jnp.float32, precision=_HIGHEST) + b2_ref[...]
    h2 = jnp.maximum(h2, 0.0)

    # Layer 3 (256 -> 86): f32 MXU matmul; unpadded 86-wide store (masked vst, fewer bytes).
    out = jnp.dot(h2, w3_ref[...],
                  preferred_element_type=jnp.float32, precision=_HIGHEST) + b3_ref[...]
    o_ref[...] = out.astype(o_ref.dtype)


def regression_model_forward(x, params, *, block_batch=None):
    w1, b1, w2, b2, w3, b3 = params
    B, num_inputs = x.shape
    out_dim = w3.shape[1]                # 86

    # Batch tile: one right-sized tile for modest batches (no padding waste, no extra grid
    # step); TB=2048 for large batches (~8 MiB working set, fits v7x's 64 MiB VMEM easily,
    # amortizes the ~0.35 us per-grid-step overhead).
    if block_batch is None:
        if B <= 2048:
            TB = max(8, ((B + 7) // 8) * 8)
        else:
            TB = 2048
    else:
        TB = block_batch

    grid = (pl.cdiv(B, TB),)

    # Honest VMEM budget: double-buffered x/out tiles, double-buffered (resident) weights,
    # plus in-kernel temporaries (h1, h2, two pre-bias matmul results, output staging),
    # plus headroom.  Clamp to v7x's 64 MiB physical VMEM.
    bpe = 4
    x_tile = TB * num_inputs * bpe
    out_tile = TB * out_dim * bpe
    inter = TB * (64 + 2 * 256 + 2 * 128) * bpe
    weight_bytes = sum(int(a.size) for a in (w1, b1, w2, b2, w3, b3)) * bpe
    vmem_limit = 2 * (x_tile + out_tile) + 2 * weight_bytes + inter + (8 << 20)
    vmem_limit = int(min(64 << 20, vmem_limit))

    const2 = lambda i: (0, 0)

    return pl.pallas_call(
        mlp_kernel,
        out_shape=jax.ShapeDtypeStruct((B, out_dim), jnp.float32),
        grid=grid,
        in_specs=[
            pl.BlockSpec((TB, num_inputs), lambda i: (i, 0)),   # x: batch-tiled
            pl.BlockSpec(w1.shape, const2),                     # weights/biases: VMEM-resident
            pl.BlockSpec(b1.shape, const2),
            pl.BlockSpec(w2.shape, const2),
            pl.BlockSpec(b2.shape, const2),
            pl.BlockSpec(w3.shape, const2),
            pl.BlockSpec(b3.shape, const2),
        ],
        out_specs=pl.BlockSpec((TB, out_dim), lambda i: (i, 0)),
        compiler_params=pltpu.CompilerParams(
            dimension_semantics=("parallel",),   # megacore/v7x split of the batch axis
            vmem_limit_bytes=vmem_limit,
        ),
    )(x, w1, b1, w2, b2, w3, b3)


def init_params(key, num_inputs=2):
    # Deterministic init mimicking PyTorch nn.Linear default: U(-1/sqrt(fan_in), +1/sqrt(fan_in)).
    # Weights stored as (in_features, out_features) so the kernel computes y = x @ W + b.
    dims = [(num_inputs, 64), (64, 256), (256, 86)]
    params = []
    for fan_in, fan_out in dims:
        key, kw, kb = jax.random.split(key, 3)
        bound = 1.0 / jnp.sqrt(fan_in)
        w = jax.random.uniform(kw, (fan_in, fan_out), jnp.float32, -bound, bound)
        b = jax.random.uniform(kb, (1, fan_out), jnp.float32, -bound, bound)
        params.extend([w, b])
    return params


def reference_forward(x, params):
    w1, b1, w2, b2, w3, b3 = params
    h1 = jnp.maximum(jnp.dot(x, w1, precision=_HIGHEST) + b1, 0.0)
    h2 = jnp.maximum(jnp.dot(h1, w2, precision=_HIGHEST) + b2, 0.0)
    return jnp.dot(h2, w3, precision=_HIGHEST) + b3


if __name__ == "__main__":
    key = jax.random.PRNGKey(0)
    key, kx1, kx2 = jax.random.split(key, 3)
    params = init_params(key, num_inputs=2)

    # Case 1: modest batch (B=300, not a multiple of 8) -> single right-sized tile, no padding.
    x1 = jax.random.normal(kx1, (300, 2), jnp.float32)
    out1 = jax.block_until_ready(regression_model_forward(x1, params))
    ref1 = reference_forward(x1, params)
    assert out1.shape == (300, 86), out1.shape
    assert jnp.allclose(out1, ref1, atol=5e-3, rtol=5e-3), (
        f"small-batch mismatch: max abs diff = {float(jnp.max(jnp.abs(out1 - ref1)))}")

    # Case 2: larger batch (B=2500 > TB=2048) -> cdiv grid with a ragged, masked last tile.
    x2 = jax.random.normal(kx2, (2500, 2), jnp.float32)
    out2 = jax.block_until_ready(regression_model_forward(x2, params))
    ref2 = reference_forward(x2, params)
    assert out2.shape == (2500, 86), out2.shape
    assert jnp.allclose(out2, ref2, atol=5e-3, rtol=5e-3), (
        f"large-batch mismatch: max abs diff = {float(jnp.max(jnp.abs(out2 - ref2)))}")

    print("KERNEL_OK")
</pallas_src>

<mosaic_0001>
module attributes {stable_mosaic.version = 11 : i64} {
  func.func @mlp_kernel(%arg0: i32, %arg1: memref<304x2xf32, #tpu.memory_space<vmem>>, %arg2: memref<2x64xf32, #tpu.memory_space<vmem>>, %arg3: memref<1x64xf32, #tpu.memory_space<vmem>>, %arg4: memref<64x256xf32, #tpu.memory_space<vmem>>, %arg5: memref<1x256xf32, #tpu.memory_space<vmem>>, %arg6: memref<256x86xf32, #tpu.memory_space<vmem>>, %arg7: memref<1x86xf32, #tpu.memory_space<vmem>>, %arg8: memref<304x86xf32, #tpu.memory_space<vmem>>) attributes {dimension_semantics = [#tpu.dimension_semantics<parallel>], iteration_bounds = array<i64: 1>, scalar_prefetch = 0 : i64, scratch_operands = 0 : i64, tpu.core_type = #tpu.core_type<tc>, window_params = [{transform_indices = @transform_0, window_bounds = array<i64: 304, 2>}, {pipeline_mode = #tpu.pipeline_mode<synchronous>, transform_indices = @transform_1, window_bounds = array<i64: 2, 64>}, {pipeline_mode = #tpu.pipeline_mode<synchronous>, transform_indices = @transform_2, window_bounds = array<i64: 1, 64>}, {pipeline_mode = #tpu.pipeline_mode<synchronous>, transform_indices = @transform_3, window_bounds = array<i64: 64, 256>}, {pipeline_mode = #tpu.pipeline_mode<synchronous>, transform_indices = @transform_4, window_bounds = array<i64: 1, 256>}, {pipeline_mode = #tpu.pipeline_mode<synchronous>, transform_indices = @transform_5, window_bounds = array<i64: 256, 86>}, {pipeline_mode = #tpu.pipeline_mode<synchronous>, transform_indices = @transform_6, window_bounds = array<i64: 1, 86>}, {transform_indices = @transform_7, window_bounds = array<i64: 304, 86>}]} {
    %c0 = arith.constant 0 : index
    %c0_0 = arith.constant 0 : index
    %0 = vector.load %arg1[%c0, %c0_0] : memref<304x2xf32, #tpu.memory_space<vmem>>, vector<304x2xf32>
    %c0_1 = arith.constant 0 : index
    %c0_2 = arith.constant 0 : index
    %1 = vector.load %arg2[%c0_1, %c0_2] : memref<2x64xf32, #tpu.memory_space<vmem>>, vector<2x64xf32>
    %2 = vector.extract_strided_slice %0 {offsets = [0, 0], sizes = [304, 1], strides = [1, 1]} : vector<304x2xf32> to vector<304x1xf32>
    %3 = vector.extract_strided_slice %1 {offsets = [0, 0], sizes = [1, 64], strides = [1, 1]} : vector<2x64xf32> to vector<1x64xf32>
    %4 = vector.broadcast %2 : vector<304x1xf32> to vector<304x64xf32>
    %5 = vector.broadcast %3 : vector<1x64xf32> to vector<304x64xf32>
    %6 = arith.mulf %4, %5 : vector<304x64xf32>
    %7 = vector.extract_strided_slice %0 {offsets = [0, 1], sizes = [304, 1], strides = [1, 1]} : vector<304x2xf32> to vector<304x1xf32>
    %8 = vector.extract_strided_slice %1 {offsets = [1, 0], sizes = [1, 64], strides = [1, 1]} : vector<2x64xf32> to vector<1x64xf32>
    %9 = vector.broadcast %7 : vector<304x1xf32> to vector<304x64xf32>
    %10 = vector.broadcast %8 : vector<1x64xf32> to vector<304x64xf32>
    %11 = arith.mulf %9, %10 : vector<304x64xf32>
    %12 = arith.addf %6, %11 : vector<304x64xf32>
    %c0_3 = arith.constant 0 : index
    %c0_4 = arith.constant 0 : index
    %13 = vector.load %arg3[%c0_3, %c0_4] : memref<1x64xf32, #tpu.memory_space<vmem>>, vector<1x64xf32>
    %14 = vector.broadcast %13 : vector<1x64xf32> to vector<304x64xf32>
    %15 = arith.addf %12, %14 : vector<304x64xf32>
    %cst = arith.constant 0.000000e+00 : f32
    %16 = vector.broadcast %cst : f32 to vector<304x64xf32>
    %17 = arith.maximumf %15, %16 : vector<304x64xf32>
    %c0_5 = arith.constant 0 : index
    %c0_6 = arith.constant 0 : index
    %18 = vector.load %arg4[%c0_5, %c0_6] : memref<64x256xf32, #tpu.memory_space<vmem>>, vector<64x256xf32>
    %cst_7 = arith.constant dense<0.000000e+00> : vector<304x256xf32>
    %19 = tpu.matmul %17, %18, %cst_7 {dimension_numbers = #tpu.dot_dimension_numbers<[1], [0], [0], [1], [0, 0, 1, 1], [], []>, precision = #tpu.contract_precision<fp32>} : vector<304x64xf32>, vector<64x256xf32>, vector<304x256xf32> -> vector<304x256xf32>
    %c0_8 = arith.constant 0 : index
    %c0_9 = arith.constant 0 : index
    %20 = vector.load %arg5[%c0_8, %c0_9] : memref<1x256xf32, #tpu.memory_space<vmem>>, vector<1x256xf32>
    %21 = vector.broadcast %20 : vector<1x256xf32> to vector<304x256xf32>
    %22 = arith.addf %19, %21 : vector<304x256xf32>
    %cst_10 = arith.constant 0.000000e+00 : f32
    %23 = vector.broadcast %cst_10 : f32 to vector<304x256xf32>
    %24 = arith.maximumf %22, %23 : vector<304x256xf32>
    %c0_11 = arith.constant 0 : index
    %c0_12 = arith.constant 0 : index
    %25 = vector.load %arg6[%c0_11, %c0_12] : memref<256x86xf32, #tpu.memory_space<vmem>>, vector<256x86xf32>
    %cst_13 = arith.constant dense<0.000000e+00> : vector<304x86xf32>
    %26 = tpu.matmul %24, %25, %cst_13 {dimension_numbers = #tpu.dot_dimension_numbers<[1], [0], [0], [1], [0, 0, 1, 1], [], []>, precision = #tpu.contract_precision<fp32>} : vector<304x256xf32>, vector<256x86xf32>, vector<304x86xf32> -> vector<304x86xf32>
    %c0_14 = arith.constant 0 : index
    %c0_15 = arith.constant 0 : index
    %27 = vector.load %arg7[%c0_14, %c0_15] : memref<1x86xf32, #tpu.memory_space<vmem>>, vector<1x86xf32>
    %28 = vector.broadcast %27 : vector<1x86xf32> to vector<304x86xf32>
    %29 = arith.addf %26, %28 : vector<304x86xf32>
    %c0_16 = arith.constant 0 : index
    %c0_17 = arith.constant 0 : index
    %30 = vector.load %arg8[%c0_16, %c0_17] : memref<304x86xf32, #tpu.memory_space<vmem>>, vector<304x86xf32>
    tpu.vector_store %arg8[%c0_16, %c0_17], %29 {strides = array<i32>} : memref<304x86xf32, #tpu.memory_space<vmem>>, vector<304x86xf32>,
    return
  }
  func.func @transform_0(%arg0: i32) -> (i32, i32) {
    %c0_i32 = arith.constant 0 : i32
    %c0_i32_0 = arith.constant 0 : i32
    return %arg0, %c0_i32 : i32, i32
  }
  func.func @transform_1(%arg0: i32) -> (i32, i32) {
    %c0_i32 = arith.constant 0 : i32
    %c0_i32_0 = arith.constant 0 : i32
    %c0_i32_1 = arith.constant 0 : i32
    return %c0_i32, %c0_i32_0 : i32, i32
  }
  func.func @transform_2(%arg0: i32) -> (i32, i32) {
    %c0_i32 = arith.constant 0 : i32
    %c0_i32_0 = arith.constant 0 : i32
    %c0_i32_1 = arith.constant 0 : i32
    return %c0_i32, %c0_i32_0 : i32, i32
  }
  func.func @transform_3(%arg0: i32) -> (i32, i32) {
    %c0_i32 = arith.constant 0 : i32
    %c0_i32_0 = arith.constant 0 : i32
    %c0_i32_1 = arith.constant 0 : i32
    return %c0_i32, %c0_i32_0 : i32, i32
  }
  func.func @transform_4(%arg0: i32) -> (i32, i32) {
    %c0_i32 = arith.constant 0 : i32
    %c0_i32_0 = arith.constant 0 : i32
    %c0_i32_1 = arith.constant 0 : i32
    return %c0_i32, %c0_i32_0 : i32, i32
  }
  func.func @transform_5(%arg0: i32) -> (i32, i32) {
    %c0_i32 = arith.constant 0 : i32
    %c0_i32_0 = arith.constant 0 : i32
    %c0_i32_1 = arith.constant 0 : i32
    return %c0_i32, %c0_i32_0 : i32, i32
  }
  func.func @transform_6(%arg0: i32) -> (i32, i32) {
    %c0_i32 = arith.constant 0 : i32
    %c0_i32_0 = arith.constant 0 : i32
    %c0_i32_1 = arith.constant 0 : i32
    return %c0_i32, %c0_i32_0 : i32, i32
  }
  func.func @transform_7(%arg0: i32) -> (i32, i32) {
    %c0_i32 = arith.constant 0 : i32
    %c0_i32_0 = arith.constant 0 : i32
    return %arg0, %c0_i32 : i32, i32
  }
}

</mosaic_0001>

<llo_original>
// kernel: tpu_custom_call.1
$region0: #{tpu_custom_call.1}
  #allocation0 [shape = 'u32[]', space=smem, size = 0x4, offset = 0x4, fixed_abs, tag = 'smem constant byte address 0x4 - core index']
  #allocation1 [shape = 'u32[72,128]{1,0:T(1,128)}', space=vmem, size = 0x9000, scoped, tag = 'internal scratch']
  %s0 = inlined_call_operand.vmem [shape: f32[300,2], index: 0, kind: input, shape index: {}]
  %s1 = inlined_call_operand.vmem [shape: f32[2,64], index: 1, kind: input, shape index: {}]
  %s2 = inlined_call_operand.vmem [shape: f32[1,64], index: 2, kind: input, shape index: {}]
  %s3 = inlined_call_operand.vmem [shape: f32[64,256], index: 3, kind: input, shape index: {}]
  %s4 = inlined_call_operand.vmem [shape: f32[1,256], index: 4, kind: input, shape index: {}]
  %s5 = inlined_call_operand.vmem [shape: f32[256,86], index: 5, kind: input, shape index: {}]
  %s6 = inlined_call_operand.vmem [shape: f32[1,86], index: 6, kind: input, shape index: {}]
  %s7 = inlined_call_operand.vmem [shape: f32[300,86], index: 7, kind: output, shape index: {}]
  %s8 = sld [smem:[#allocation0]]
  $region38: #{tpu_custom_call.1} parent=0
    _
  %s10 = ssub.s32 1, %s8
  %s11 = scalar_select 0, %s10, %s8
  // Predicated region
  $region2: #{tpu_custom_call.1} parent=0 // pred_check
    _
  $region3: #{tpu_custom_call.1} parent=0 // pred_check_branch
    %13 = sbr.rel (0) target = $region5
  $region4: #{tpu_custom_call.1} parent=0 // pred_region
    _
  $region5: #{tpu_custom_call.1} parent=0 // pred_fallthru
    _
  // Predicated region
  $region6: #{tpu_custom_call.1} parent=0 // pred_check
    _
  $region7: #{tpu_custom_call.1} parent=0 // pred_check_branch
    %15 = sbr.rel (0) target = $region9
  $region8: #{tpu_custom_call.1} parent=0 // pred_region
    _
  $region9: #{tpu_custom_call.1} parent=0 // pred_fallthru
    _
  // Predicated region
  $region10: #{tpu_custom_call.1} parent=0 // pred_check
    _
  $region11: #{tpu_custom_call.1} parent=0 // pred_check_branch
    %17 = sbr.rel (0) target = $region13
  $region12: #{tpu_custom_call.1} parent=0 // pred_region
    _
  $region13: #{tpu_custom_call.1} parent=0 // pred_fallthru
    _
  // Predicated region
  $region14: #{tpu_custom_call.1} parent=0 // pred_check
    _
  $region15: #{tpu_custom_call.1} parent=0 // pred_check_branch
    %19 = sbr.rel (0) target = $region17
  $region16: #{tpu_custom_call.1} parent=0 // pred_region
    _
  $region17: #{tpu_custom_call.1} parent=0 // pred_fallthru
    _
  // Predicated region
  $region18: #{tpu_custom_call.1} parent=0 // pred_check
    _
  $region19: #{tpu_custom_call.1} parent=0 // pred_check_branch
    %21 = sbr.rel (0) target = $region21
  $region20: #{tpu_custom_call.1} parent=0 // pred_region
    _
  $region21: #{tpu_custom_call.1} parent=0 // pred_fallthru
    _
  // Predicated region
  $region22: #{tpu_custom_call.1} parent=0 // pred_check
    _
  $region23: #{tpu_custom_call.1} parent=0 // pred_check_branch
    %23 = sbr.rel (0) target = $region25
  $region24: #{tpu_custom_call.1} parent=0 // pred_region
    _
  $region25: #{tpu_custom_call.1} parent=0 // pred_fallthru
    _
  // Predicated region
  $region26: #{tpu_custom_call.1} parent=0 // pred_check
    _
  $region27: #{tpu_custom_call.1} parent=0 // pred_check_branch
    %25 = sbr.rel (0) target = $region29
  $region28: #{tpu_custom_call.1} parent=0 // pred_region
    _
  $region29: #{tpu_custom_call.1} parent=0 // pred_fallthru
    _
  %v26 = vld [vmem:[%s0] sm:$0xff]
  %v27 = vld [vmem:[%s0 + $0x8] sm:$0xff]
  %v28 = vld [vmem:[%s0 + $0x10] sm:$0xff]
  %v29 = vld [vmem:[%s0 + $0x18] sm:$0xff]
  %v30 = vld [vmem:[%s0 + $0x20] sm:$0xff]
  %v31 = vld [vmem:[%s0 + $0x28] sm:$0xff]
  %v32 = vld [vmem:[%s0 + $0x30] sm:$0xff]
  %v33 = vld [vmem:[%s0 + $0x38] sm:$0xff]
  %v34 = vld [vmem:[%s0 + $0x40] sm:$0xff]
  %v35 = vld [vmem:[%s0 + $0x48] sm:$0xff]
  %v36 = vld [vmem:[%s0 + $0x50] sm:$0xff]
  %v37 = vld [vmem:[%s0 + $0x58] sm:$0xff]
  %v38 = vld [vmem:[%s0 + $0x60] sm:$0xff]
  %v39 = vld [vmem:[%s0 + $0x68] sm:$0xff]
  %v40 = vld [vmem:[%s0 + $0x70] sm:$0xff]
  %v41 = vld [vmem:[%s0 + $0x78] sm:$0xff]
  %v42 = vld [vmem:[%s0 + $0x80] sm:$0xff]
  %v43 = vld [vmem:[%s0 + $0x88] sm:$0xff]
  %v44 = vld [vmem:[%s0 + $0x90] sm:$0xff]
  %v45 = vld [vmem:[%s0 + $0x98] sm:$0xff]
  %v46 = vld [vmem:[%s0 + $0xa0] sm:$0xff]
  %v47 = vld [vmem:[%s0 + $0xa8] sm:$0xff]
  %v48 = vld [vmem:[%s0 + $0xb0] sm:$0xff]
  %v49 = vld [vmem:[%s0 + $0xb8] sm:$0xff]
  %v50 = vld [vmem:[%s0 + $0xc0] sm:$0xff]
  %v51 = vld [vmem:[%s0 + $0xc8] sm:$0xff]
  %v52 = vld [vmem:[%s0 + $0xd0] sm:$0xff]
  %v53 = vld [vmem:[%s0 + $0xd8] sm:$0xff]
  %v54 = vld [vmem:[%s0 + $0xe0] sm:$0xff]
  %v55 = vld [vmem:[%s0 + $0xe8] sm:$0xff]
  %v56 = vld [vmem:[%s0 + $0xf0] sm:$0xff]
  %v57 = vld [vmem:[%s0 + $0xf8] sm:$0xff]
  %v58 = vld [vmem:[%s0 + $0x100] sm:$0xff]
  %v59 = vld [vmem:[%s0 + $0x108] sm:$0xff]
  %v60 = vld [vmem:[%s0 + $0x110] sm:$0xff]
  %v61 = vld [vmem:[%s0 + $0x118] sm:$0xff]
  %v62 = vld [vmem:[%s0 + $0x120] sm:$0xff]
  %v63 = vld [vmem:[%s0 + $0x128] sm:$0xff]
  %v64 = vld [vmem:[%s1] sm:$0x3]
  %66 = vset.pattern.permute.xlu0 0
  %67 = vperm.xlu0 %66, %v26
  %v68 = vpop.permute.xlu0 %67
  %71 = vset.pattern.permute.xlu0 0
  %72 = vperm.xlu0 %71, %v27
  %v73 = vpop.permute.xlu0 %72
  %76 = vset.pattern.permute.xlu0 0
  %77 = vperm.xlu0 %76, %v28
  %v78 = vpop.permute.xlu0 %77
  %81 = vset.pattern.permute.xlu0 0
  %82 = vperm.xlu0 %81, %v29
  %v83 = vpop.permute.xlu0 %82
  %86 = vset.pattern.permute.xlu0 0
  %87 = vperm.xlu0 %86, %v30
  %v88 = vpop.permute.xlu0 %87
  %91 = vset.pattern.permute.xlu0 0
  %92 = vperm.xlu0 %91, %v31
  %v93 = vpop.permute.xlu0 %92
  %96 = vset.pattern.permute.xlu0 0
  %97 = vperm.xlu0 %96, %v32
  %v98 = vpop.permute.xlu0 %97
  %101 = vset.pattern.permute.xlu0 0
  %102 = vperm.xlu0 %101, %v33
  %v103 = vpop.permute.xlu0 %102
  %106 = vset.pattern.permute.xlu0 0
  %107 = vperm.xlu0 %106, %v34
  %v108 = vpop.permute.xlu0 %107
  %111 = vset.pattern.permute.xlu0 0
  %112 = vperm.xlu0 %111, %v35
  %v113 = vpop.permute.xlu0 %112
  %116 = vset.pattern.permute.xlu0 0
  %117 = vperm.xlu0 %116, %v36
  %v118 = vpop.permute.xlu0 %117
  %121 = vset.pattern.permute.xlu0 0
  %122 = vperm.xlu0 %121, %v37
  %v123 = vpop.permute.xlu0 %122
  %126 = vset.pattern.permute.xlu0 0
  %127 = vperm.xlu0 %126, %v38
  %v128 = vpop.permute.xlu0 %127
  %131 = vset.pattern.permute.xlu0 0
  %132 = vperm.xlu0 %131, %v39
  %v133 = vpop.permute.xlu0 %132
  %136 = vset.pattern.permute.xlu0 0
  %137 = vperm.xlu0 %136, %v40
  %v138 = vpop.permute.xlu0 %137
  %141 = vset.pattern.permute.xlu0 0
  %142 = vperm.xlu0 %141, %v41
  %v143 = vpop.permute.xlu0 %142
  %146 = vset.pattern.permute.xlu0 0
  %147 = vperm.xlu0 %146, %v42
  %v148 = vpop.permute.xlu0 %147
  %151 = vset.pattern.permute.xlu0 0
  %152 = vperm.xlu0 %151, %v43
  %v153 = vpop.permute.xlu0 %152
  %156 = vset.pattern.permute.xlu0 0
  %157 = vperm.xlu0 %156, %v44
  %v158 = vpop.permute.xlu0 %157
  %161 = vset.pattern.permute.xlu0 0
  %162 = vperm.xlu0 %161, %v45
  %v163 = vpop.permute.xlu0 %162
  %166 = vset.pattern.permute.xlu0 0
  %167 = vperm.xlu0 %166, %v46
  %v168 = vpop.permute.xlu0 %167
  %171 = vset.pattern.permute.xlu0 0
  %172 = vperm.xlu0 %171, %v47
  %v173 = vpop.permute.xlu0 %172
  %176 = vset.pattern.permute.xlu0 0
  %177 = vperm.xlu0 %176, %v48
  %v178 = vpop.permute.xlu0 %177
  %181 = vset.pattern.permute.xlu0 0
  %182 = vperm.xlu0 %181, %v49
  %v183 = vpop.permute.xlu0 %182
  %186 = vset.pattern.permute.xlu0 0
  %187 = vperm.xlu0 %186, %v50
  %v188 = vpop.permute.xlu0 %187
  %191 = vset.pattern.permute.xlu0 0
  %192 = vperm.xlu0 %191, %v51
  %v193 = vpop.permute.xlu0 %192
  %196 = vset.pattern.permute.xlu0 0
  %197 = vperm.xlu0 %196, %v52
  %v198 = vpop.permute.xlu0 %197
  %201 = vset.pattern.permute.xlu0 0
  %202 = vperm.xlu0 %201, %v53
  %v203 = vpop.permute.xlu0 %202
  %206 = vset.pattern.permute.xlu0 0
  %207 = vperm.xlu0 %206, %v54
  %v208 = vpop.permute.xlu0 %207
  %211 = vset.pattern.permute.xlu0 0
  %212 = vperm.xlu0 %211, %v55
  %v213 = vpop.permute.xlu0 %212
  %216 = vset.pattern.permute.xlu0 0
  %217 = vperm.xlu0 %216, %v56
  %v218 = vpop.permute.xlu0 %217
  %221 = vset.pattern.permute.xlu0 0
  %222 = vperm.xlu0 %221, %v57
  %v223 = vpop.permute.xlu0 %222
  %226 = vset.pattern.permute.xlu0 0
  %227 = vperm.xlu0 %226, %v58
  %v228 = vpop.permute.xlu0 %227
  %231 = vset.pattern.permute.xlu0 0
  %232 = vperm.xlu0 %231, %v59
  %v233 = vpop.permute.xlu0 %232
  %236 = vset.pattern.permute.xlu0 0
  %237 = vperm.xlu0 %236, %v60
  %v238 = vpop.permute.xlu0 %237
  %241 = vset.pattern.permute.xlu0 0
  %242 = vperm.xlu0 %241, %v61
  %v243 = vpop.permute.xlu0 %242
  %246 = vset.pattern.permute.xlu0 0
  %247 = vperm.xlu0 %246, %v62
  %v248 = vpop.permute.xlu0 %247
  %251 = vset.pattern.permute.xlu0 0
  %252 = vperm.xlu0 %251, %v63
  %v253 = vpop.permute.xlu0 %252
  %v255 = vperm.slane %v64, 0
  %v256 = vmul.f32 %v68, %v255
  %v257 = vmul.f32 %v73, %v255
  %v258 = vmul.f32 %v78, %v255
  %v259 = vmul.f32 %v83, %v255
  %v260 = vmul.f32 %v88, %v255
  %v261 = vmul.f32 %v93, %v255
  %v262 = vmul.f32 %v98, %v255
  %v263 = vmul.f32 %v103, %v255
  %v264 = vmul.f32 %v108, %v255
  %v265 = vmul.f32 %v113, %v255
  %v266 = vmul.f32 %v118, %v255
  %v267 = vmul.f32 %v123, %v255
  %v268 = vmul.f32 %v128, %v255
  %v269 = vmul.f32 %v133, %v255
  %v270 = vmul.f32 %v138, %v255
  %v271 = vmul.f32 %v143, %v255
  %v272 = vmul.f32 %v148, %v255
  %v273 = vmul.f32 %v153, %v255
  %v274 = vmul.f32 %v158, %v255
  %v275 = vmul.f32 %v163, %v255
  %v276 = vmul.f32 %v168, %v255
  %v277 = vmul.f32 %v173, %v255
  %v278 = vmul.f32 %v178, %v255
  %v279 = vmul.f32 %v183, %v255
  %v280 = vmul.f32 %v188, %v255
  %v281 = vmul.f32 %v193, %v255
  %v282 = vmul.f32 %v198, %v255
  %v283 = vmul.f32 %v203, %v255
  %v284 = vmul.f32 %v208, %v255
  %v285 = vmul.f32 %v213, %v255
  %v286 = vmul.f32 %v218, %v255
  %v287 = vmul.f32 %v223, %v255
  %v288 = vmul.f32 %v228, %v255
  %v289 = vmul.f32 %v233, %v255
  %v290 = vmul.f32 %v238, %v255
  %v291 = vmul.f32 %v243, %v255
  %v292 = vmul.f32 %v248, %v255
  %v293 = vmul.f32 %v253, %v255
  %294 = vset.pattern.permute.xlu0 1
  %295 = vperm.xlu0 %294, %v26
  %v296 = vpop.permute.xlu0 %295
  %298 = vset.pattern.permute.xlu0 1
  %299 = vperm.xlu0 %298, %v27
  %v300 = vpop.permute.xlu0 %299
  %302 = vset.pattern.permute.xlu0 1
  %303 = vperm.xlu0 %302, %v28
  %v304 = vpop.permute.xlu0 %303
  %306 = vset.pattern.permute.xlu0 1
  %307 = vperm.xlu0 %306, %v29
  %v308 = vpop.permute.xlu0 %307
  %310 = vset.pattern.permute.xlu0 1
  %311 = vperm.xlu0 %310, %v30
  %v312 = vpop.permute.xlu0 %311
  %314 = vset.pattern.permute.xlu0 1
  %315 = vperm.xlu0 %314, %v31
  %v316 = vpop.permute.xlu0 %315
  %318 = vset.pattern.permute.xlu0 1
  %319 = vperm.xlu0 %318, %v32
  %v320 = vpop.permute.xlu0 %319
  %322 = vset.pattern.permute.xlu0 1
  %323 = vperm.xlu0 %322, %v33
  %v324 = vpop.permute.xlu0 %323
  %326 = vset.pattern.permute.xlu0 1
  %327 = vperm.xlu0 %326, %v34
  %v328 = vpop.permute.xlu0 %327
  %330 = vset.pattern.permute.xlu0 1
  %331 = vperm.xlu0 %330, %v35
  %v332 = vpop.permute.xlu0 %331
  %334 = vset.pattern.permute.xlu0 1
  %335 = vperm.xlu0 %334, %v36
  %v336 = vpop.permute.xlu0 %335
  %338 = vset.pattern.permute.xlu0 1
  %339 = vperm.xlu0 %338, %v37
  %v340 = vpop.permute.xlu0 %339
  %342 = vset.pattern.permute.xlu0 1
  %343 = vperm.xlu0 %342, %v38
  %v344 = vpop.permute.xlu0 %343
  %346 = vset.pattern.permute.xlu0 1
  %347 = vperm.xlu0 %346, %v39
  %v348 = vpop.permute.xlu0 %347
  %350 = vset.pattern.permute.xlu0 1
  %351 = vperm.xlu0 %350, %v40
  %v352 = vpop.permute.xlu0 %351
  %354 = vset.pattern.permute.xlu0 1
  %355 = vperm.xlu0 %354, %v41
  %v356 = vpop.permute.xlu0 %355
  %358 = vset.pattern.permute.xlu0 1
  %359 = vperm.xlu0 %358, %v42
  %v360 = vpop.permute.xlu0 %359
  %362 = vset.pattern.permute.xlu0 1
  %363 = vperm.xlu0 %362, %v43
  %v364 = vpop.permute.xlu0 %363
  %366 = vset.pattern.permute.xlu0 1
  %367 = vperm.xlu0 %366, %v44
  %v368 = vpop.permute.xlu0 %367
  %370 = vset.pattern.permute.xlu0 1
  %371 = vperm.xlu0 %370, %v45
  %v372 = vpop.permute.xlu0 %371
  %374 = vset.pattern.permute.xlu0 1
  %375 = vperm.xlu0 %374, %v46
  %v376 = vpop.permute.xlu0 %375
  %378 = vset.pattern.permute.xlu0 1
  %379 = vperm.xlu0 %378, %v47
  %v380 = vpop.permute.xlu0 %379
  %382 = vset.pattern.permute.xlu0 1
  %383 = vperm.xlu0 %382, %v48
  %v384 = vpop.permute.xlu0 %383
  %386 = vset.pattern.permute.xlu0 1
  %387 = vperm.xlu0 %386, %v49
  %v388 = vpop.permute.xlu0 %387
  %390 = vset.pattern.permute.xlu0 1
  %391 = vperm.xlu0 %390, %v50
  %v392 = vpop.permute.xlu0 %391
  %394 = vset.pattern.permute.xlu0 1
  %395 = vperm.xlu0 %394, %v51
  %v396 = vpop.permute.xlu0 %395
  %398 = vset.pattern.permute.xlu0 1
  %399 = vperm.xlu0 %398, %v52
  %v400 = vpop.permute.xlu0 %399
  %402 = vset.pattern.permute.xlu0 1
  %403 = vperm.xlu0 %402, %v53
  %v404 = vpop.permute.xlu0 %403
  %406 = vset.pattern.permute.xlu0 1
  %407 = vperm.xlu0 %406, %v54
  %v408 = vpop.permute.xlu0 %407
  %410 = vset.pattern.permute.xlu0 1
  %411 = vperm.xlu0 %410, %v55
  %v412 = vpop.permute.xlu0 %411
  %414 = vset.pattern.permute.xlu0 1
  %415 = vperm.xlu0 %414, %v56
  %v416 = vpop.permute.xlu0 %415
  %418 = vset.pattern.permute.xlu0 1
  %419 = vperm.xlu0 %418, %v57
  %v420 = vpop.permute.xlu0 %419
  %422 = vset.pattern.permute.xlu0 1
  %423 = vperm.xlu0 %422, %v58
  %v424 = vpop.permute.xlu0 %423
  %426 = vset.pattern.permute.xlu0 1
  %427 = vperm.xlu0 %426, %v59
  %v428 = vpop.permute.xlu0 %427
  %430 = vset.pattern.permute.xlu0 1
  %431 = vperm.xlu0 %430, %v60
  %v432 = vpop.permute.xlu0 %431
  %434 = vset.pattern.permute.xlu0 1
  %435 = vperm.xlu0 %434, %v61
  %v436 = vpop.permute.xlu0 %435
  %438 = vset.pattern.permute.xlu0 1
  %439 = vperm.xlu0 %438, %v62
  %v440 = vpop.permute.xlu0 %439
  %442 = vset.pattern.permute.xlu0 1
  %443 = vperm.xlu0 %442, %v63
  %v444 = vpop.permute.xlu0 %443
  %v446 = vperm.slane %v64, 1
  %v447 = vmul.f32 %v296, %v446
  %v448 = vmul.f32 %v300, %v446
  %v449 = vmul.f32 %v304, %v446
  %v450 = vmul.f32 %v308, %v446
  %v451 = vmul.f32 %v312, %v446
  %v452 = vmul.f32 %v316, %v446
  %v453 = vmul.f32 %v320, %v446
  %v454 = vmul.f32 %v324, %v446
  %v455 = vmul.f32 %v328, %v446
  %v456 = vmul.f32 %v332, %v446
  %v457 = vmul.f32 %v336, %v446
  %v458 = vmul.f32 %v340, %v446
  %v459 = vmul.f32 %v344, %v446
  %v460 = vmul.f32 %v348, %v446
  %v461 = vmul.f32 %v352, %v446
  %v462 = vmul.f32 %v356, %v446
  %v463 = vmul.f32 %v360, %v446
  %v464 = vmul.f32 %v364, %v446
  %v465 = vmul.f32 %v368, %v446
  %v466 = vmul.f32 %v372, %v446
  %v467 = vmul.f32 %v376, %v446
  %v468 = vmul.f32 %v380, %v446
  %v469 = vmul.f32 %v384, %v446
  %v470 = vmul.f32 %v388, %v446
  %v471 = vmul.f32 %v392, %v446
  %v472 = vmul.f32 %v396, %v446
  %v473 = vmul.f32 %v400, %v446
  %v474 = vmul.f32 %v404, %v446
  %v475 = vmul.f32 %v408, %v446
  %v476 = vmul.f32 %v412, %v446
  %v477 = vmul.f32 %v416, %v446
  %v478 = vmul.f32 %v420, %v446
  %v479 = vmul.f32 %v424, %v446
  %v480 = vmul.f32 %v428, %v446
  %v481 = vmul.f32 %v432, %v446
  %v482 = vmul.f32 %v436, %v446
  %v483 = vmul.f32 %v440, %v446
  %v484 = vmul.f32 %v444, %v446
  %v485 = vadd.f32 %v256, %v447
  %v486 = vadd.f32 %v257, %v448
  %v487 = vadd.f32 %v258, %v449
  %v488 = vadd.f32 %v259, %v450
  %v489 = vadd.f32 %v260, %v451
  %v490 = vadd.f32 %v261, %v452
  %v491 = vadd.f32 %v262, %v453
  %v492 = vadd.f32 %v263, %v454
  %v493 = vadd.f32 %v264, %v455
  %v494 = vadd.f32 %v265, %v456
  %v495 = vadd.f32 %v266, %v457
  %v496 = vadd.f32 %v267, %v458
  %v497 = vadd.f32 %v268, %v459
  %v498 = vadd.f32 %v269, %v460
  %v499 = vadd.f32 %v270, %v461
  %v500 = vadd.f32 %v271, %v462
  %v501 = vadd.f32 %v272, %v463
  %v502 = vadd.f32 %v273, %v464
  %v503 = vadd.f32 %v274, %v465
  %v504 = vadd.f32 %v275, %v466
  %v505 = vadd.f32 %v276, %v467
  %v506 = vadd.f32 %v277, %v468
  %v507 = vadd.f32 %v278, %v469
  %v508 = vadd.f32 %v279, %v470
  %v509 = vadd.f32 %v280, %v471
  %v510 = vadd.f32 %v281, %v472
  %v511 = vadd.f32 %v282, %v473
  %v512 = vadd.f32 %v283, %v474
  %v513 = vadd.f32 %v284, %v475
  %v514 = vadd.f32 %v285, %v476
  %v515 = vadd.f32 %v286, %v477
  %v516 = vadd.f32 %v287, %v478
  %v517 = vadd.f32 %v288, %v479
  %v518 = vadd.f32 %v289, %v480
  %v519 = vadd.f32 %v290, %v481
  %v520 = vadd.f32 %v291, %v482
  %v521 = vadd.f32 %v292, %v483
  %v522 = vadd.f32 %v293, %v484
  %v523 = vld [vmem:[%s2] sm:$0x1]
  %v525 = vperm.slane %v523, 0
  %v527 = vadd.f32 %v485, %v525
  %v528 = vadd.f32 %v486, %v525
  %v529 = vadd.f32 %v487, %v525
  %v530 = vadd.f32 %v488, %v525
  %v531 = vadd.f32 %v489, %v525
  %v532 = vadd.f32 %v490, %v525
  %v533 = vadd.f32 %v491, %v525
  %v534 = vadd.f32 %v492, %v525
  %v535 = vadd.f32 %v493, %v525
  %v536 = vadd.f32 %v494, %v525
  %v537 = vadd.f32 %v495, %v525
  %v538 = vadd.f32 %v496, %v525
  %v539 = vadd.f32 %v497, %v525
  %v540 = vadd.f32 %v498, %v525
  %v541 = vadd.f32 %v499, %v525
  %v542 = vadd.f32 %v500, %v525
  %v543 = vadd.f32 %v501, %v525
  %v544 = vadd.f32 %v502, %v525
  %v545 = vadd.f32 %v503, %v525
  %v546 = vadd.f32 %v504, %v525
  %v547 = vadd.f32 %v505, %v525
  %v548 = vadd.f32 %v506, %v525
  %v549 = vadd.f32 %v507, %v525
  %v550 = vadd.f32 %v508, %v525
  %v551 = vadd.f32 %v509, %v525
  %v552 = vadd.f32 %v510, %v525
  %v553 = vadd.f32 %v511, %v525
  %v554 = vadd.f32 %v512, %v525
  %v555 = vadd.f32 %v513, %v525
  %v556 = vadd.f32 %v514, %v525
  %v557 = vadd.f32 %v515, %v525
  %v558 = vadd.f32 %v516, %v525
  %v559 = vadd.f32 %v517, %v525
  %v560 = vadd.f32 %v518, %v525
  %v561 = vadd.f32 %v519, %v525
  %v562 = vadd.f32 %v520, %v525
  %v563 = vadd.f32 %v521, %v525
  %v564 = vadd.f32 %v522, %v525
  %v565 = vmax.f32 %v527, 0.0
  %v566 = vmax.f32 %v528, 0.0
  %v567 = vmax.f32 %v529, 0.0
  %v568 = vmax.f32 %v530, 0.0
  %v569 = vmax.f32 %v531, 0.0
  %v570 = vmax.f32 %v532, 0.0
  %v571 = vmax.f32 %v533, 0.0
  %v572 = vmax.f32 %v534, 0.0
  %v573 = vmax.f32 %v535, 0.0
  %v574 = vmax.f32 %v536, 0.0
  %v575 = vmax.f32 %v537, 0.0
  %v576 = vmax.f32 %v538, 0.0
  %v577 = vmax.f32 %v539, 0.0
  %v578 = vmax.f32 %v540, 0.0
  %v579 = vmax.f32 %v541, 0.0
  %v580 = vmax.f32 %v542, 0.0
  %v581 = vmax.f32 %v543, 0.0
  %v582 = vmax.f32 %v544, 0.0
  %v583 = vmax.f32 %v545, 0.0
  %v584 = vmax.f32 %v546, 0.0
  %v585 = vmax.f32 %v547, 0.0
  %v586 = vmax.f32 %v548, 0.0
  %v587 = vmax.f32 %v549, 0.0
  %v588 = vmax.f32 %v550, 0.0
  %v589 = vmax.f32 %v551, 0.0
  %v590 = vmax.f32 %v552, 0.0
  %v591 = vmax.f32 %v553, 0.0
  %v592 = vmax.f32 %v554, 0.0
  %v593 = vmax.f32 %v555, 0.0
  %v594 = vmax.f32 %v556, 0.0
  %v595 = vmax.f32 %v557, 0.0
  %v596 = vmax.f32 %v558, 0.0
  %v597 = vmax.f32 %v559, 0.0
  %v598 = vmax.f32 %v560, 0.0
  %v599 = vmax.f32 %v561, 0.0
  %v600 = vmax.f32 %v562, 0.0
  %v601 = vmax.f32 %v563, 0.0
  %v602 = vmax.f32 %v564, 0.0
  %v603 = vld [vmem:[%s3] sm:$0xff]
  %v604 = vld [vmem:[%s3 + $0x8] sm:$0xff]
  %v605 = vld [vmem:[%s3 + $0x10] sm:$0xff]
  %v606 = vld [vmem:[%s3 + $0x18] sm:$0xff]
  %v607 = vld [vmem:[%s3 + $0x20] sm:$0xff]
  %v608 = vld [vmem:[%s3 + $0x28] sm:$0xff]
  %v609 = vld [vmem:[%s3 + $0x30] sm:$0xff]
  %v610 = vld [vmem:[%s3 + $0x38] sm:$0xff]
  %v611 = vld [vmem:[%s3 + $0x40] sm:$0xff]
  %v612 = vld [vmem:[%s3 + $0x48] sm:$0xff]
  %v613 = vld [vmem:[%s3 + $0x50] sm:$0xff]
  %v614 = vld [vmem:[%s3 + $0x58] sm:$0xff]
  %v615 = vld [vmem:[%s3 + $0x60] sm:$0xff]
  %v616 = vld [vmem:[%s3 + $0x68] sm:$0xff]
  %v617 = vld [vmem:[%s3 + $0x70] sm:$0xff]
  %v618 = vld [vmem:[%s3 + $0x78] sm:$0xff]
  %v619 = vld [vmem:[%s4] sm:$0x3]
  %v621 = vperm.slane %v619, 0
  %v622 = vperm.slane %v619, 1
  %vm625 = vcmask 523264
  %v627 = vsel %vm625, %v565, 0
  %v630 = vsel %vm625, %v566, 0
  %v633 = vsel %vm625, %v567, 0
  %v636 = vsel %vm625, %v568, 0
  %v639 = vsel %vm625, %v569, 0
  %v642 = vsel %vm625, %v570, 0
  %v645 = vsel %vm625, %v571, 0
  %v648 = vsel %vm625, %v572, 0
  %v651 = vsel %vm625, %v573, 0
  %v654 = vsel %vm625, %v574, 0
  %v657 = vsel %vm625, %v575, 0
  %v660 = vsel %vm625, %v576, 0
  %v663 = vsel %vm625, %v577, 0
  %v666 = vsel %vm625, %v578, 0
  %v669 = vsel %vm625, %v579, 0
  %v672 = vsel %vm625, %v580, 0
  %v675 = vsel %vm625, %v581, 0
  %v678 = vsel %vm625, %v582, 0
  %v681 = vsel %vm625, %v583, 0
  %v684 = vsel %vm625, %v584, 0
  %v687 = vsel %vm625, %v585, 0
  %v690 = vsel %vm625, %v586, 0
  %v693 = vsel %vm625, %v587, 0
  %v696 = vsel %vm625, %v588, 0
  %v699 = vsel %vm625, %v589, 0
  %v702 = vsel %vm625, %v590, 0
  %v705 = vsel %vm625, %v591, 0
  %v708 = vsel %vm625, %v592, 0
  %v711 = vsel %vm625, %v593, 0
  %v714 = vsel %vm625, %v594, 0
  %v717 = vsel %vm625, %v595, 0
  %v720 = vsel %vm625, %v596, 0
  %v723 = vsel %vm625, %v597, 0
  %v726 = vsel %vm625, %v598, 0
  %v729 = vsel %vm625, %v599, 0
  %v732 = vsel %vm625, %v600, 0
  %v735 = vsel %vm625, %v601, 0
  %v738 = vsel %vm625, %v602, 0
  %740 = vmatpush.msra.mxu0 0.0
  %741 = vmatpush.msra.mxu0 0.0
  %742 = vmatpush.msra.mxu0 0.0
  %743 = vmatpush.msra.mxu0 0.0
  %744 = vmatpush.msra.mxu0 0.0
  %745 = vmatpush.msra.mxu0 0.0
  %746 = vmatpush.msra.mxu0 0.0
  %747 = vmatpush.msra.mxu0 0.0
  %v748 = vand.u32 %v617, 4294901760
  %749 = vmatpush.msra.mxu0 %v748
  %v750 = vand.u32 %v615, 4294901760
  %751 = vmatpush.msra.mxu0 %v750
  %v752 = vand.u32 %v613, 4294901760
  %753 = vmatpush.msra.mxu0 %v752
  %v754 = vand.u32 %v611, 4294901760
  %755 = vmatpush.msra.mxu0 %v754
  %v756 = vand.u32 %v609, 4294901760
  %757 = vmatpush.msra.mxu0 %v756
  %v758 = vand.u32 %v607, 4294901760
  %759 = vmatpush.msra.mxu0 %v758
  %v760 = vand.u32 %v605, 4294901760
  %761 = vmatpush.msra.mxu0 %v760
  %v762 = vand.u32 %v603, 4294901760
  %763 = vmatpush.msra.mxu0 %v762
  %v764 = vand.u32 %v627, 4294901760
  %v765 = vsub.f32 %v627, %v764
  %v766 = vand.u32 %v765, 4294901760
  %v767 = vsub.f32 %v765, %v766
  %v768 = vand.u32 %v767, 4294901760
  %769 = vmatmul.f32.gmra.mxu0 %v768
  %v770 = vpop.f32.mrf.mxu0
  %v771 = vadd.f32 %v621, %v770
  %v772 = vand.u32 %v630, 4294901760
  %v773 = vsub.f32 %v630, %v772
  %v774 = vand.u32 %v773, 4294901760
  %v775 = vsub.f32 %v773, %v774
  %v776 = vand.u32 %v775, 4294901760
  %777 = vmatmul.f32.gmra.mxu0 %v776
  %v778 = vpop.f32.mrf.mxu0
  %v779 = vadd.f32 %v621, %v778
  %v780 = vand.u32 %v633, 4294901760
  %v781 = vsub.f32 %v633, %v780
  %v782 = vand.u32 %v781, 4294901760
  %v783 = vsub.f32 %v781, %v782
  %v784 = vand.u32 %v783, 4294901760
  %785 = vmatmul.f32.gmra.mxu0 %v784
  %v786 = vpop.f32.mrf.mxu0
  %v787 = vadd.f32 %v621, %v786
  %v788 = vand.u32 %v636, 4294901760
  %v789 = vsub.f32 %v636, %v788
  %v790 = vand.u32 %v789, 4294901760
  %v791 = vsub.f32 %v789, %v790
  %v792 = vand.u32 %v791, 4294901760
  %793 = vmatmul.f32.gmra.mxu0 %v792
  %v794 = vpop.f32.mrf.mxu0
  %v795 = vadd.f32 %v621, %v794
  %v796 = vand.u32 %v639, 4294901760
  %v797 = vsub.f32 %v639, %v796
  %v798 = vand.u32 %v797, 4294901760
  %v799 = vsub.f32 %v797, %v798
  %v800 = vand.u32 %v799, 4294901760
  %801 = vmatmul.f32.gmra.mxu0 %v800
  %v802 = vpop.f32.mrf.mxu0
  %v803 = vadd.f32 %v621, %v802
  %v804 = vand.u32 %v642, 4294901760
  %v805 = vsub.f32 %v642, %v804
  %v806 = vand.u32 %v805, 4294901760
  %v807 = vsub.f32 %v805, %v806
  %v808 = vand.u32 %v807, 4294901760
  %809 = vmatmul.f32.gmra.mxu0 %v808
  %v810 = vpop.f32.mrf.mxu0
  %v811 = vadd.f32 %v621, %v810
  %v812 = vand.u32 %v645, 4294901760
  %v813 = vsub.f32 %v645, %v812
  %v814 = vand.u32 %v813, 4294901760
  %v815 = vsub.f32 %v813, %v814
  %v816 = vand.u32 %v815, 4294901760
  %817 = vmatmul.f32.gmra.mxu0 %v816
  %v818 = vpop.f32.mrf.mxu0
  %v819 = vadd.f32 %v621, %v818
  %v820 = vand.u32 %v648, 4294901760
  %v821 = vsub.f32 %v648, %v820
  %v822 = vand.u32 %v821, 4294901760
  %v823 = vsub.f32 %v821, %v822
  %v824 = vand.u32 %v823, 4294901760
  %825 = vmatmul.f32.gmra.mxu0 %v824
  %v826 = vpop.f32.mrf.mxu0
  %v827 = vadd.f32 %v621, %v826
  %v828 = vand.u32 %v651, 4294901760
  %v829 = vsub.f32 %v651, %v828
  %v830 = vand.u32 %v829, 4294901760
  %v831 = vsub.f32 %v829, %v830
  %v832 = vand.u32 %v831, 4294901760
  %833 = vmatmul.f32.gmra.mxu0 %v832
  %v834 = vpop.f32.mrf.mxu0
  %v835 = vadd.f32 %v621, %v834
  %v836 = vand.u32 %v654, 4294901760
  %v837 = vsub.f32 %v654, %v836
  %v838 = vand.u32 %v837, 4294901760
  %v839 = vsub.f32 %v837, %v838
  %v840 = vand.u32 %v839, 4294901760
  %841 = vmatmul.f32.gmra.mxu0 %v840
  %v842 = vpop.f32.mrf.mxu0
  %v843 = vadd.f32 %v621, %v842
  %v844 = vand.u32 %v657, 4294901760
  %v845 = vsub.f32 %v657, %v844
  %v846 = vand.u32 %v845, 4294901760
  %v847 = vsub.f32 %v845, %v846
  %v848 = vand.u32 %v847, 4294901760
  %849 = vmatmul.f32.gmra.mxu0 %v848
  %v850 = vpop.f32.mrf.mxu0
  %v851 = vadd.f32 %v621, %v850
  %v852 = vand.u32 %v660, 4294901760
  %v853 = vsub.f32 %v660, %v852
  %v854 = vand.u32 %v853, 4294901760
  %v855 = vsub.f32 %v853, %v854
  %v856 = vand.u32 %v855, 4294901760
  %857 = vmatmul.f32.gmra.mxu0 %v856
  %v858 = vpop.f32.mrf.mxu0
  %v859 = vadd.f32 %v621, %v858
  %v860 = vand.u32 %v663, 4294901760
  %v861 = vsub.f32 %v663, %v860
  %v862 = vand.u32 %v861, 4294901760
  %v863 = vsub.f32 %v861, %v862
  %v864 = vand.u32 %v863, 4294901760
  %865 = vmatmul.f32.gmra.mxu0 %v864
  %v866 = vpop.f32.mrf.mxu0
  %v867 = vadd.f32 %v621, %v866
  %v868 = vand.u32 %v666, 4294901760
  %v869 = vsub.f32 %v666, %v868
  %v870 = vand.u32 %v869, 4294901760
  %v871 = vsub.f32 %v869, %v870
  %v872 = vand.u32 %v871, 4294901760
  %873 = vmatmul.f32.gmra.mxu0 %v872
  %v874 = vpop.f32.mrf.mxu0
  %v875 = vadd.f32 %v621, %v874
  %v876 = vand.u32 %v669, 4294901760
  %v877 = vsub.f32 %v669, %v876
  %v878 = vand.u32 %v877, 4294901760
  %v879 = vsub.f32 %v877, %v878
  %v880 = vand.u32 %v879, 4294901760
  %881 = vmatmul.f32.gmra.mxu0 %v880
  %v882 = vpop.f32.mrf.mxu0
  %v883 = vadd.f32 %v621, %v882
  %v884 = vand.u32 %v672, 4294901760
  %v885 = vsub.f32 %v672, %v884
  %v886 = vand.u32 %v885, 4294901760
  %v887 = vsub.f32 %v885, %v886
  %v888 = vand.u32 %v887, 4294901760
  %889 = vmatmul.f32.gmra.mxu0 %v888
  %v890 = vpop.f32.mrf.mxu0
  %v891 = vadd.f32 %v621, %v890
  %v892 = vand.u32 %v675, 4294901760
  %v893 = vsub.f32 %v675, %v892
  %v894 = vand.u32 %v893, 4294901760
  %v895 = vsub.f32 %v893, %v894
  %v896 = vand.u32 %v895, 4294901760
  %897 = vmatmul.f32.gmra.mxu0 %v896
  %v898 = vpop.f32.mrf.mxu0
  %v899 = vadd.f32 %v621, %v898
  %v900 = vand.u32 %v678, 4294901760
  %v901 = vsub.f32 %v678, %v900
  %v902 = vand.u32 %v901, 4294901760
  %v903 = vsub.f32 %v901, %v902
  %v904 = vand.u32 %v903, 4294901760
  %905 = vmatmul.f32.gmra.mxu0 %v904
  %v906 = vpop.f32.mrf.mxu0
  %v907 = vadd.f32 %v621, %v906
  %v908 = vand.u32 %v681, 4294901760
  %v909 = vsub.f32 %v681, %v908
  %v910 = vand.u32 %v909, 4294901760
  %v911 = vsub.f32 %v909, %v910
  %v912 = vand.u32 %v911, 4294901760
  %913 = vmatmul.f32.gmra.mxu0 %v912
  %v914 = vpop.f32.mrf.mxu0
  %v915 = vadd.f32 %v621, %v914
  %v916 = vand.u32 %v684, 4294901760
  %v917 = vsub.f32 %v684, %v916
  %v918 = vand.u32 %v917, 4294901760
  %v919 = vsub.f32 %v917, %v918
  %v920 = vand.u32 %v919, 4294901760
  %921 = vmatmul.f32.gmra.mxu0 %v920
  %v922 = vpop.f32.mrf.mxu0
  %v923 = vadd.f32 %v621, %v922
  %v924 = vand.u32 %v687, 4294901760
  %v925 = vsub.f32 %v687, %v924
  %v926 = vand.u32 %v925, 4294901760
  %v927 = vsub.f32 %v925, %v926
  %v928 = vand.u32 %v927, 4294901760
  %929 = vmatmul.f32.gmra.mxu0 %v928
  %v930 = vpop.f32.mrf.mxu0
  %v931 = vadd.f32 %v621, %v930
  %v932 = vand.u32 %v690, 4294901760
  %v933 = vsub.f32 %v690, %v932
  %v934 = vand.u32 %v933, 4294901760
  %v935 = vsub.f32 %v933, %v934
  %v936 = vand.u32 %v935, 4294901760
  %937 = vmatmul.f32.gmra.mxu0 %v936
  %v938 = vpop.f32.mrf.mxu0
  %v939 = vadd.f32 %v621, %v938
  %v940 = vand.u32 %v693, 4294901760
  %v941 = vsub.f32 %v693, %v940
  %v942 = vand.u32 %v941, 4294901760
  %v943 = vsub.f32 %v941, %v942
  %v944 = vand.u32 %v943, 4294901760
  %945 = vmatmul.f32.gmra.mxu0 %v944
  %v946 = vpop.f32.mrf.mxu0
  %v947 = vadd.f32 %v621, %v946
  %v948 = vand.u32 %v696, 4294901760
  %v949 = vsub.f32 %v696, %v948
  %v950 = vand.u32 %v949, 4294901760
  %v951 = vsub.f32 %v949, %v950
  %v952 = vand.u32 %v951, 4294901760
  %953 = vmatmul.f32.gmra.mxu0 %v952
  %v954 = vpop.f32.mrf.mxu0
  %v955 = vadd.f32 %v621, %v954
  %v956 = vand.u32 %v699, 4294901760
  %v957 = vsub.f32 %v699, %v956
  %v958 = vand.u32 %v957, 4294901760
  %v959 = vsub.f32 %v957, %v958
  %v960 = vand.u32 %v959, 4294901760
  %961 = vmatmul.f32.gmra.mxu0 %v960
  %v962 = vpop.f32.mrf.mxu0
  %v963 = vadd.f32 %v621, %v962
  %v964 = vand.u32 %v702, 4294901760
  %v965 = vsub.f32 %v702, %v964
  %v966 = vand.u32 %v965, 4294901760
  %v967 = vsub.f32 %v965, %v966
  %v968 = vand.u32 %v967, 4294901760
  %969 = vmatmul.f32.gmra.mxu0 %v968
  %v970 = vpop.f32.mrf.mxu0
  %v971 = vadd.f32 %v621, %v970
  %v972 = vand.u32 %v705, 4294901760
  %v973 = vsub.f32 %v705, %v972
  %v974 = vand.u32 %v973, 4294901760
  %v975 = vsub.f32 %v973, %v974
  %v976 = vand.u32 %v975, 4294901760
  %977 = vmatmul.f32.gmra.mxu0 %v976
  %v978 = vpop.f32.mrf.mxu0
  %v979 = vadd.f32 %v621, %v978
  %v980 = vand.u32 %v708, 4294901760
  %v981 = vsub.f32 %v708, %v980
  %v982 = vand.u32 %v981, 4294901760
  %v983 = vsub.f32 %v981, %v982
  %v984 = vand.u32 %v983, 4294901760
  %985 = vmatmul.f32.gmra.mxu0 %v984
  %v986 = vpop.f32.mrf.mxu0
  %v987 = vadd.f32 %v621, %v986
  %v988 = vand.u32 %v711, 4294901760
  %v989 = vsub.f32 %v711, %v988
  %v990 = vand.u32 %v989, 4294901760
  %v991 = vsub.f32 %v989, %v990
  %v992 = vand.u32 %v991, 4294901760
  %993 = vmatmul.f32.gmra.mxu0 %v992
  %v994 = vpop.f32.mrf.mxu0
  %v995 = vadd.f32 %v621, %v994
  %v996 = vand.u32 %v714, 4294901760
  %v997 = vsub.f32 %v714, %v996
  %v998 = vand.u32 %v997, 4294901760
  %v999 = vsub.f32 %v997, %v998
  %v1000 = vand.u32 %v999, 4294901760
  %1001 = vmatmul.f32.gmra.mxu0 %v1000
  %v1002 = vpop.f32.mrf.mxu0
  %v1003 = vadd.f32 %v621, %v1002
  %v1004 = vand.u32 %v717, 4294901760
  %v1005 = vsub.f32 %v717, %v1004
  %v1006 = vand.u32 %v1005, 4294901760
  %v1007 = vsub.f32 %v1005, %v1006
  %v1008 = vand.u32 %v1007, 4294901760
  %1009 = vmatmul.f32.gmra.mxu0 %v1008
  %v1010 = vpop.f32.mrf.mxu0
  %v1011 = vadd.f32 %v621, %v1010
  %v1012 = vand.u32 %v720, 4294901760
  %v1013 = vsub.f32 %v720, %v1012
  %v1014 = vand.u32 %v1013, 4294901760
  %v1015 = vsub.f32 %v1013, %v1014
  %v1016 = vand.u32 %v1015, 4294901760
  %1017 = vmatmul.f32.gmra.mxu0 %v1016
  %v1018 = vpop.f32.mrf.mxu0
  %v1019 = vadd.f32 %v621, %v1018
  %v1020 = vand.u32 %v723, 4294901760
  %v1021 = vsub.f32 %v723, %v1020
  %v1022 = vand.u32 %v1021, 4294901760
  %v1023 = vsub.f32 %v1021, %v1022
  %v1024 = vand.u32 %v1023, 4294901760
  %1025 = vmatmul.f32.gmra.mxu0 %v1024
  %v1026 = vpop.f32.mrf.mxu0
  %v1027 = vadd.f32 %v621, %v1026
  %v1028 = vand.u32 %v726, 4294901760
  %v1029 = vsub.f32 %v726, %v1028
  %v1030 = vand.u32 %v1029, 4294901760
  %v1031 = vsub.f32 %v1029, %v1030
  %v1032 = vand.u32 %v1031, 4294901760
  %1033 = vmatmul.f32.gmra.mxu0 %v1032
  %v1034 = vpop.f32.mrf.mxu0
  %v1035 = vadd.f32 %v621, %v1034
  %v1036 = vand.u32 %v729, 4294901760
  %v1037 = vsub.f32 %v729, %v1036
  %v1038 = vand.u32 %v1037, 4294901760
  %v1039 = vsub.f32 %v1037, %v1038
  %v1040 = vand.u32 %v1039, 4294901760
  %1041 = vmatmul.f32.gmra.mxu0 %v1040
  %v1042 = vpop.f32.mrf.mxu0
  %v1043 = vadd.f32 %v621, %v1042
  %v1044 = vand.u32 %v732, 4294901760
  %v1045 = vsub.f32 %v732, %v1044
  %v1046 = vand.u32 %v1045, 4294901760
  %v1047 = vsub.f32 %v1045, %v1046
  %v1048 = vand.u32 %v1047, 4294901760
  %1049 = vmatmul.f32.gmra.mxu0 %v1048
  %v1050 = vpop.f32.mrf.mxu0
  %v1051 = vadd.f32 %v621, %v1050
  %v1052 = vand.u32 %v735, 4294901760
  %v1053 = vsub.f32 %v735, %v1052
  %v1054 = vand.u32 %v1053, 4294901760
  %v1055 = vsub.f32 %v1053, %v1054
  %v1056 = vand.u32 %v1055, 4294901760
  %1057 = vmatmul.f32.gmra.mxu0 %v1056
  %v1058 = vpop.f32.mrf.mxu0
  %v1059 = vadd.f32 %v621, %v1058
  %v1060 = vand.u32 %v738, 4294901760
  %v1061 = vsub.f32 %v738, %v1060
  %v1062 = vand.u32 %v1061, 4294901760
  %v1063 = vsub.f32 %v1061, %v1062
  %v1064 = vand.u32 %v1063, 4294901760
  %1065 = vmatmul.f32.gmra.mxu0 %v1064
  %v1066 = vpop.f32.mrf.mxu0
  %v1067 = vadd.f32 %v621, %v1066
  %1068 = vdwg.mxu0
  %1069 = vmatpush.msra.mxu0 0.0
  %1070 = vmatpush.msra.mxu0 0.0
  %1071 = vmatpush.msra.mxu0 0.0
  %1072 = vmatpush.msra.mxu0 0.0
  %1073 = vmatpush.msra.mxu0 0.0
  %1074 = vmatpush.msra.mxu0 0.0
  %1075 = vmatpush.msra.mxu0 0.0
  %1076 = vmatpush.msra.mxu0 0.0
  %v1077 = vand.u32 %v617, 4294901760
  %v1078 = vsub.f32 %v617, %v1077
  %v1079 = vand.u32 %v1078, 4294901760
  %v1080 = vsub.f32 %v1078, %v1079
  %v1081 = vand.u32 %v1080, 4294901760
  %1082 = vmatpush.msra.mxu0 %v1081
  %v1083 = vand.u32 %v615, 4294901760
  %v1084 = vsub.f32 %v615, %v1083
  %v1085 = vand.u32 %v1084, 4294901760
  %v1086 = vsub.f32 %v1084, %v1085
  %v1087 = vand.u32 %v1086, 4294901760
  %1088 = vmatpush.msra.mxu0 %v1087
  %v1089 = vand.u32 %v613, 4294901760
  %v1090 = vsub.f32 %v613, %v1089
  %v1091 = vand.u32 %v1090, 4294901760
  %v1092 = vsub.f32 %v1090, %v1091
  %v1093 = vand.u32 %v1092, 4294901760
  %1094 = vmatpush.msra.mxu0 %v1093
  %v1095 = vand.u32 %v611, 4294901760
  %v1096 = vsub.f32 %v611, %v1095
  %v1097 = vand.u32 %v1096, 4294901760
  %v1098 = vsub.f32 %v1096, %v1097
  %v1099 = vand.u32 %v1098, 4294901760
  %1100 = vmatpush.msra.mxu0 %v1099
  %v1101 = vand.u32 %v609, 4294901760
  %v1102 = vsub.f32 %v609, %v1101
  %v1103 = vand.u32 %v1102, 4294901760
  %v1104 = vsub.f32 %v1102, %v1103
  %v1105 = vand.u32 %v1104, 4294901760
  %1106 = vmatpush.msra.mxu0 %v1105
  %v1107 = vand.u32 %v607, 4294901760
  %v1108 = vsub.f32 %v607, %v1107
  %v1109 = vand.u32 %v1108, 4294901760
  %v1110 = vsub.f32 %v1108, %v1109
  %v1111 = vand.u32 %v1110, 4294901760
  %1112 = vmatpush.msra.mxu0 %v1111
  %v1113 = vand.u32 %v605, 4294901760
  %v1114 = vsub.f32 %v605, %v1113
  %v1115 = vand.u32 %v1114, 4294901760
  %v1116 = vsub.f32 %v1114, %v1115
  %v1117 = vand.u32 %v1116, 4294901760
  %1118 = vmatpush.msra.mxu0 %v1117
  %v1119 = vand.u32 %v603, 4294901760
  %v1120 = vsub.f32 %v603, %v1119
  %v1121 = vand.u32 %v1120, 4294901760
  %v1122 = vsub.f32 %v1120, %v1121
  %v1123 = vand.u32 %v1122, 4294901760
  %1124 = vmatpush.msra.mxu0 %v1123
  %v1125 = vand.u32 %v627, 4294901760
  %1126 = vmatmul.f32.gmra.mxu0 %v1125
  %v1127 = vpop.f32.mrf.mxu0
  %v1128 = vadd.f32 %v771, %v1127
  %v1129 = vand.u32 %v630, 4294901760
  %1130 = vmatmul.f32.gmra.mxu0 %v1129
  %v1131 = vpop.f32.mrf.mxu0
  %v1132 = vadd.f32 %v779, %v1131
  %v1133 = vand.u32 %v633, 4294901760
  %1134 = vmatmul.f32.gmra.mxu0 %v1133
  %v1135 = vpop.f32.mrf.mxu0
  %v1136 = vadd.f32 %v787, %v1135
  %v1137 = vand.u32 %v636, 4294901760
  %1138 = vmatmul.f32.gmra.mxu0 %v1137
  %v1139 = vpop.f32.mrf.mxu0
  %v1140 = vadd.f32 %v795, %v1139
  %v1141 = vand.u32 %v639, 4294901760
  %1142 = vmatmul.f32.gmra.mxu0 %v1141
  %v1143 = vpop.f32.mrf.mxu0
  %v1144 = vadd.f32 %v803, %v1143
  %v1145 = vand.u32 %v642, 4294901760
  %1146 = vmatmul.f32.gmra.mxu0 %v1145
  %v1147 = vpop.f32.mrf.mxu0
  %v1148 = vadd.f32 %v811, %v1147
  %v1149 = vand.u32 %v645, 4294901760
  %1150 = vmatmul.f32.gmra.mxu0 %v1149
  %v1151 = vpop.f32.mrf.mxu0
  %v1152 = vadd.f32 %v819, %v1151
  %v1153 = vand.u32 %v648, 4294901760
  %1154 = vmatmul.f32.gmra.mxu0 %v1153
  %v1155 = vpop.f32.mrf.mxu0
  %v1156 = vadd.f32 %v827, %v1155
  %v1157 = vand.u32 %v651, 4294901760
  %1158 = vmatmul.f32.gmra.mxu0 %v1157
  %v1159 = vpop.f32.mrf.mxu0
  %v1160 = vadd.f32 %v835, %v1159
  %v1161 = vand.u32 %v654, 4294901760
  %1162 = vmatmul.f32.gmra.mxu0 %v1161
  %v1163 = vpop.f32.mrf.mxu0
  %v1164 = vadd.f32 %v843, %v1163
  %v1165 = vand.u32 %v657, 4294901760
  %1166 = vmatmul.f32.gmra.mxu0 %v1165
  %v1167 = vpop.f32.mrf.mxu0
  %v1168 = vadd.f32 %v851, %v1167
  %v1169 = vand.u32 %v660, 4294901760
  %1170 = vmatmul.f32.gmra.mxu0 %v1169
  %v1171 = vpop.f32.mrf.mxu0
  %v1172 = vadd.f32 %v859, %v1171
  %v1173 = vand.u32 %v663, 4294901760
  %1174 = vmatmul.f32.gmra.mxu0 %v1173
  %v1175 = vpop.f32.mrf.mxu0
  %v1176 = vadd.f32 %v867, %v1175
  %v1177 = vand.u32 %v666, 4294901760
  %1178 = vmatmul.f32.gmra.mxu0 %v1177
  %v1179 = vpop.f32.mrf.mxu0
  %v1180 = vadd.f32 %v875, %v1179
  %v1181 = vand.u32 %v669, 4294901760
  %1182 = vmatmul.f32.gmra.mxu0 %v1181
  %v1183 = vpop.f32.mrf.mxu0
  %v1184 = vadd.f32 %v883, %v1183
  %v1185 = vand.u32 %v672, 4294901760
  %1186 = vmatmul.f32.gmra.mxu0 %v1185
  %v1187 = vpop.f32.mrf.mxu0
  %v1188 = vadd.f32 %v891, %v1187
  %v1189 = vand.u32 %v675, 4294901760
  %1190 = vmatmul.f32.gmra.mxu0 %v1189
  %v1191 = vpop.f32.mrf.mxu0
  %v1192 = vadd.f32 %v899, %v1191
  %v1193 = vand.u32 %v678, 4294901760
  %1194 = vmatmul.f32.gmra.mxu0 %v1193
  %v1195 = vpop.f32.mrf.mxu0
  %v1196 = vadd.f32 %v907, %v1195
  %v1197 = vand.u32 %v681, 4294901760
  %1198 = vmatmul.f32.gmra.mxu0 %v1197
  %v1199 = vpop.f32.mrf.mxu0
  %v1200 = vadd.f32 %v915, %v1199
  %v1201 = vand.u32 %v684, 4294901760
  %1202 = vmatmul.f32.gmra.mxu0 %v1201
  %v1203 = vpop.f32.mrf.mxu0
  %v1204 = vadd.f32 %v923, %v1203
  %v1205 = vand.u32 %v687, 4294901760
  %1206 = vmatmul.f32.gmra.mxu0 %v1205
  %v1207 = vpop.f32.mrf.mxu0
  %v1208 = vadd.f32 %v931, %v1207
  %v1209 = vand.u32 %v690, 4294901760
  %1210 = vmatmul.f32.gmra.mxu0 %v1209
  %v1211 = vpop.f32.mrf.mxu0
  %v1212 = vadd.f32 %v939, %v1211
  %v1213 = vand.u32 %v693, 4294901760
  %1214 = vmatmul.f32.gmra.mxu0 %v1213
  %v1215 = vpop.f32.mrf.mxu0
  %v1216 = vadd.f32 %v947, %v1215
  %v1217 = vand.u32 %v696, 4294901760
  %1218 = vmatmul.f32.gmra.mxu0 %v1217
  %v1219 = vpop.f32.mrf.mxu0
  %v1220 = vadd.f32 %v955, %v1219
  %v1221 = vand.u32 %v699, 4294901760
  %1222 = vmatmul.f32.gmra.mxu0 %v1221
  %v1223 = vpop.f32.mrf.mxu0
  %v1224 = vadd.f32 %v963, %v1223
  %v1225 = vand.u32 %v702, 4294901760
  %1226 = vmatmul.f32.gmra.mxu0 %v1225
  %v1227 = vpop.f32.mrf.mxu0
  %v1228 = vadd.f32 %v971, %v1227
  %v1229 = vand.u32 %v705, 4294901760
  %1230 = vmatmul.f32.gmra.mxu0 %v1229
  %v1231 = vpop.f32.mrf.mxu0
  %v1232 = vadd.f32 %v979, %v1231
  %v1233 = vand.u32 %v708, 4294901760
  %1234 = vmatmul.f32.gmra.mxu0 %v1233
  %v1235 = vpop.f32.mrf.mxu0
  %v1236 = vadd.f32 %v987, %v1235
  %v1237 = vand.u32 %v711, 4294901760
  %1238 = vmatmul.f32.gmra.mxu0 %v1237
  %v1239 = vpop.f32.mrf.mxu0
  %v1240 = vadd.f32 %v995, %v1239
  %v1241 = vand.u32 %v714, 4294901760
  %1242 = vmatmul.f32.gmra.mxu0 %v1241
  %v1243 = vpop.f32.mrf.mxu0
  %v1244 = vadd.f32 %v1003, %v1243
  %v1245 = vand.u32 %v717, 4294901760
  %1246 = vmatmul.f32.gmra.mxu0 %v1245
  %v1247 = vpop.f32.mrf.mxu0
  %v1248 = vadd.f32 %v1011, %v1247
  %v1249 = vand.u32 %v720, 4294901760
  %1250 = vmatmul.f32.gmra.mxu0 %v1249
  %v1251 = vpop.f32.mrf.mxu0
  %v1252 = vadd.f32 %v1019, %v1251
  %v1253 = vand.u32 %v723, 4294901760
  %1254 = vmatmul.f32.gmra.mxu0 %v1253
  %v1255 = vpop.f32.mrf.mxu0
  %v1256 = vadd.f32 %v1027, %v1255
  %v1257 = vand.u32 %v726, 4294901760
  %1258 = vmatmul.f32.gmra.mxu0 %v1257
  %v1259 = vpop.f32.mrf.mxu0
  %v1260 = vadd.f32 %v1035, %v1259
  %v1261 = vand.u32 %v729, 4294901760
  %1262 = vmatmul.f32.gmra.mxu0 %v1261
  %v1263 = vpop.f32.mrf.mxu0
  %v1264 = vadd.f32 %v1043, %v1263
  %v1265 = vand.u32 %v732, 4294901760
  %1266 = vmatmul.f32.gmra.mxu0 %v1265
  %v1267 = vpop.f32.mrf.mxu0
  %v1268 = vadd.f32 %v1051, %v1267
  %v1269 = vand.u32 %v735, 4294901760
  %1270 = vmatmul.f32.gmra.mxu0 %v1269
  %v1271 = vpop.f32.mrf.mxu0
  %v1272 = vadd.f32 %v1059, %v1271
  %v1273 = vand.u32 %v738, 4294901760
  %1274 = vmatmul.f32.gmra.mxu0 %v1273
  %v1275 = vpop.f32.mrf.mxu0
  %v1276 = vadd.f32 %v1067, %v1275
  %1277 = vdwg.mxu0
  %1278 = vmatpush.msra.mxu0 0.0
  %1279 = vmatpush.msra.mxu0 0.0
  %1280 = vmatpush.msra.mxu0 0.0
  %1281 = vmatpush.msra.mxu0 0.0
  %1282 = vmatpush.msra.mxu0 0.0
  %1283 = vmatpush.msra.mxu0 0.0
  %1284 = vmatpush.msra.mxu0 0.0
  %1285 = vmatpush.msra.mxu0 0.0
  %v1286 = vand.u32 %v617, 4294901760
  %v1287 = vsub.f32 %v617, %v1286
  %1288 = vmatpush.msra.mxu0 %v1287
  %v1289 = vand.u32 %v615, 4294901760
  %v1290 = vsub.f32 %v615, %v1289
  %1291 = vmatpush.msra.mxu0 %v1290
  %v1292 = vand.u32 %v613, 4294901760
  %v1293 = vsub.f32 %v613, %v1292
  %1294 = vmatpush.msra.mxu0 %v1293
  %v1295 = vand.u32 %v611, 4294901760
  %v1296 = vsub.f32 %v611, %v1295
  %1297 = vmatpush.msra.mxu0 %v1296
  %v1298 = vand.u32 %v609, 4294901760
  %v1299 = vsub.f32 %v609, %v1298
  %1300 = vmatpush.msra.mxu0 %v1299
  %v1301 = vand.u32 %v607, 4294901760
  %v1302 = vsub.f32 %v607, %v1301
  %1303 = vmatpush.msra.mxu0 %v1302
  %v1304 = vand.u32 %v605, 4294901760
  %v1305 = vsub.f32 %v605, %v1304
  %1306 = vmatpush.msra.mxu0 %v1305
  %v1307 = vand.u32 %v603, 4294901760
  %v1308 = vsub.f32 %v603, %v1307
  %1309 = vmatpush.msra.mxu0 %v1308
  %v1310 = vand.u32 %v627, 4294901760
  %v1311 = vsub.f32 %v627, %v1310
  %1312 = vmatmul.f32.gmra.mxu0 %v1311
  %v1313 = vpop.f32.mrf.mxu0
  %v1314 = vadd.f32 %v1128, %v1313
  %v1315 = vand.u32 %v630, 4294901760
  %v1316 = vsub.f32 %v630, %v1315
  %1317 = vmatmul.f32.gmra.mxu0 %v1316
  %v1318 = vpop.f32.mrf.mxu0
  %v1319 = vadd.f32 %v1132, %v1318
  %v1320 = vand.u32 %v633, 4294901760
  %v1321 = vsub.f32 %v633, %v1320
  %1322 = vmatmul.f32.gmra.mxu0 %v1321
  %v1323 = vpop.f32.mrf.mxu0
  %v1324 = vadd.f32 %v1136, %v1323
  %v1325 = vand.u32 %v636, 4294901760
  %v1326 = vsub.f32 %v636, %v1325
  %1327 = vmatmul.f32.gmra.mxu0 %v1326
  %v1328 = vpop.f32.mrf.mxu0
  %v1329 = vadd.f32 %v1140, %v1328
  %v1330 = vand.u32 %v639, 4294901760
  %v1331 = vsub.f32 %v639, %v1330
  %1332 = vmatmul.f32.gmra.mxu0 %v1331
  %v1333 = vpop.f32.mrf.mxu0
  %v1334 = vadd.f32 %v1144, %v1333
  %v1335 = vand.u32 %v642, 4294901760
  %v1336 = vsub.f32 %v642, %v1335
  %1337 = vmatmul.f32.gmra.mxu0 %v1336
  %v1338 = vpop.f32.mrf.mxu0
  %v1339 = vadd.f32 %v1148, %v1338
  %v1340 = vand.u32 %v645, 4294901760
  %v1341 = vsub.f32 %v645, %v1340
  %1342 = vmatmul.f32.gmra.mxu0 %v1341
  %v1343 = vpop.f32.mrf.mxu0
  %v1344 = vadd.f32 %v1152, %v1343
  %v1345 = vand.u32 %v648, 4294901760
  %v1346 = vsub.f32 %v648, %v1345
  %1347 = vmatmul.f32.gmra.mxu0 %v1346
  %v1348 = vpop.f32.mrf.mxu0
  %v1349 = vadd.f32 %v1156, %v1348
  %v1350 = vand.u32 %v651, 4294901760
  %v1351 = vsub.f32 %v651, %v1350
  %1352 = vmatmul.f32.gmra.mxu0 %v1351
  %v1353 = vpop.f32.mrf.mxu0
  %v1354 = vadd.f32 %v1160, %v1353
  %v1355 = vand.u32 %v654, 4294901760
  %v1356 = vsub.f32 %v654, %v1355
  %1357 = vmatmul.f32.gmra.mxu0 %v1356
  %v1358 = vpop.f32.mrf.mxu0
  %v1359 = vadd.f32 %v1164, %v1358
  %v1360 = vand.u32 %v657, 4294901760
  %v1361 = vsub.f32 %v657, %v1360
  %1362 = vmatmul.f32.gmra.mxu0 %v1361
  %v1363 = vpop.f32.mrf.mxu0
  %v1364 = vadd.f32 %v1168, %v1363
  %v1365 = vand.u32 %v660, 4294901760
  %v1366 = vsub.f32 %v660, %v1365
  %1367 = vmatmul.f32.gmra.mxu0 %v1366
  %v1368 = vpop.f32.mrf.mxu0
  %v1369 = vadd.f32 %v1172, %v1368
  %v1370 = vand.u32 %v663, 4294901760
  %v1371 = vsub.f32 %v663, %v1370
  %1372 = vmatmul.f32.gmra.mxu0 %v1371
  %v1373 = vpop.f32.mrf.mxu0
  %v1374 = vadd.f32 %v1176, %v1373
  %v1375 = vand.u32 %v666, 4294901760
  %v1376 = vsub.f32 %v666, %v1375
  %1377 = vmatmul.f32.gmra.mxu0 %v1376
  %v1378 = vpop.f32.mrf.mxu0
  %v1379 = vadd.f32 %v1180, %v1378
  %v1380 = vand.u32 %v669, 4294901760
  %v1381 = vsub.f32 %v669, %v1380
  %1382 = vmatmul.f32.gmra.mxu0 %v1381
  %v1383 = vpop.f32.mrf.mxu0
  %v1384 = vadd.f32 %v1184, %v1383
  %v1385 = vand.u32 %v672, 4294901760
  %v1386 = vsub.f32 %v672, %v1385
  %1387 = vmatmul.f32.gmra.mxu0 %v1386
  %v1388 = vpop.f32.mrf.mxu0
  %v1389 = vadd.f32 %v1188, %v1388
  %v1390 = vand.u32 %v675, 4294901760
  %v1391 = vsub.f32 %v675, %v1390
  %1392 = vmatmul.f32.gmra.mxu0 %v1391
  %v1393 = vpop.f32.mrf.mxu0
  %v1394 = vadd.f32 %v1192, %v1393
  %v1395 = vand.u32 %v678, 4294901760
  %v1396 = vsub.f32 %v678, %v1395
  %1397 = vmatmul.f32.gmra.mxu0 %v1396
  %v1398 = vpop.f32.mrf.mxu0
  %v1399 = vadd.f32 %v1196, %v1398
  %v1400 = vand.u32 %v681, 4294901760
  %v1401 = vsub.f32 %v681, %v1400
  %1402 = vmatmul.f32.gmra.mxu0 %v1401
  %v1403 = vpop.f32.mrf.mxu0
  %v1404 = vadd.f32 %v1200, %v1403
  %v1405 = vand.u32 %v684, 4294901760
  %v1406 = vsub.f32 %v684, %v1405
  %1407 = vmatmul.f32.gmra.mxu0 %v1406
  %v1408 = vpop.f32.mrf.mxu0
  %v1409 = vadd.f32 %v1204, %v1408
  %v1410 = vand.u32 %v687, 4294901760
  %v1411 = vsub.f32 %v687, %v1410
  %1412 = vmatmul.f32.gmra.mxu0 %v1411
  %v1413 = vpop.f32.mrf.mxu0
  %v1414 = vadd.f32 %v1208, %v1413
  %v1415 = vand.u32 %v690, 4294901760
  %v1416 = vsub.f32 %v690, %v1415
  %1417 = vmatmul.f32.gmra.mxu0 %v1416
  %v1418 = vpop.f32.mrf.mxu0
  %v1419 = vadd.f32 %v1212, %v1418
  %v1420 = vand.u32 %v693, 4294901760
  %v1421 = vsub.f32 %v693, %v1420
  %1422 = vmatmul.f32.gmra.mxu0 %v1421
  %v1423 = vpop.f32.mrf.mxu0
  %v1424 = vadd.f32 %v1216, %v1423
  %v1425 = vand.u32 %v696, 4294901760
  %v1426 = vsub.f32 %v696, %v1425
  %1427 = vmatmul.f32.gmra.mxu0 %v1426
  %v1428 = vpop.f32.mrf.mxu0
  %v1429 = vadd.f32 %v1220, %v1428
  %v1430 = vand.u32 %v699, 4294901760
  %v1431 = vsub.f32 %v699, %v1430
  %1432 = vmatmul.f32.gmra.mxu0 %v1431
  %v1433 = vpop.f32.mrf.mxu0
  %v1434 = vadd.f32 %v1224, %v1433
  %v1435 = vand.u32 %v702, 4294901760
  %v1436 = vsub.f32 %v702, %v1435
  %1437 = vmatmul.f32.gmra.mxu0 %v1436
  %v1438 = vpop.f32.mrf.mxu0
  %v1439 = vadd.f32 %v1228, %v1438
  %v1440 = vand.u32 %v705, 4294901760
  %v1441 = vsub.f32 %v705, %v1440
  %1442 = vmatmul.f32.gmra.mxu0 %v1441
  %v1443 = vpop.f32.mrf.mxu0
  %v1444 = vadd.f32 %v1232, %v1443
  %v1445 = vand.u32 %v708, 4294901760
  %v1446 = vsub.f32 %v708, %v1445
  %1447 = vmatmul.f32.gmra.mxu0 %v1446
  %v1448 = vpop.f32.mrf.mxu0
  %v1449 = vadd.f32 %v1236, %v1448
  %v1450 = vand.u32 %v711, 4294901760
  %v1451 = vsub.f32 %v711, %v1450
  %1452 = vmatmul.f32.gmra.mxu0 %v1451
  %v1453 = vpop.f32.mrf.mxu0
  %v1454 = vadd.f32 %v1240, %v1453
  %v1455 = vand.u32 %v714, 4294901760
  %v1456 = vsub.f32 %v714, %v1455
  %1457 = vmatmul.f32.gmra.mxu0 %v1456
  %v1458 = vpop.f32.mrf.mxu0
  %v1459 = vadd.f32 %v1244, %v1458
  %v1460 = vand.u32 %v717, 4294901760
  %v1461 = vsub.f32 %v717, %v1460
  %1462 = vmatmul.f32.gmra.mxu0 %v1461
  %v1463 = vpop.f32.mrf.mxu0
  %v1464 = vadd.f32 %v1248, %v1463
  %v1465 = vand.u32 %v720, 4294901760
  %v1466 = vsub.f32 %v720, %v1465
  %1467 = vmatmul.f32.gmra.mxu0 %v1466
  %v1468 = vpop.f32.mrf.mxu0
  %v1469 = vadd.f32 %v1252, %v1468
  %v1470 = vand.u32 %v723, 4294901760
  %v1471 = vsub.f32 %v723, %v1470
  %1472 = vmatmul.f32.gmra.mxu0 %v1471
  %v1473 = vpop.f32.mrf.mxu0
  %v1474 = vadd.f32 %v1256, %v1473
  %v1475 = vand.u32 %v726, 4294901760
  %v1476 = vsub.f32 %v726, %v1475
  %1477 = vmatmul.f32.gmra.mxu0 %v1476
  %v1478 = vpop.f32.mrf.mxu0
  %v1479 = vadd.f32 %v1260, %v1478
  %v1480 = vand.u32 %v729, 4294901760
  %v1481 = vsub.f32 %v729, %v1480
  %1482 = vmatmul.f32.gmra.mxu0 %v1481
  %v1483 = vpop.f32.mrf.mxu0
  %v1484 = vadd.f32 %v1264, %v1483
  %v1485 = vand.u32 %v732, 4294901760
  %v1486 = vsub.f32 %v732, %v1485
  %1487 = vmatmul.f32.gmra.mxu0 %v1486
  %v1488 = vpop.f32.mrf.mxu0
  %v1489 = vadd.f32 %v1268, %v1488
  %v1490 = vand.u32 %v735, 4294901760
  %v1491 = vsub.f32 %v735, %v1490
  %1492 = vmatmul.f32.gmra.mxu0 %v1491
  %v1493 = vpop.f32.mrf.mxu0
  %v1494 = vadd.f32 %v1272, %v1493
  %v1495 = vand.u32 %v738, 4294901760
  %v1496 = vsub.f32 %v738, %v1495
  %1497 = vmatmul.f32.gmra.mxu0 %v1496
  %v1498 = vpop.f32.mrf.mxu0
  %v1499 = vadd.f32 %v1276, %v1498
  %1500 = vdwg.mxu0
  %1501 = vmatpush.msra.mxu0 0.0
  %1502 = vmatpush.msra.mxu0 0.0
  %1503 = vmatpush.msra.mxu0 0.0
  %1504 = vmatpush.msra.mxu0 0.0
  %1505 = vmatpush.msra.mxu0 0.0
  %1506 = vmatpush.msra.mxu0 0.0
  %1507 = vmatpush.msra.mxu0 0.0
  %1508 = vmatpush.msra.mxu0 0.0
  %v1509 = vand.u32 %v617, 4294901760
  %1510 = vmatpush.msra.mxu0 %v1509
  %v1511 = vand.u32 %v615, 4294901760
  %1512 = vmatpush.msra.mxu0 %v1511
  %v1513 = vand.u32 %v613, 4294901760
  %1514 = vmatpush.msra.mxu0 %v1513
  %v1515 = vand.u32 %v611, 4294901760
  %1516 = vmatpush.msra.mxu0 %v1515
  %v1517 = vand.u32 %v609, 4294901760
  %1518 = vmatpush.msra.mxu0 %v1517
  %v1519 = vand.u32 %v607, 4294901760
  %1520 = vmatpush.msra.mxu0 %v1519
  %v1521 = vand.u32 %v605, 4294901760
  %1522 = vmatpush.msra.mxu0 %v1521
  %v1523 = vand.u32 %v603, 4294901760
  %1524 = vmatpush.msra.mxu0 %v1523
  %v1525 = vand.u32 %v627, 4294901760
  %v1526 = vsub.f32 %v627, %v1525
  %v1527 = vand.u32 %v1526, 4294901760
  %1528 = vmatmul.f32.gmra.mxu0 %v1527
  %v1529 = vpop.f32.mrf.mxu0
  %v1530 = vadd.f32 %v1314, %v1529
  %v1531 = vand.u32 %v630, 4294901760
  %v1532 = vsub.f32 %v630, %v1531
  %v1533 = vand.u32 %v1532, 4294901760
  %1534 = vmatmul.f32.gmra.mxu0 %v1533
  %v1535 = vpop.f32.mrf.mxu0
  %v1536 = vadd.f32 %v1319, %v1535
  %v1537 = vand.u32 %v633, 4294901760
  %v1538 = vsub.f32 %v633, %v1537
  %v1539 = vand.u32 %v1538, 4294901760
  %1540 = vmatmul.f32.gmra.mxu0 %v1539
  %v1541 = vpop.f32.mrf.mxu0
  %v1542 = vadd.f32 %v1324, %v1541
  %v1543 = vand.u32 %v636, 4294901760
  %v1544 = vsub.f32 %v636, %v1543
  %v1545 = vand.u32 %v1544, 4294901760
  %1546 = vmatmul.f32.gmra.mxu0 %v1545
  %v1547 = vpop.f32.mrf.mxu0
  %v1548 = vadd.f32 %v1329, %v1547
  %v1549 = vand.u32 %v639, 4294901760
  %v1550 = vsub.f32 %v639, %v1549
  %v1551 = vand.u32 %v1550, 4294901760
  %1552 = vmatmul.f32.gmra.mxu0 %v1551
  %v1553 = vpop.f32.mrf.mxu0
  %v1554 = vadd.f32 %v1334, %v1553
  %v1555 = vand.u32 %v642, 4294901760
  %v1556 = vsub.f32 %v642, %v1555
  %v1557 = vand.u32 %v1556, 4294901760
  %1558 = vmatmul.f32.gmra.mxu0 %v1557
  %v1559 = vpop.f32.mrf.mxu0
  %v1560 = vadd.f32 %v1339, %v1559
  %v1561 = vand.u32 %v645, 4294901760
  %v1562 = vsub.f32 %v645, %v1561
  %v1563 = vand.u32 %v1562, 4294901760
  %1564 = vmatmul.f32.gmra.mxu0 %v1563
  %v1565 = vpop.f32.mrf.mxu0
  %v1566 = vadd.f32 %v1344, %v1565
  %v1567 = vand.u32 %v648, 4294901760
  %v1568 = vsub.f32 %v648, %v1567
  %v1569 = vand.u32 %v1568, 4294901760
  %1570 = vmatmul.f32.gmra.mxu0 %v1569
  %v1571 = vpop.f32.mrf.mxu0
  %v1572 = vadd.f32 %v1349, %v1571
  %v1573 = vand.u32 %v651, 4294901760
  %v1574 = vsub.f32 %v651, %v1573
  %v1575 = vand.u32 %v1574, 4294901760
  %1576 = vmatmul.f32.gmra.mxu0 %v1575
  %v1577 = vpop.f32.mrf.mxu0
  %v1578 = vadd.f32 %v1354, %v1577
  %v1579 = vand.u32 %v654, 4294901760
  %v1580 = vsub.f32 %v654, %v1579
  %v1581 = vand.u32 %v1580, 4294901760
  %1582 = vmatmul.f32.gmra.mxu0 %v1581
  %v1583 = vpop.f32.mrf.mxu0
  %v1584 = vadd.f32 %v1359, %v1583
  %v1585 = vand.u32 %v657, 4294901760
  %v1586 = vsub.f32 %v657, %v1585
  %v1587 = vand.u32 %v1586, 4294901760
  %1588 = vmatmul.f32.gmra.mxu0 %v1587
  %v1589 = vpop.f32.mrf.mxu0
  %v1590 = vadd.f32 %v1364, %v1589
  %v1591 = vand.u32 %v660, 4294901760
  %v1592 = vsub.f32 %v660, %v1591
  %v1593 = vand.u32 %v1592, 4294901760
  %1594 = vmatmul.f32.gmra.mxu0 %v1593
  %v1595 = vpop.f32.mrf.mxu0
  %v1596 = vadd.f32 %v1369, %v1595
  %v1597 = vand.u32 %v663, 4294901760
  %v1598 = vsub.f32 %v663, %v1597
  %v1599 = vand.u32 %v1598, 4294901760
  %1600 = vmatmul.f32.gmra.mxu0 %v1599
  %v1601 = vpop.f32.mrf.mxu0
  %v1602 = vadd.f32 %v1374, %v1601
  %v1603 = vand.u32 %v666, 4294901760
  %v1604 = vsub.f32 %v666, %v1603
  %v1605 = vand.u32 %v1604, 4294901760
  %1606 = vmatmul.f32.gmra.mxu0 %v1605
  %v1607 = vpop.f32.mrf.mxu0
  %v1608 = vadd.f32 %v1379, %v1607
  %v1609 = vand.u32 %v669, 4294901760
  %v1610 = vsub.f32 %v669, %v1609
  %v1611 = vand.u32 %v1610, 4294901760
  %1612 = vmatmul.f32.gmra.mxu0 %v1611
  %v1613 = vpop.f32.mrf.mxu0
  %v1614 = vadd.f32 %v1384, %v1613
  %v1615 = vand.u32 %v672, 4294901760
  %v1616 = vsub.f32 %v672, %v1615
  %v1617 = vand.u32 %v1616, 4294901760
  %1618 = vmatmul.f32.gmra.mxu0 %v1617
  %v1619 = vpop.f32.mrf.mxu0
  %v1620 = vadd.f32 %v1389, %v1619
  %v1621 = vand.u32 %v675, 4294901760
  %v1622 = vsub.f32 %v675, %v1621
  %v1623 = vand.u32 %v1622, 4294901760
  %1624 = vmatmul.f32.gmra.mxu0 %v1623
  %v1625 = vpop.f32.mrf.mxu0
  %v1626 = vadd.f32 %v1394, %v1625
  %v1627 = vand.u32 %v678, 4294901760
  %v1628 = vsub.f32 %v678, %v1627
  %v1629 = vand.u32 %v1628, 4294901760
  %1630 = vmatmul.f32.gmra.mxu0 %v1629
  %v1631 = vpop.f32.mrf.mxu0
  %v1632 = vadd.f32 %v1399, %v1631
  %v1633 = vand.u32 %v681, 4294901760
  %v1634 = vsub.f32 %v681, %v1633
  %v1635 = vand.u32 %v1634, 4294901760
  %1636 = vmatmul.f32.gmra.mxu0 %v1635
  %v1637 = vpop.f32.mrf.mxu0
  %v1638 = vadd.f32 %v1404, %v1637
  %v1639 = vand.u32 %v684, 4294901760
  %v1640 = vsub.f32 %v684, %v1639
  %v1641 = vand.u32 %v1640, 4294901760
  %1642 = vmatmul.f32.gmra.mxu0 %v1641
  %v1643 = vpop.f32.mrf.mxu0
  %v1644 = vadd.f32 %v1409, %v1643
  %v1645 = vand.u32 %v687, 4294901760
  %v1646 = vsub.f32 %v687, %v1645
  %v1647 = vand.u32 %v1646, 4294901760
  %1648 = vmatmul.f32.gmra.mxu0 %v1647
  %v1649 = vpop.f32.mrf.mxu0
  %v1650 = vadd.f32 %v1414, %v1649
  %v1651 = vand.u32 %v690, 4294901760
  %v1652 = vsub.f32 %v690, %v1651
  %v1653 = vand.u32 %v1652, 4294901760
  %1654 = vmatmul.f32.gmra.mxu0 %v1653
  %v1655 = vpop.f32.mrf.mxu0
  %v1656 = vadd.f32 %v1419, %v1655
  %v1657 = vand.u32 %v693, 4294901760
  %v1658 = vsub.f32 %v693, %v1657
  %v1659 = vand.u32 %v1658, 4294901760
  %1660 = vmatmul.f32.gmra.mxu0 %v1659
  %v1661 = vpop.f32.mrf.mxu0
  %v1662 = vadd.f32 %v1424, %v1661
  %v1663 = vand.u32 %v696, 4294901760
  %v1664 = vsub.f32 %v696, %v1663
  %v1665 = vand.u32 %v1664, 4294901760
  %1666 = vmatmul.f32.gmra.mxu0 %v1665
  %v1667 = vpop.f32.mrf.mxu0
  %v1668 = vadd.f32 %v1429, %v1667
  %v1669 = vand.u32 %v699, 4294901760
  %v1670 = vsub.f32 %v699, %v1669
  %v1671 = vand.u32 %v1670, 4294901760
  %1672 = vmatmul.f32.gmra.mxu0 %v1671
  %v1673 = vpop.f32.mrf.mxu0
  %v1674 = vadd.f32 %v1434, %v1673
  %v1675 = vand.u32 %v702, 4294901760
  %v1676 = vsub.f32 %v702, %v1675
  %v1677 = vand.u32 %v1676, 4294901760
  %1678 = vmatmul.f32.gmra.mxu0 %v1677
  %v1679 = vpop.f32.mrf.mxu0
  %v1680 = vadd.f32 %v1439, %v1679
  %v1681 = vand.u32 %v705, 4294901760
  %v1682 = vsub.f32 %v705, %v1681
  %v1683 = vand.u32 %v1682, 4294901760
  %1684 = vmatmul.f32.gmra.mxu0 %v1683
  %v1685 = vpop.f32.mrf.mxu0
  %v1686 = vadd.f32 %v1444, %v1685
  %v1687 = vand.u32 %v708, 4294901760
  %v1688 = vsub.f32 %v708, %v1687
  %v1689 = vand.u32 %v1688, 4294901760
  %1690 = vmatmul.f32.gmra.mxu0 %v1689
  %v1691 = vpop.f32.mrf.mxu0
  %v1692 = vadd.f32 %v1449, %v1691
  %v1693 = vand.u32 %v711, 4294901760
  %v1694 = vsub.f32 %v711, %v1693
  %v1695 = vand.u32 %v1694, 4294901760
  %1696 = vmatmul.f32.gmra.mxu0 %v1695
  %v1697 = vpop.f32.mrf.mxu0
  %v1698 = vadd.f32 %v1454, %v1697
  %v1699 = vand.u32 %v714, 4294901760
  %v1700 = vsub.f32 %v714, %v1699
  %v1701 = vand.u32 %v1700, 4294901760
  %1702 = vmatmul.f32.gmra.mxu0 %v1701
  %v1703 = vpop.f32.mrf.mxu0
  %v1704 = vadd.f32 %v1459, %v1703
  %v1705 = vand.u32 %v717, 4294901760
  %v1706 = vsub.f32 %v717, %v1705
  %v1707 = vand.u32 %v1706, 4294901760
  %1708 = vmatmul.f32.gmra.mxu0 %v1707
  %v1709 = vpop.f32.mrf.mxu0
  %v1710 = vadd.f32 %v1464, %v1709
  %v1711 = vand.u32 %v720, 4294901760
  %v1712 = vsub.f32 %v720, %v1711
  %v1713 = vand.u32 %v1712, 4294901760
  %1714 = vmatmul.f32.gmra.mxu0 %v1713
  %v1715 = vpop.f32.mrf.mxu0
  %v1716 = vadd.f32 %v1469, %v1715
  %v1717 = vand.u32 %v723, 4294901760
  %v1718 = vsub.f32 %v723, %v1717
  %v1719 = vand.u32 %v1718, 4294901760
  %1720 = vmatmul.f32.gmra.mxu0 %v1719
  %v1721 = vpop.f32.mrf.mxu0
  %v1722 = vadd.f32 %v1474, %v1721
  %v1723 = vand.u32 %v726, 4294901760
  %v1724 = vsub.f32 %v726, %v1723
  %v1725 = vand.u32 %v1724, 4294901760
  %1726 = vmatmul.f32.gmra.mxu0 %v1725
  %v1727 = vpop.f32.mrf.mxu0
  %v1728 = vadd.f32 %v1479, %v1727
  %v1729 = vand.u32 %v729, 4294901760
  %v1730 = vsub.f32 %v729, %v1729
  %v1731 = vand.u32 %v1730, 4294901760
  %1732 = vmatmul.f32.gmra.mxu0 %v1731
  %v1733 = vpop.f32.mrf.mxu0
  %v1734 = vadd.f32 %v1484, %v1733
  %v1735 = vand.u32 %v732, 4294901760
  %v1736 = vsub.f32 %v732, %v1735
  %v1737 = vand.u32 %v1736, 4294901760
  %1738 = vmatmul.f32.gmra.mxu0 %v1737
  %v1739 = vpop.f32.mrf.mxu0
  %v1740 = vadd.f32 %v1489, %v1739
  %v1741 = vand.u32 %v735, 4294901760
  %v1742 = vsub.f32 %v735, %v1741
  %v1743 = vand.u32 %v1742, 4294901760
  %1744 = vmatmul.f32.gmra.mxu0 %v1743
  %v1745 = vpop.f32.mrf.mxu0
  %v1746 = vadd.f32 %v1494, %v1745
  %v1747 = vand.u32 %v738, 4294901760
  %v1748 = vsub.f32 %v738, %v1747
  %v1749 = vand.u32 %v1748, 4294901760
  %1750 = vmatmul.f32.gmra.mxu0 %v1749
  %v1751 = vpop.f32.mrf.mxu0
  %v1752 = vadd.f32 %v1499, %v1751
  %1753 = vdwg.mxu0
  %1754 = vmatpush.msra.mxu0 0.0
  %1755 = vmatpush.msra.mxu0 0.0
  %1756 = vmatpush.msra.mxu0 0.0
  %1757 = vmatpush.msra.mxu0 0.0
  %1758 = vmatpush.msra.mxu0 0.0
  %1759 = vmatpush.msra.mxu0 0.0
  %1760 = vmatpush.msra.mxu0 0.0
  %1761 = vmatpush.msra.mxu0 0.0
  %v1762 = vand.u32 %v617, 4294901760
  %v1763 = vsub.f32 %v617, %v1762
  %v1764 = vand.u32 %v1763, 4294901760
  %1765 = vmatpush.msra.mxu0 %v1764
  %v1766 = vand.u32 %v615, 4294901760
  %v1767 = vsub.f32 %v615, %v1766
  %v1768 = vand.u32 %v1767, 4294901760
  %1769 = vmatpush.msra.mxu0 %v1768
  %v1770 = vand.u32 %v613, 4294901760
  %v1771 = vsub.f32 %v613, %v1770
  %v1772 = vand.u32 %v1771, 4294901760
  %1773 = vmatpush.msra.mxu0 %v1772
  %v1774 = vand.u32 %v611, 4294901760
  %v1775 = vsub.f32 %v611, %v1774
  %v1776 = vand.u32 %v1775, 4294901760
  %1777 = vmatpush.msra.mxu0 %v1776
  %v1778 = vand.u32 %v609, 4294901760
  %v1779 = vsub.f32 %v609, %v1778
  %v1780 = vand.u32 %v1779, 4294901760
  %1781 = vmatpush.msra.mxu0 %v1780
  %v1782 = vand.u32 %v607, 4294901760
  %v1783 = vsub.f32 %v607, %v1782
  %v1784 = vand.u32 %v1783, 4294901760
  %1785 = vmatpush.msra.mxu0 %v1784
  %v1786 = vand.u32 %v605, 4294901760
  %v1787 = vsub.f32 %v605, %v1786
  %v1788 = vand.u32 %v1787, 4294901760
  %1789 = vmatpush.msra.mxu0 %v1788
  %v1790 = vand.u32 %v603, 4294901760
  %v1791 = vsub.f32 %v603, %v1790
  %v1792 = vand.u32 %v1791, 4294901760
  %1793 = vmatpush.msra.mxu0 %v1792
  %v1794 = vand.u32 %v627, 4294901760
  %1795 = vmatmul.f32.gmra.mxu0 %v1794
  %v1796 = vpop.f32.mrf.mxu0
  %v1797 = vadd.f32 %v1530, %v1796
  %v1798 = vand.u32 %v630, 4294901760
  %1799 = vmatmul.f32.gmra.mxu0 %v1798
  %v1800 = vpop.f32.mrf.mxu0
  %v1801 = vadd.f32 %v1536, %v1800
  %v1802 = vand.u32 %v633, 4294901760
  %1803 = vmatmul.f32.gmra.mxu0 %v1802
  %v1804 = vpop.f32.mrf.mxu0
  %v1805 = vadd.f32 %v1542, %v1804
  %v1806 = vand.u32 %v636, 4294901760
  %1807 = vmatmul.f32.gmra.mxu0 %v1806
  %v1808 = vpop.f32.mrf.mxu0
  %v1809 = vadd.f32 %v1548, %v1808
  %v1810 = vand.u32 %v639, 4294901760
  %1811 = vmatmul.f32.gmra.mxu0 %v1810
  %v1812 = vpop.f32.mrf.mxu0
  %v1813 = vadd.f32 %v1554, %v1812
  %v1814 = vand.u32 %v642, 4294901760
  %1815 = vmatmul.f32.gmra.mxu0 %v1814
  %v1816 = vpop.f32.mrf.mxu0
  %v1817 = vadd.f32 %v1560, %v1816
  %v1818 = vand.u32 %v645, 4294901760
  %1819 = vmatmul.f32.gmra.mxu0 %v1818
  %v1820 = vpop.f32.mrf.mxu0
  %v1821 = vadd.f32 %v1566, %v1820
  %v1822 = vand.u32 %v648, 4294901760
  %1823 = vmatmul.f32.gmra.mxu0 %v1822
  %v1824 = vpop.f32.mrf.mxu0
  %v1825 = vadd.f32 %v1572, %v1824
  %v1826 = vand.u32 %v651, 4294901760
  %1827 = vmatmul.f32.gmra.mxu0 %v1826
  %v1828 = vpop.f32.mrf.mxu0
  %v1829 = vadd.f32 %v1578, %v1828
  %v1830 = vand.u32 %v654, 4294901760
  %1831 = vmatmul.f32.gmra.mxu0 %v1830
  %v1832 = vpop.f32.mrf.mxu0
  %v1833 = vadd.f32 %v1584, %v1832
  %v1834 = vand.u32 %v657, 4294901760
  %1835 = vmatmul.f32.gmra.mxu0 %v1834
  %v1836 = vpop.f32.mrf.mxu0
  %v1837 = vadd.f32 %v1590, %v1836
  %v1838 = vand.u32 %v660, 4294901760
  %1839 = vmatmul.f32.gmra.mxu0 %v1838
  %v1840 = vpop.f32.mrf.mxu0
  %v1841 = vadd.f32 %v1596, %v1840
  %v1842 = vand.u32 %v663, 4294901760
  %1843 = vmatmul.f32.gmra.mxu0 %v1842
  %v1844 = vpop.f32.mrf.mxu0
  %v1845 = vadd.f32 %v1602, %v1844
  %v1846 = vand.u32 %v666, 4294901760
  %1847 = vmatmul.f32.gmra.mxu0 %v1846
  %v1848 = vpop.f32.mrf.mxu0
  %v1849 = vadd.f32 %v1608, %v1848
  %v1850 = vand.u32 %v669, 4294901760
  %1851 = vmatmul.f32.gmra.mxu0 %v1850
  %v1852 = vpop.f32.mrf.mxu0
  %v1853 = vadd.f32 %v1614, %v1852
  %v1854 = vand.u32 %v672, 4294901760
  %1855 = vmatmul.f32.gmra.mxu0 %v1854
  %v1856 = vpop.f32.mrf.mxu0
  %v1857 = vadd.f32 %v1620, %v1856
  %v1858 = vand.u32 %v675, 4294901760
  %1859 = vmatmul.f32.gmra.mxu0 %v1858
  %v1860 = vpop.f32.mrf.mxu0
  %v1861 = vadd.f32 %v1626, %v1860
  %v1862 = vand.u32 %v678, 4294901760
  %1863 = vmatmul.f32.gmra.mxu0 %v1862
  %v1864 = vpop.f32.mrf.mxu0
  %v1865 = vadd.f32 %v1632, %v1864
  %v1866 = vand.u32 %v681, 4294901760
  %1867 = vmatmul.f32.gmra.mxu0 %v1866
  %v1868 = vpop.f32.mrf.mxu0
  %v1869 = vadd.f32 %v1638, %v1868
  %v1870 = vand.u32 %v684, 4294901760
  %1871 = vmatmul.f32.gmra.mxu0 %v1870
  %v1872 = vpop.f32.mrf.mxu0
  %v1873 = vadd.f32 %v1644, %v1872
  %v1874 = vand.u32 %v687, 4294901760
  %1875 = vmatmul.f32.gmra.mxu0 %v1874
  %v1876 = vpop.f32.mrf.mxu0
  %v1877 = vadd.f32 %v1650, %v1876
  %v1878 = vand.u32 %v690, 4294901760
  %1879 = vmatmul.f32.gmra.mxu0 %v1878
  %v1880 = vpop.f32.mrf.mxu0
  %v1881 = vadd.f32 %v1656, %v1880
  %v1882 = vand.u32 %v693, 4294901760
  %1883 = vmatmul.f32.gmra.mxu0 %v1882
  %v1884 = vpop.f32.mrf.mxu0
  %v1885 = vadd.f32 %v1662, %v1884
  %v1886 = vand.u32 %v696, 4294901760
  %1887 = vmatmul.f32.gmra.mxu0 %v1886
  %v1888 = vpop.f32.mrf.mxu0
  %v1889 = vadd.f32 %v1668, %v1888
  %v1890 = vand.u32 %v699, 4294901760
  %1891 = vmatmul.f32.gmra.mxu0 %v1890
  %v1892 = vpop.f32.mrf.mxu0
  %v1893 = vadd.f32 %v1674, %v1892
  %v1894 = vand.u32 %v702, 4294901760
  %1895 = vmatmul.f32.gmra.mxu0 %v1894
  %v1896 = vpop.f32.mrf.mxu0
  %v1897 = vadd.f32 %v1680, %v1896
  %v1898 = vand.u32 %v705, 4294901760
  %1899 = vmatmul.f32.gmra.mxu0 %v1898
  %v1900 = vpop.f32.mrf.mxu0
  %v1901 = vadd.f32 %v1686, %v1900
  %v1902 = vand.u32 %v708, 4294901760
  %1903 = vmatmul.f32.gmra.mxu0 %v1902
  %v1904 = vpop.f32.mrf.mxu0
  %v1905 = vadd.f32 %v1692, %v1904
  %v1906 = vand.u32 %v711, 4294901760
  %1907 = vmatmul.f32.gmra.mxu0 %v1906
  %v1908 = vpop.f32.mrf.mxu0
  %v1909 = vadd.f32 %v1698, %v1908
  %v1910 = vand.u32 %v714, 4294901760
  %1911 = vmatmul.f32.gmra.mxu0 %v1910
  %v1912 = vpop.f32.mrf.mxu0
  %v1913 = vadd.f32 %v1704, %v1912
  %v1914 = vand.u32 %v717, 4294901760
  %1915 = vmatmul.f32.gmra.mxu0 %v1914
  %v1916 = vpop.f32.mrf.mxu0
  %v1917 = vadd.f32 %v1710, %v1916
  %v1918 = vand.u32 %v720, 4294901760
  %1919 = vmatmul.f32.gmra.mxu0 %v1918
  %v1920 = vpop.f32.mrf.mxu0
  %v1921 = vadd.f32 %v1716, %v1920
  %v1922 = vand.u32 %v723, 4294901760
  %1923 = vmatmul.f32.gmra.mxu0 %v1922
  %v1924 = vpop.f32.mrf.mxu0
  %v1925 = vadd.f32 %v1722, %v1924
  %v1926 = vand.u32 %v726, 4294901760
  %1927 = vmatmul.f32.gmra.mxu0 %v1926
  %v1928 = vpop.f32.mrf.mxu0
  %v1929 = vadd.f32 %v1728, %v1928
  %v1930 = vand.u32 %v729, 4294901760
  %1931 = vmatmul.f32.gmra.mxu0 %v1930
  %v1932 = vpop.f32.mrf.mxu0
  %v1933 = vadd.f32 %v1734, %v1932
  %v1934 = vand.u32 %v732, 4294901760
  %1935 = vmatmul.f32.gmra.mxu0 %v1934
  %v1936 = vpop.f32.mrf.mxu0
  %v1937 = vadd.f32 %v1740, %v1936
  %v1938 = vand.u32 %v735, 4294901760
  %1939 = vmatmul.f32.gmra.mxu0 %v1938
  %v1940 = vpop.f32.mrf.mxu0
  %v1941 = vadd.f32 %v1746, %v1940
  %v1942 = vand.u32 %v738, 4294901760
  %1943 = vmatmul.f32.gmra.mxu0 %v1942
  %v1944 = vpop.f32.mrf.mxu0
  %v1945 = vadd.f32 %v1752, %v1944
  %1946 = vdwg.mxu0
  %1947 = vmatpush.msra.mxu0 0.0
  %1948 = vmatpush.msra.mxu0 0.0
  %1949 = vmatpush.msra.mxu0 0.0
  %1950 = vmatpush.msra.mxu0 0.0
  %1951 = vmatpush.msra.mxu0 0.0
  %1952 = vmatpush.msra.mxu0 0.0
  %1953 = vmatpush.msra.mxu0 0.0
  %1954 = vmatpush.msra.mxu0 0.0
  %v1955 = vand.u32 %v617, 4294901760
  %1956 = vmatpush.msra.mxu0 %v1955
  %v1957 = vand.u32 %v615, 4294901760
  %1958 = vmatpush.msra.mxu0 %v1957
  %v1959 = vand.u32 %v613, 4294901760
  %1960 = vmatpush.msra.mxu0 %v1959
  %v1961 = vand.u32 %v611, 4294901760
  %1962 = vmatpush.msra.mxu0 %v1961
  %v1963 = vand.u32 %v609, 4294901760
  %1964 = vmatpush.msra.mxu0 %v1963
  %v1965 = vand.u32 %v607, 4294901760
  %1966 = vmatpush.msra.mxu0 %v1965
  %v1967 = vand.u32 %v605, 4294901760
  %1968 = vmatpush.msra.mxu0 %v1967
  %v1969 = vand.u32 %v603, 4294901760
  %1970 = vmatpush.msra.mxu0 %v1969
  %v1971 = vand.u32 %v627, 4294901760
  %1972 = vmatmul.f32.gmra.mxu0 %v1971
  %v1973 = vpop.f32.mrf.mxu0
  %v1974 = vadd.f32 %v1797, %v1973
  %v1975 = vand.u32 %v630, 4294901760
  %1976 = vmatmul.f32.gmra.mxu0 %v1975
  %v1977 = vpop.f32.mrf.mxu0
  %v1978 = vadd.f32 %v1801, %v1977
  %v1979 = vand.u32 %v633, 4294901760
  %1980 = vmatmul.f32.gmra.mxu0 %v1979
  %v1981 = vpop.f32.mrf.mxu0
  %v1982 = vadd.f32 %v1805, %v1981
  %v1983 = vand.u32 %v636, 4294901760
  %1984 = vmatmul.f32.gmra.mxu0 %v1983
  %v1985 = vpop.f32.mrf.mxu0
  %v1986 = vadd.f32 %v1809, %v1985
  %v1987 = vand.u32 %v639, 4294901760
  %1988 = vmatmul.f32.gmra.mxu0 %v1987
  %v1989 = vpop.f32.mrf.mxu0
  %v1990 = vadd.f32 %v1813, %v1989
  %v1991 = vand.u32 %v642, 4294901760
  %1992 = vmatmul.f32.gmra.mxu0 %v1991
  %v1993 = vpop.f32.mrf.mxu0
  %v1994 = vadd.f32 %v1817, %v1993
  %v1995 = vand.u32 %v645, 4294901760
  %1996 = vmatmul.f32.gmra.mxu0 %v1995
  %v1997 = vpop.f32.mrf.mxu0
  %v1998 = vadd.f32 %v1821, %v1997
  %v1999 = vand.u32 %v648, 4294901760
  %2000 = vmatmul.f32.gmra.mxu0 %v1999
  %v2001 = vpop.f32.mrf.mxu0
  %v2002 = vadd.f32 %v1825, %v2001
  %v2003 = vand.u32 %v651, 4294901760
  %2004 = vmatmul.f32.gmra.mxu0 %v2003
  %v2005 = vpop.f32.mrf.mxu0
  %v2006 = vadd.f32 %v1829, %v2005
  %v2007 = vand.u32 %v654, 4294901760
  %2008 = vmatmul.f32.gmra.mxu0 %v2007
  %v2009 = vpop.f32.mrf.mxu0
  %v2010 = vadd.f32 %v1833, %v2009
  %v2011 = vand.u32 %v657, 4294901760
  %2012 = vmatmul.f32.gmra.mxu0 %v2011
  %v2013 = vpop.f32.mrf.mxu0
  %v2014 = vadd.f32 %v1837, %v2013
  %v2015 = vand.u32 %v660, 4294901760
  %2016 = vmatmul.f32.gmra.mxu0 %v2015
  %v2017 = vpop.f32.mrf.mxu0
  %v2018 = vadd.f32 %v1841, %v2017
  %v2019 = vand.u32 %v663, 4294901760
  %2020 = vmatmul.f32.gmra.mxu0 %v2019
  %v2021 = vpop.f32.mrf.mxu0
  %v2022 = vadd.f32 %v1845, %v2021
  %v2023 = vand.u32 %v666, 4294901760
  %2024 = vmatmul.f32.gmra.mxu0 %v2023
  %v2025 = vpop.f32.mrf.mxu0
  %v2026 = vadd.f32 %v1849, %v2025
  %v2027 = vand.u32 %v669, 4294901760
  %2028 = vmatmul.f32.gmra.mxu0 %v2027
  %v2029 = vpop.f32.mrf.mxu0
  %v2030 = vadd.f32 %v1853, %v2029
  %v2031 = vand.u32 %v672, 4294901760
  %2032 = vmatmul.f32.gmra.mxu0 %v2031
  %v2033 = vpop.f32.mrf.mxu0
  %v2034 = vadd.f32 %v1857, %v2033
  %v2035 = vand.u32 %v675, 4294901760
  %2036 = vmatmul.f32.gmra.mxu0 %v2035
  %v2037 = vpop.f32.mrf.mxu0
  %v2038 = vadd.f32 %v1861, %v2037
  %v2039 = vand.u32 %v678, 4294901760
  %2040 = vmatmul.f32.gmra.mxu0 %v2039
  %v2041 = vpop.f32.mrf.mxu0
  %v2042 = vadd.f32 %v1865, %v2041
  %v2043 = vand.u32 %v681, 4294901760
  %2044 = vmatmul.f32.gmra.mxu0 %v2043
  %v2045 = vpop.f32.mrf.mxu0
  %v2046 = vadd.f32 %v1869, %v2045
  %v2047 = vand.u32 %v684, 4294901760
  %2048 = vmatmul.f32.gmra.mxu0 %v2047
  %v2049 = vpop.f32.mrf.mxu0
  %v2050 = vadd.f32 %v1873, %v2049
  %v2051 = vand.u32 %v687, 4294901760
  %2052 = vmatmul.f32.gmra.mxu0 %v2051
  %v2053 = vpop.f32.mrf.mxu0
  %v2054 = vadd.f32 %v1877, %v2053
  %v2055 = vand.u32 %v690, 4294901760
  %2056 = vmatmul.f32.gmra.mxu0 %v2055
  %v2057 = vpop.f32.mrf.mxu0
  %v2058 = vadd.f32 %v1881, %v2057
  %v2059 = vand.u32 %v693, 4294901760
  %2060 = vmatmul.f32.gmra.mxu0 %v2059
  %v2061 = vpop.f32.mrf.mxu0
  %v2062 = vadd.f32 %v1885, %v2061
  %v2063 = vand.u32 %v696, 4294901760
  %2064 = vmatmul.f32.gmra.mxu0 %v2063
  %v2065 = vpop.f32.mrf.mxu0
  %v2066 = vadd.f32 %v1889, %v2065
  %v2067 = vand.u32 %v699, 4294901760
  %2068 = vmatmul.f32.gmra.mxu0 %v2067
  %v2069 = vpop.f32.mrf.mxu0
  %v2070 = vadd.f32 %v1893, %v2069
  %v2071 = vand.u32 %v702, 4294901760
  %2072 = vmatmul.f32.gmra.mxu0 %v2071
  %v2073 = vpop.f32.mrf.mxu0
  %v2074 = vadd.f32 %v1897, %v2073
  %v2075 = vand.u32 %v705, 4294901760
  %2076 = vmatmul.f32.gmra.mxu0 %v2075
  %v2077 = vpop.f32.mrf.mxu0
  %v2078 = vadd.f32 %v1901, %v2077
  %v2079 = vand.u32 %v708, 4294901760
  %2080 = vmatmul.f32.gmra.mxu0 %v2079
  %v2081 = vpop.f32.mrf.mxu0
  %v2082 = vadd.f32 %v1905, %v2081
  %v2083 = vand.u32 %v711, 4294901760
  %2084 = vmatmul.f32.gmra.mxu0 %v2083
  %v2085 = vpop.f32.mrf.mxu0
  %v2086 = vadd.f32 %v1909, %v2085
  %v2087 = vand.u32 %v714, 4294901760
  %2088 = vmatmul.f32.gmra.mxu0 %v2087
  %v2089 = vpop.f32.mrf.mxu0
  %v2090 = vadd.f32 %v1913, %v2089
  %v2091 = vand.u32 %v717, 4294901760
  %2092 = vmatmul.f32.gmra.mxu0 %v2091
  %v2093 = vpop.f32.mrf.mxu0
  %v2094 = vadd.f32 %v1917, %v2093
  %v2095 = vand.u32 %v720, 4294901760
  %2096 = vmatmul.f32.gmra.mxu0 %v2095
  %v2097 = vpop.f32.mrf.mxu0
  %v2098 = vadd.f32 %v1921, %v2097
  %v2099 = vand.u32 %v723, 4294901760
  %2100 = vmatmul.f32.gmra.mxu0 %v2099
  %v2101 = vpop.f32.mrf.mxu0
  %v2102 = vadd.f32 %v1925, %v2101
  %v2103 = vand.u32 %v726, 4294901760
  %2104 = vmatmul.f32.gmra.mxu0 %v2103
  %v2105 = vpop.f32.mrf.mxu0
  %v2106 = vadd.f32 %v1929, %v2105
  %v2107 = vand.u32 %v729, 4294901760
  %2108 = vmatmul.f32.gmra.mxu0 %v2107
  %v2109 = vpop.f32.mrf.mxu0
  %v2110 = vadd.f32 %v1933, %v2109
  %v2111 = vand.u32 %v732, 4294901760
  %2112 = vmatmul.f32.gmra.mxu0 %v2111
  %v2113 = vpop.f32.mrf.mxu0
  %v2114 = vadd.f32 %v1937, %v2113
  %v2115 = vand.u32 %v735, 4294901760
  %2116 = vmatmul.f32.gmra.mxu0 %v2115
  %v2117 = vpop.f32.mrf.mxu0
  %v2118 = vadd.f32 %v1941, %v2117
  %v2119 = vand.u32 %v738, 4294901760
  %2120 = vmatmul.f32.gmra.mxu0 %v2119
  %v2121 = vpop.f32.mrf.mxu0
  %v2122 = vadd.f32 %v1945, %v2121
  %2123 = vdwg.mxu0
  %2124 = vmatpush.msra.mxu0 0.0
  %2125 = vmatpush.msra.mxu0 0.0
  %2126 = vmatpush.msra.mxu0 0.0
  %2127 = vmatpush.msra.mxu0 0.0
  %2128 = vmatpush.msra.mxu0 0.0
  %2129 = vmatpush.msra.mxu0 0.0
  %2130 = vmatpush.msra.mxu0 0.0
  %2131 = vmatpush.msra.mxu0 0.0
  %v2132 = vand.u32 %v618, 4294901760
  %2133 = vmatpush.msra.mxu0 %v2132
  %v2134 = vand.u32 %v616, 4294901760
  %2135 = vmatpush.msra.mxu0 %v2134
  %v2136 = vand.u32 %v614, 4294901760
  %2137 = vmatpush.msra.mxu0 %v2136
  %v2138 = vand.u32 %v612, 4294901760
  %2139 = vmatpush.msra.mxu0 %v2138
  %v2140 = vand.u32 %v610, 4294901760
  %2141 = vmatpush.msra.mxu0 %v2140
  %v2142 = vand.u32 %v608, 4294901760
  %2143 = vmatpush.msra.mxu0 %v2142
  %v2144 = vand.u32 %v606, 4294901760
  %2145 = vmatpush.msra.mxu0 %v2144
  %v2146 = vand.u32 %v604, 4294901760
  %2147 = vmatpush.msra.mxu0 %v2146
  %v2148 = vand.u32 %v627, 4294901760
  %v2149 = vsub.f32 %v627, %v2148
  %v2150 = vand.u32 %v2149, 4294901760
  %v2151 = vsub.f32 %v2149, %v2150
  %v2152 = vand.u32 %v2151, 4294901760
  %2153 = vmatmul.f32.gmra.mxu0 %v2152
  %v2154 = vpop.f32.mrf.mxu0
  %v2155 = vadd.f32 %v622, %v2154
  %v2156 = vand.u32 %v630, 4294901760
  %v2157 = vsub.f32 %v630, %v2156
  %v2158 = vand.u32 %v2157, 4294901760
  %v2159 = vsub.f32 %v2157, %v2158
  %v2160 = vand.u32 %v2159, 4294901760
  %2161 = vmatmul.f32.gmra.mxu0 %v2160
  %v2162 = vpop.f32.mrf.mxu0
  %v2163 = vadd.f32 %v622, %v2162
  %v2164 = vand.u32 %v633, 4294901760
  %v2165 = vsub.f32 %v633, %v2164
  %v2166 = vand.u32 %v2165, 4294901760
  %v2167 = vsub.f32 %v2165, %v2166
  %v2168 = vand.u32 %v2167, 4294901760
  %2169 = vmatmul.f32.gmra.mxu0 %v2168
  %v2170 = vpop.f32.mrf.mxu0
  %v2171 = vadd.f32 %v622, %v2170
  %v2172 = vand.u32 %v636, 4294901760
  %v2173 = vsub.f32 %v636, %v2172
  %v2174 = vand.u32 %v2173, 4294901760
  %v2175 = vsub.f32 %v2173, %v2174
  %v2176 = vand.u32 %v2175, 4294901760
  %2177 = vmatmul.f32.gmra.mxu0 %v2176
  %v2178 = vpop.f32.mrf.mxu0
  %v2179 = vadd.f32 %v622, %v2178
  %v2180 = vand.u32 %v639, 4294901760
  %v2181 = vsub.f32 %v639, %v2180
  %v2182 = vand.u32 %v2181, 4294901760
  %v2183 = vsub.f32 %v2181, %v2182
  %v2184 = vand.u32 %v2183, 4294901760
  %2185 = vmatmul.f32.gmra.mxu0 %v2184
  %v2186 = vpop.f32.mrf.mxu0
  %v2187 = vadd.f32 %v622, %v2186
  %v2188 = vand.u32 %v642, 4294901760
  %v2189 = vsub.f32 %v642, %v2188
  %v2190 = vand.u32 %v2189, 4294901760
  %v2191 = vsub.f32 %v2189, %v2190
  %v2192 = vand.u32 %v2191, 4294901760
  %2193 = vmatmul.f32.gmra.mxu0 %v2192
  %v2194 = vpop.f32.mrf.mxu0
  %v2195 = vadd.f32 %v622, %v2194
  %v2196 = vand.u32 %v645, 4294901760
  %v2197 = vsub.f32 %v645, %v2196
  %v2198 = vand.u32 %v2197, 4294901760
  %v2199 = vsub.f32 %v2197, %v2198
  %v2200 = vand.u32 %v2199, 4294901760
  %2201 = vmatmul.f32.gmra.mxu0 %v2200
  %v2202 = vpop.f32.mrf.mxu0
  %v2203 = vadd.f32 %v622, %v2202
  %v2204 = vand.u32 %v648, 4294901760
  %v2205 = vsub.f32 %v648, %v2204
  %v2206 = vand.u32 %v2205, 4294901760
  %v2207 = vsub.f32 %v2205, %v2206
  %v2208 = vand.u32 %v2207, 4294901760
  %2209 = vmatmul.f32.gmra.mxu0 %v2208
  %v2210 = vpop.f32.mrf.mxu0
  %v2211 = vadd.f32 %v622, %v2210
  %v2212 = vand.u32 %v651, 4294901760
  %v2213 = vsub.f32 %v651, %v2212
  %v2214 = vand.u32 %v2213, 4294901760
  %v2215 = vsub.f32 %v2213, %v2214
  %v2216 = vand.u32 %v2215, 4294901760
  %2217 = vmatmul.f32.gmra.mxu0 %v2216
  %v2218 = vpop.f32.mrf.mxu0
  %v2219 = vadd.f32 %v622, %v2218
  %v2220 = vand.u32 %v654, 4294901760
  %v2221 = vsub.f32 %v654, %v2220
  %v2222 = vand.u32 %v2221, 4294901760
  %v2223 = vsub.f32 %v2221, %v2222
  %v2224 = vand.u32 %v2223, 4294901760
  %2225 = vmatmul.f32.gmra.mxu0 %v2224
  %v2226 = vpop.f32.mrf.mxu0
  %v2227 = vadd.f32 %v622, %v2226
  %v2228 = vand.u32 %v657, 4294901760
  %v2229 = vsub.f32 %v657, %v2228
  %v2230 = vand.u32 %v2229, 4294901760
  %v2231 = vsub.f32 %v2229, %v2230
  %v2232 = vand.u32 %v2231, 4294901760
  %2233 = vmatmul.f32.gmra.mxu0 %v2232
  %v2234 = vpop.f32.mrf.mxu0
  %v2235 = vadd.f32 %v622, %v2234
  %v2236 = vand.u32 %v660, 4294901760
  %v2237 = vsub.f32 %v660, %v2236
  %v2238 = vand.u32 %v2237, 4294901760
  %v2239 = vsub.f32 %v2237, %v2238
  %v2240 = vand.u32 %v2239, 4294901760
  %2241 = vmatmul.f32.gmra.mxu0 %v2240
  %v2242 = vpop.f32.mrf.mxu0
  %v2243 = vadd.f32 %v622, %v2242
  %v2244 = vand.u32 %v663, 4294901760
  %v2245 = vsub.f32 %v663, %v2244
  %v2246 = vand.u32 %v2245, 4294901760
  %v2247 = vsub.f32 %v2245, %v2246
  %v2248 = vand.u32 %v2247, 4294901760
  %2249 = vmatmul.f32.gmra.mxu0 %v2248
  %v2250 = vpop.f32.mrf.mxu0
  %v2251 = vadd.f32 %v622, %v2250
  %v2252 = vand.u32 %v666, 4294901760
  %v2253 = vsub.f32 %v666, %v2252
  %v2254 = vand.u32 %v2253, 4294901760
  %v2255 = vsub.f32 %v2253, %v2254
  %v2256 = vand.u32 %v2255, 4294901760
  %2257 = vmatmul.f32.gmra.mxu0 %v2256
  %v2258 = vpop.f32.mrf.mxu0
  %v2259 = vadd.f32 %v622, %v2258
  %v2260 = vand.u32 %v669, 4294901760
  %v2261 = vsub.f32 %v669, %v2260
  %v2262 = vand.u32 %v2261, 4294901760
  %v2263 = vsub.f32 %v2261, %v2262
  %v2264 = vand.u32 %v2263, 4294901760
  %2265 = vmatmul.f32.gmra.mxu0 %v2264
  %v2266 = vpop.f32.mrf.mxu0
  %v2267 = vadd.f32 %v622, %v2266
  %v2268 = vand.u32 %v672, 4294901760
  %v2269 = vsub.f32 %v672, %v2268
  %v2270 = vand.u32 %v2269, 4294901760
  %v2271 = vsub.f32 %v2269, %v2270
  %v2272 = vand.u32 %v2271, 4294901760
  %2273 = vmatmul.f32.gmra.mxu0 %v2272
  %v2274 = vpop.f32.mrf.mxu0
  %v2275 = vadd.f32 %v622, %v2274
  %v2276 = vand.u32 %v675, 4294901760
  %v2277 = vsub.f32 %v675, %v2276
  %v2278 = vand.u32 %v2277, 4294901760
  %v2279 = vsub.f32 %v2277, %v2278
  %v2280 = vand.u32 %v2279, 4294901760
  %2281 = vmatmul.f32.gmra.mxu0 %v2280
  %v2282 = vpop.f32.mrf.mxu0
  %v2283 = vadd.f32 %v622, %v2282
  %v2284 = vand.u32 %v678, 4294901760
  %v2285 = vsub.f32 %v678, %v2284
  %v2286 = vand.u32 %v2285, 4294901760
  %v2287 = vsub.f32 %v2285, %v2286
  %v2288 = vand.u32 %v2287, 4294901760
  %2289 = vmatmul.f32.gmra.mxu0 %v2288
  %v2290 = vpop.f32.mrf.mxu0
  %v2291 = vadd.f32 %v622, %v2290
  %v2292 = vand.u32 %v681, 4294901760
  %v2293 = vsub.f32 %v681, %v2292
  %v2294 = vand.u32 %v2293, 4294901760
  %v2295 = vsub.f32 %v2293, %v2294
  %v2296 = vand.u32 %v2295, 4294901760
  %2297 = vmatmul.f32.gmra.mxu0 %v2296
  %v2298 = vpop.f32.mrf.mxu0
  %v2299 = vadd.f32 %v622, %v2298
  %v2300 = vand.u32 %v684, 4294901760
  %v2301 = vsub.f32 %v684, %v2300
  %v2302 = vand.u32 %v2301, 4294901760
  %v2303 = vsub.f32 %v2301, %v2302
  %v2304 = vand.u32 %v2303, 4294901760
  %2305 = vmatmul.f32.gmra.mxu0 %v2304
  %v2306 = vpop.f32.mrf.mxu0
  %v2307 = vadd.f32 %v622, %v2306
  %v2308 = vand.u32 %v687, 4294901760
  %v2309 = vsub.f32 %v687, %v2308
  %v2310 = vand.u32 %v2309, 4294901760
  %v2311 = vsub.f32 %v2309, %v2310
  %v2312 = vand.u32 %v2311, 4294901760
  %2313 = vmatmul.f32.gmra.mxu0 %v2312
  %v2314 = vpop.f32.mrf.mxu0
  %v2315 = vadd.f32 %v622, %v2314
  %v2316 = vand.u32 %v690, 4294901760
  %v2317 = vsub.f32 %v690, %v2316
  %v2318 = vand.u32 %v2317, 4294901760
  %v2319 = vsub.f32 %v2317, %v2318
  %v2320 = vand.u32 %v2319, 4294901760
  %2321 = vmatmul.f32.gmra.mxu0 %v2320
  %v2322 = vpop.f32.mrf.mxu0
  %v2323 = vadd.f32 %v622, %v2322
  %v2324 = vand.u32 %v693, 4294901760
  %v2325 = vsub.f32 %v693, %v2324
  %v2326 = vand.u32 %v2325, 4294901760
  %v2327 = vsub.f32 %v2325, %v2326
  %v2328 = vand.u32 %v2327, 4294901760
  %2329 = vmatmul.f32.gmra.mxu0 %v2328
  %v2330 = vpop.f32.mrf.mxu0
  %v2331 = vadd.f32 %v622, %v2330
  %v2332 = vand.u32 %v696, 4294901760
  %v2333 = vsub.f32 %v696, %v2332
  %v2334 = vand.u32 %v2333, 4294901760
  %v2335 = vsub.f32 %v2333, %v2334
  %v2336 = vand.u32 %v2335, 4294901760
  %2337 = vmatmul.f32.gmra.mxu0 %v2336
  %v2338 = vpop.f32.mrf.mxu0
  %v2339 = vadd.f32 %v622, %v2338
  %v2340 = vand.u32 %v699, 4294901760
  %v2341 = vsub.f32 %v699, %v2340
  %v2342 = vand.u32 %v2341, 4294901760
  %v2343 = vsub.f32 %v2341, %v2342
  %v2344 = vand.u32 %v2343, 4294901760
  %2345 = vmatmul.f32.gmra.mxu0 %v2344
  %v2346 = vpop.f32.mrf.mxu0
  %v2347 = vadd.f32 %v622, %v2346
  %v2348 = vand.u32 %v702, 4294901760
  %v2349 = vsub.f32 %v702, %v2348
  %v2350 = vand.u32 %v2349, 4294901760
  %v2351 = vsub.f32 %v2349, %v2350
  %v2352 = vand.u32 %v2351, 4294901760
  %2353 = vmatmul.f32.gmra.mxu0 %v2352
  %v2354 = vpop.f32.mrf.mxu0
  %v2355 = vadd.f32 %v622, %v2354
  %v2356 = vand.u32 %v705, 4294901760
  %v2357 = vsub.f32 %v705, %v2356
  %v2358 = vand.u32 %v2357, 4294901760
  %v2359 = vsub.f32 %v2357, %v2358
  %v2360 = vand.u32 %v2359, 4294901760
  %2361 = vmatmul.f32.gmra.mxu0 %v2360
  %v2362 = vpop.f32.mrf.mxu0
  %v2363 = vadd.f32 %v622, %v2362
  %v2364 = vand.u32 %v708, 4294901760
  %v2365 = vsub.f32 %v708, %v2364
  %v2366 = vand.u32 %v2365, 4294901760
  %v2367 = vsub.f32 %v2365, %v2366
  %v2368 = vand.u32 %v2367, 4294901760
  %2369 = vmatmul.f32.gmra.mxu0 %v2368
  %v2370 = vpop.f32.mrf.mxu0
  %v2371 = vadd.f32 %v622, %v2370
  %v2372 = vand.u32 %v711, 4294901760
  %v2373 = vsub.f32 %v711, %v2372
  %v2374 = vand.u32 %v2373, 4294901760
  %v2375 = vsub.f32 %v2373, %v2374
  %v2376 = vand.u32 %v2375, 4294901760
  %2377 = vmatmul.f32.gmra.mxu0 %v2376
  %v2378 = vpop.f32.mrf.mxu0
  %v2379 = vadd.f32 %v622, %v2378
  %v2380 = vand.u32 %v714, 4294901760
  %v2381 = vsub.f32 %v714, %v2380
  %v2382 = vand.u32 %v2381, 4294901760
  %v2383 = vsub.f32 %v2381, %v2382
  %v2384 = vand.u32 %v2383, 4294901760
  %2385 = vmatmul.f32.gmra.mxu0 %v2384
  %v2386 = vpop.f32.mrf.mxu0
  %v2387 = vadd.f32 %v622, %v2386
  %v2388 = vand.u32 %v717, 4294901760
  %v2389 = vsub.f32 %v717, %v2388
  %v2390 = vand.u32 %v2389, 4294901760
  %v2391 = vsub.f32 %v2389, %v2390
  %v2392 = vand.u32 %v2391, 4294901760
  %2393 = vmatmul.f32.gmra.mxu0 %v2392
  %v2394 = vpop.f32.mrf.mxu0
  %v2395 = vadd.f32 %v622, %v2394
  %v2396 = vand.u32 %v720, 4294901760
  %v2397 = vsub.f32 %v720, %v2396
  %v2398 = vand.u32 %v2397, 4294901760
  %v2399 = vsub.f32 %v2397, %v2398
  %v2400 = vand.u32 %v2399, 4294901760
  %2401 = vmatmul.f32.gmra.mxu0 %v2400
  %v2402 = vpop.f32.mrf.mxu0
  %v2403 = vadd.f32 %v622, %v2402
  %v2404 = vand.u32 %v723, 4294901760
  %v2405 = vsub.f32 %v723, %v2404
  %v2406 = vand.u32 %v2405, 4294901760
  %v2407 = vsub.f32 %v2405, %v2406
  %v2408 = vand.u32 %v2407, 4294901760
  %2409 = vmatmul.f32.gmra.mxu0 %v2408
  %v2410 = vpop.f32.mrf.mxu0
  %v2411 = vadd.f32 %v622, %v2410
  %v2412 = vand.u32 %v726, 4294901760
  %v2413 = vsub.f32 %v726, %v2412
  %v2414 = vand.u32 %v2413, 4294901760
  %v2415 = vsub.f32 %v2413, %v2414
  %v2416 = vand.u32 %v2415, 4294901760
  %2417 = vmatmul.f32.gmra.mxu0 %v2416
  %v2418 = vpop.f32.mrf.mxu0
  %v2419 = vadd.f32 %v622, %v2418
  %v2420 = vand.u32 %v729, 4294901760
  %v2421 = vsub.f32 %v729, %v2420
  %v2422 = vand.u32 %v2421, 4294901760
  %v2423 = vsub.f32 %v2421, %v2422
  %v2424 = vand.u32 %v2423, 4294901760
  %2425 = vmatmul.f32.gmra.mxu0 %v2424
  %v2426 = vpop.f32.mrf.mxu0
  %v2427 = vadd.f32 %v622, %v2426
  %v2428 = vand.u32 %v732, 4294901760
  %v2429 = vsub.f32 %v732, %v2428
  %v2430 = vand.u32 %v2429, 4294901760
  %v2431 = vsub.f32 %v2429, %v2430
  %v2432 = vand.u32 %v2431, 4294901760
  %2433 = vmatmul.f32.gmra.mxu0 %v2432
  %v2434 = vpop.f32.mrf.mxu0
  %v2435 = vadd.f32 %v622, %v2434
  %v2436 = vand.u32 %v735, 4294901760
  %v2437 = vsub.f32 %v735, %v2436
  %v2438 = vand.u32 %v2437, 4294901760
  %v2439 = vsub.f32 %v2437, %v2438
  %v2440 = vand.u32 %v2439, 4294901760
  %2441 = vmatmul.f32.gmra.mxu0 %v2440
  %v2442 = vpop.f32.mrf.mxu0
  %v2443 = vadd.f32 %v622, %v2442
  %v2444 = vand.u32 %v738, 4294901760
  %v2445 = vsub.f32 %v738, %v2444
  %v2446 = vand.u32 %v2445, 4294901760
  %v2447 = vsub.f32 %v2445, %v2446
  %v2448 = vand.u32 %v2447, 4294901760
  %2449 = vmatmul.f32.gmra.mxu0 %v2448
  %v2450 = vpop.f32.mrf.mxu0
  %v2451 = vadd.f32 %v622, %v2450
  %2452 = vdwg.mxu0
  %2453 = vmatpush.msra.mxu0 0.0
  %2454 = vmatpush.msra.mxu0 0.0
  %2455 = vmatpush.msra.mxu0 0.0
  %2456 = vmatpush.msra.mxu0 0.0
  %2457 = vmatpush.msra.mxu0 0.0
  %2458 = vmatpush.msra.mxu0 0.0
  %2459 = vmatpush.msra.mxu0 0.0
  %2460 = vmatpush.msra.mxu0 0.0
  %v2461 = vand.u32 %v618, 4294901760
  %v2462 = vsub.f32 %v618, %v2461
  %v2463 = vand.u32 %v2462, 4294901760
  %v2464 = vsub.f32 %v2462, %v2463
  %v2465 = vand.u32 %v2464, 4294901760
  %2466 = vmatpush.msra.mxu0 %v2465
  %v2467 = vand.u32 %v616, 4294901760
  %v2468 = vsub.f32 %v616, %v2467
  %v2469 = vand.u32 %v2468, 4294901760
  %v2470 = vsub.f32 %v2468, %v2469
  %v2471 = vand.u32 %v2470, 4294901760
  %2472 = vmatpush.msra.mxu0 %v2471
  %v2473 = vand.u32 %v614, 4294901760
  %v2474 = vsub.f32 %v614, %v2473
  %v2475 = vand.u32 %v2474, 4294901760
  %v2476 = vsub.f32 %v2474, %v2475
  %v2477 = vand.u32 %v2476, 4294901760
  %2478 = vmatpush.msra.mxu0 %v2477
  %v2479 = vand.u32 %v612, 4294901760
  %v2480 = vsub.f32 %v612, %v2479
  %v2481 = vand.u32 %v2480, 4294901760
  %v2482 = vsub.f32 %v2480, %v2481
  %v2483 = vand.u32 %v2482, 4294901760
  %2484 = vmatpush.msra.mxu0 %v2483
  %v2485 = vand.u32 %v610, 4294901760
  %v2486 = vsub.f32 %v610, %v2485
  %v2487 = vand.u32 %v2486, 4294901760
  %v2488 = vsub.f32 %v2486, %v2487
  %v2489 = vand.u32 %v2488, 4294901760
  %2490 = vmatpush.msra.mxu0 %v2489
  %v2491 = vand.u32 %v608, 4294901760
  %v2492 = vsub.f32 %v608, %v2491
  %v2493 = vand.u32 %v2492, 4294901760
  %v2494 = vsub.f32 %v2492, %v2493
  %v2495 = vand.u32 %v2494, 4294901760
  %2496 = vmatpush.msra.mxu0 %v2495
  %v2497 = vand.u32 %v606, 4294901760
  %v2498 = vsub.f32 %v606, %v2497
  %v2499 = vand.u32 %v2498, 4294901760
  %v2500 = vsub.f32 %v2498, %v2499
  %v2501 = vand.u32 %v2500, 4294901760
  %2502 = vmatpush.msra.mxu0 %v2501
  %v2503 = vand.u32 %v604, 4294901760
  %v2504 = vsub.f32 %v604, %v2503
  %v2505 = vand.u32 %v2504, 4294901760
  %v2506 = vsub.f32 %v2504, %v2505
  %v2507 = vand.u32 %v2506, 4294901760
  %2508 = vmatpush.msra.mxu0 %v2507
  %v2509 = vand.u32 %v627, 4294901760
  %2510 = vmatmul.f32.gmra.mxu0 %v2509
  %v2511 = vpop.f32.mrf.mxu0
  %v2512 = vadd.f32 %v2155, %v2511
  %v2513 = vand.u32 %v630, 4294901760
  %2514 = vmatmul.f32.gmra.mxu0 %v2513
  %v2515 = vpop.f32.mrf.mxu0
  %v2516 = vadd.f32 %v2163, %v2515
  %v2517 = vand.u32 %v633, 4294901760
  %2518 = vmatmul.f32.gmra.mxu0 %v2517
  %v2519 = vpop.f32.mrf.mxu0
  %v2520 = vadd.f32 %v2171, %v2519
  %v2521 = vand.u32 %v636, 4294901760
  %2522 = vmatmul.f32.gmra.mxu0 %v2521
  %v2523 = vpop.f32.mrf.mxu0
  %v2524 = vadd.f32 %v2179, %v2523
  %v2525 = vand.u32 %v639, 4294901760
  %2526 = vmatmul.f32.gmra.mxu0 %v2525
  %v2527 = vpop.f32.mrf.mxu0
  %v2528 = vadd.f32 %v2187, %v2527
  %v2529 = vand.u32 %v642, 4294901760
  %2530 = vmatmul.f32.gmra.mxu0 %v2529
  %v2531 = vpop.f32.mrf.mxu0
  %v2532 = vadd.f32 %v2195, %v2531
  %v2533 = vand.u32 %v645, 4294901760
  %2534 = vmatmul.f32.gmra.mxu0 %v2533
  %v2535 = vpop.f32.mrf.mxu0
  %v2536 = vadd.f32 %v2203, %v2535
  %v2537 = vand.u32 %v648, 4294901760
  %2538 = vmatmul.f32.gmra.mxu0 %v2537
  %v2539 = vpop.f32.mrf.mxu0
  %v2540 = vadd.f32 %v2211, %v2539
  %v2541 = vand.u32 %v651, 4294901760
  %2542 = vmatmul.f32.gmra.mxu0 %v2541
  %v2543 = vpop.f32.mrf.mxu0
  %v2544 = vadd.f32 %v2219, %v2543
  %v2545 = vand.u32 %v654, 4294901760
  %2546 = vmatmul.f32.gmra.mxu0 %v2545
  %v2547 = vpop.f32.mrf.mxu0
  %v2548 = vadd.f32 %v2227, %v2547
  %v2549 = vand.u32 %v657, 4294901760
  %2550 = vmatmul.f32.gmra.mxu0 %v2549
  %v2551 = vpop.f32.mrf.mxu0
  %v2552 = vadd.f32 %v2235, %v2551
  %v2553 = vand.u32 %v660, 4294901760
  %2554 = vmatmul.f32.gmra.mxu0 %v2553
  %v2555 = vpop.f32.mrf.mxu0
  %v2556 = vadd.f32 %v2243, %v2555
  %v2557 = vand.u32 %v663, 4294901760
  %2558 = vmatmul.f32.gmra.mxu0 %v2557
  %v2559 = vpop.f32.mrf.mxu0
  %v2560 = vadd.f32 %v2251, %v2559
  %v2561 = vand.u32 %v666, 4294901760
  %2562 = vmatmul.f32.gmra.mxu0 %v2561
  %v2563 = vpop.f32.mrf.mxu0
  %v2564 = vadd.f32 %v2259, %v2563
  %v2565 = vand.u32 %v669, 4294901760
  %2566 = vmatmul.f32.gmra.mxu0 %v2565
  %v2567 = vpop.f32.mrf.mxu0
  %v2568 = vadd.f32 %v2267, %v2567
  %v2569 = vand.u32 %v672, 4294901760
  %2570 = vmatmul.f32.gmra.mxu0 %v2569
  %v2571 = vpop.f32.mrf.mxu0
  %v2572 = vadd.f32 %v2275, %v2571
  %v2573 = vand.u32 %v675, 4294901760
  %2574 = vmatmul.f32.gmra.mxu0 %v2573
  %v2575 = vpop.f32.mrf.mxu0
  %v2576 = vadd.f32 %v2283, %v2575
  %v2577 = vand.u32 %v678, 4294901760
  %2578 = vmatmul.f32.gmra.mxu0 %v2577
  %v2579 = vpop.f32.mrf.mxu0
  %v2580 = vadd.f32 %v2291, %v2579
  %v2581 = vand.u32 %v681, 4294901760
  %2582 = vmatmul.f32.gmra.mxu0 %v2581
  %v2583 = vpop.f32.mrf.mxu0
  %v2584 = vadd.f32 %v2299, %v2583
  %v2585 = vand.u32 %v684, 4294901760
  %2586 = vmatmul.f32.gmra.mxu0 %v2585
  %v2587 = vpop.f32.mrf.mxu0
  %v2588 = vadd.f32 %v2307, %v2587
  %v2589 = vand.u32 %v687, 4294901760
  %2590 = vmatmul.f32.gmra.mxu0 %v2589
  %v2591 = vpop.f32.mrf.mxu0
  %v2592 = vadd.f32 %v2315, %v2591
  %v2593 = vand.u32 %v690, 4294901760
  %2594 = vmatmul.f32.gmra.mxu0 %v2593
  %v2595 = vpop.f32.mrf.mxu0
  %v2596 = vadd.f32 %v2323, %v2595
  %v2597 = vand.u32 %v693, 4294901760
  %2598 = vmatmul.f32.gmra.mxu0 %v2597
  %v2599 = vpop.f32.mrf.mxu0
  %v2600 = vadd.f32 %v2331, %v2599
  %v2601 = vand.u32 %v696, 4294901760
  %2602 = vmatmul.f32.gmra.mxu0 %v2601
  %v2603 = vpop.f32.mrf.mxu0
  %v2604 = vadd.f32 %v2339, %v2603
  %v2605 = vand.u32 %v699, 4294901760
  %2606 = vmatmul.f32.gmra.mxu0 %v2605
  %v2607 = vpop.f32.mrf.mxu0
  %v2608 = vadd.f32 %v2347, %v2607
  %v2609 = vand.u32 %v702, 4294901760
  %2610 = vmatmul.f32.gmra.mxu0 %v2609
  %v2611 = vpop.f32.mrf.mxu0
  %v2612 = vadd.f32 %v2355, %v2611
  %v2613 = vand.u32 %v705, 4294901760
  %2614 = vmatmul.f32.gmra.mxu0 %v2613
  %v2615 = vpop.f32.mrf.mxu0
  %v2616 = vadd.f32 %v2363, %v2615
  %v2617 = vand.u32 %v708, 4294901760
  %2618 = vmatmul.f32.gmra.mxu0 %v2617
  %v2619 = vpop.f32.mrf.mxu0
  %v2620 = vadd.f32 %v2371, %v2619
  %v2621 = vand.u32 %v711, 4294901760
  %2622 = vmatmul.f32.gmra.mxu0 %v2621
  %v2623 = vpop.f32.mrf.mxu0
  %v2624 = vadd.f32 %v2379, %v2623
  %v2625 = vand.u32 %v714, 4294901760
  %2626 = vmatmul.f32.gmra.mxu0 %v2625
  %v2627 = vpop.f32.mrf.mxu0
  %v2628 = vadd.f32 %v2387, %v2627
  %v2629 = vand.u32 %v717, 4294901760
  %2630 = vmatmul.f32.gmra.mxu0 %v2629
  %v2631 = vpop.f32.mrf.mxu0
  %v2632 = vadd.f32 %v2395, %v2631
  %v2633 = vand.u32 %v720, 4294901760
  %2634 = vmatmul.f32.gmra.mxu0 %v2633
  %v2635 = vpop.f32.mrf.mxu0
  %v2636 = vadd.f32 %v2403, %v2635
  %v2637 = vand.u32 %v723, 4294901760
  %2638 = vmatmul.f32.gmra.mxu0 %v2637
  %v2639 = vpop.f32.mrf.mxu0
  %v2640 = vadd.f32 %v2411, %v2639
  %v2641 = vand.u32 %v726, 4294901760
  %2642 = vmatmul.f32.gmra.mxu0 %v2641
  %v2643 = vpop.f32.mrf.mxu0
  %v2644 = vadd.f32 %v2419, %v2643
  %v2645 = vand.u32 %v729, 4294901760
  %2646 = vmatmul.f32.gmra.mxu0 %v2645
  %v2647 = vpop.f32.mrf.mxu0
  %v2648 = vadd.f32 %v2427, %v2647
  %v2649 = vand.u32 %v732, 4294901760
  %2650 = vmatmul.f32.gmra.mxu0 %v2649
  %v2651 = vpop.f32.mrf.mxu0
  %v2652 = vadd.f32 %v2435, %v2651
  %v2653 = vand.u32 %v735, 4294901760
  %2654 = vmatmul.f32.gmra.mxu0 %v2653
  %v2655 = vpop.f32.mrf.mxu0
  %v2656 = vadd.f32 %v2443, %v2655
  %v2657 = vand.u32 %v738, 4294901760
  %2658 = vmatmul.f32.gmra.mxu0 %v2657
  %v2659 = vpop.f32.mrf.mxu0
  %v2660 = vadd.f32 %v2451, %v2659
  %2661 = vdwg.mxu0
  %2662 = vmatpush.msra.mxu0 0.0
  %2663 = vmatpush.msra.mxu0 0.0
  %2664 = vmatpush.msra.mxu0 0.0
  %2665 = vmatpush.msra.mxu0 0.0
  %2666 = vmatpush.msra.mxu0 0.0
  %2667 = vmatpush.msra.mxu0 0.0
  %2668 = vmatpush.msra.mxu0 0.0
  %2669 = vmatpush.msra.mxu0 0.0
  %v2670 = vand.u32 %v618, 4294901760
  %v2671 = vsub.f32 %v618, %v2670
  %2672 = vmatpush.msra.mxu0 %v2671
  %v2673 = vand.u32 %v616, 4294901760
  %v2674 = vsub.f32 %v616, %v2673
  %2675 = vmatpush.msra.mxu0 %v2674
  %v2676 = vand.u32 %v614, 4294901760
  %v2677 = vsub.f32 %v614, %v2676
  %2678 = vmatpush.msra.mxu0 %v2677
  %v2679 = vand.u32 %v612, 4294901760
  %v2680 = vsub.f32 %v612, %v2679
  %2681 = vmatpush.msra.mxu0 %v2680
  %v2682 = vand.u32 %v610, 4294901760
  %v2683 = vsub.f32 %v610, %v2682
  %2684 = vmatpush.msra.mxu0 %v2683
  %v2685 = vand.u32 %v608, 4294901760
  %v2686 = vsub.f32 %v608, %v2685
  %2687 = vmatpush.msra.mxu0 %v2686
  %v2688 = vand.u32 %v606, 4294901760
  %v2689 = vsub.f32 %v606, %v2688
  %2690 = vmatpush.msra.mxu0 %v2689
  %v2691 = vand.u32 %v604, 4294901760
  %v2692 = vsub.f32 %v604, %v2691
  %2693 = vmatpush.msra.mxu0 %v2692
  %v2694 = vand.u32 %v627, 4294901760
  %v2695 = vsub.f32 %v627, %v2694
  %2696 = vmatmul.f32.gmra.mxu0 %v2695
  %v2697 = vpop.f32.mrf.mxu0
  %v2698 = vadd.f32 %v2512, %v2697
  %v2699 = vand.u32 %v630, 4294901760
  %v2700 = vsub.f32 %v630, %v2699
  %2701 = vmatmul.f32.gmra.mxu0 %v2700
  %v2702 = vpop.f32.mrf.mxu0
  %v2703 = vadd.f32 %v2516, %v2702
  %v2704 = vand.u32 %v633, 4294901760
  %v2705 = vsub.f32 %v633, %v2704
  %2706 = vmatmul.f32.gmra.mxu0 %v2705
  %v2707 = vpop.f32.mrf.mxu0
  %v2708 = vadd.f32 %v2520, %v2707
  %v2709 = vand.u32 %v636, 4294901760
  %v2710 = vsub.f32 %v636, %v2709
  %2711 = vmatmul.f32.gmra.mxu0 %v2710
  %v2712 = vpop.f32.mrf.mxu0
  %v2713 = vadd.f32 %v2524, %v2712
  %v2714 = vand.u32 %v639, 4294901760
  %v2715 = vsub.f32 %v639, %v2714
  %2716 = vmatmul.f32.gmra.mxu0 %v2715
  %v2717 = vpop.f32.mrf.mxu0
  %v2718 = vadd.f32 %v2528, %v2717
  %v2719 = vand.u32 %v642, 4294901760
  %v2720 = vsub.f32 %v642, %v2719
  %2721 = vmatmul.f32.gmra.mxu0 %v2720
  %v2722 = vpop.f32.mrf.mxu0
  %v2723 = vadd.f32 %v2532, %v2722
  %v2724 = vand.u32 %v645, 4294901760
  %v2725 = vsub.f32 %v645, %v2724
  %2726 = vmatmul.f32.gmra.mxu0 %v2725
  %v2727 = vpop.f32.mrf.mxu0
  %v2728 = vadd.f32 %v2536, %v2727
  %v2729 = vand.u32 %v648, 4294901760
  %v2730 = vsub.f32 %v648, %v2729
  %2731 = vmatmul.f32.gmra.mxu0 %v2730
  %v2732 = vpop.f32.mrf.mxu0
  %v2733 = vadd.f32 %v2540, %v2732
  %v2734 = vand.u32 %v651, 4294901760
  %v2735 = vsub.f32 %v651, %v2734
  %2736 = vmatmul.f32.gmra.mxu0 %v2735
  %v2737 = vpop.f32.mrf.mxu0
  %v2738 = vadd.f32 %v2544, %v2737
  %v2739 = vand.u32 %v654, 4294901760
  %v2740 = vsub.f32 %v654, %v2739
  %2741 = vmatmul.f32.gmra.mxu0 %v2740
  %v2742 = vpop.f32.mrf.mxu0
  %v2743 = vadd.f32 %v2548, %v2742
  %v2744 = vand.u32 %v657, 4294901760
  %v2745 = vsub.f32 %v657, %v2744
  %2746 = vmatmul.f32.gmra.mxu0 %v2745
  %v2747 = vpop.f32.mrf.mxu0
  %v2748 = vadd.f32 %v2552, %v2747
  %v2749 = vand.u32 %v660, 4294901760
  %v2750 = vsub.f32 %v660, %v2749
  %2751 = vmatmul.f32.gmra.mxu0 %v2750
  %v2752 = vpop.f32.mrf.mxu0
  %v2753 = vadd.f32 %v2556, %v2752
  %v2754 = vand.u32 %v663, 4294901760
  %v2755 = vsub.f32 %v663, %v2754
  %2756 = vmatmul.f32.gmra.mxu0 %v2755
  %v2757 = vpop.f32.mrf.mxu0
  %v2758 = vadd.f32 %v2560, %v2757
  %v2759 = vand.u32 %v666, 4294901760
  %v2760 = vsub.f32 %v666, %v2759
  %2761 = vmatmul.f32.gmra.mxu0 %v2760
  %v2762 = vpop.f32.mrf.mxu0
  %v2763 = vadd.f32 %v2564, %v2762
  %v2764 = vand.u32 %v669, 4294901760
  %v2765 = vsub.f32 %v669, %v2764
  %2766 = vmatmul.f32.gmra.mxu0 %v2765
  %v2767 = vpop.f32.mrf.mxu0
  %v2768 = vadd.f32 %v2568, %v2767
  %v2769 = vand.u32 %v672, 4294901760
  %v2770 = vsub.f32 %v672, %v2769
  %2771 = vmatmul.f32.gmra.mxu0 %v2770
  %v2772 = vpop.f32.mrf.mxu0
  %v2773 = vadd.f32 %v2572, %v2772
  %v2774 = vand.u32 %v675, 4294901760
  %v2775 = vsub.f32 %v675, %v2774
  %2776 = vmatmul.f32.gmra.mxu0 %v2775
  %v2777 = vpop.f32.mrf.mxu0
  %v2778 = vadd.f32 %v2576, %v2777
  %v2779 = vand.u32 %v678, 4294901760
  %v2780 = vsub.f32 %v678, %v2779
  %2781 = vmatmul.f32.gmra.mxu0 %v2780
  %v2782 = vpop.f32.mrf.mxu0
  %v2783 = vadd.f32 %v2580, %v2782
  %v2784 = vand.u32 %v681, 4294901760
  %v2785 = vsub.f32 %v681, %v2784
  %2786 = vmatmul.f32.gmra.mxu0 %v2785
  %v2787 = vpop.f32.mrf.mxu0
  %v2788 = vadd.f32 %v2584, %v2787
  %v2789 = vand.u32 %v684, 4294901760
  %v2790 = vsub.f32 %v684, %v2789
  %2791 = vmatmul.f32.gmra.mxu0 %v2790
  %v2792 = vpop.f32.mrf.mxu0
  %v2793 = vadd.f32 %v2588, %v2792
  %v2794 = vand.u32 %v687, 4294901760
  %v2795 = vsub.f32 %v687, %v2794
  %2796 = vmatmul.f32.gmra.mxu0 %v2795
  %v2797 = vpop.f32.mrf.mxu0
  %v2798 = vadd.f32 %v2592, %v2797
  %v2799 = vand.u32 %v690, 4294901760
  %v2800 = vsub.f32 %v690, %v2799
  %2801 = vmatmul.f32.gmra.mxu0 %v2800
  %v2802 = vpop.f32.mrf.mxu0
  %v2803 = vadd.f32 %v2596, %v2802
  %v2804 = vand.u32 %v693, 4294901760
  %v2805 = vsub.f32 %v693, %v2804
  %2806 = vmatmul.f32.gmra.mxu0 %v2805
  %v2807 = vpop.f32.mrf.mxu0
  %v2808 = vadd.f32 %v2600, %v2807
  %v2809 = vand.u32 %v696, 4294901760
  %v2810 = vsub.f32 %v696, %v2809
  %2811 = vmatmul.f32.gmra.mxu0 %v2810
  %v2812 = vpop.f32.mrf.mxu0
  %v2813 = vadd.f32 %v2604, %v2812
  %v2814 = vand.u32 %v699, 4294901760
  %v2815 = vsub.f32 %v699, %v2814
  %2816 = vmatmul.f32.gmra.mxu0 %v2815
  %v2817 = vpop.f32.mrf.mxu0
  %v2818 = vadd.f32 %v2608, %v2817
  %v2819 = vand.u32 %v702, 4294901760
  %v2820 = vsub.f32 %v702, %v2819
  %2821 = vmatmul.f32.gmra.mxu0 %v2820
  %v2822 = vpop.f32.mrf.mxu0
  %v2823 = vadd.f32 %v2612, %v2822
  %v2824 = vand.u32 %v705, 4294901760
  %v2825 = vsub.f32 %v705, %v2824
  %2826 = vmatmul.f32.gmra.mxu0 %v2825
  %v2827 = vpop.f32.mrf.mxu0
  %v2828 = vadd.f32 %v2616, %v2827
  %v2829 = vand.u32 %v708, 4294901760
  %v2830 = vsub.f32 %v708, %v2829
  %2831 = vmatmul.f32.gmra.mxu0 %v2830
  %v2832 = vpop.f32.mrf.mxu0
  %v2833 = vadd.f32 %v2620, %v2832
  %v2834 = vand.u32 %v711, 4294901760
  %v2835 = vsub.f32 %v711, %v2834
  %2836 = vmatmul.f32.gmra.mxu0 %v2835
  %v2837 = vpop.f32.mrf.mxu0
  %v2838 = vadd.f32 %v2624, %v2837
  %v2839 = vand.u32 %v714, 4294901760
  %v2840 = vsub.f32 %v714, %v2839
  %2841 = vmatmul.f32.gmra.mxu0 %v2840
  %v2842 = vpop.f32.mrf.mxu0
  %v2843 = vadd.f32 %v2628, %v2842
  %v2844 = vand.u32 %v717, 4294901760
  %v2845 = vsub.f32 %v717, %v2844
  %2846 = vmatmul.f32.gmra.mxu0 %v2845
  %v2847 = vpop.f32.mrf.mxu0
  %v2848 = vadd.f32 %v2632, %v2847
  %v2849 = vand.u32 %v720, 4294901760
  %v2850 = vsub.f32 %v720, %v2849
  %2851 = vmatmul.f32.gmra.mxu0 %v2850
  %v2852 = vpop.f32.mrf.mxu0
  %v2853 = vadd.f32 %v2636, %v2852
  %v2854 = vand.u32 %v723, 4294901760
  %v2855 = vsub.f32 %v723, %v2854
  %2856 = vmatmul.f32.gmra.mxu0 %v2855
  %v2857 = vpop.f32.mrf.mxu0
  %v2858 = vadd.f32 %v2640, %v2857
  %v2859 = vand.u32 %v726, 4294901760
  %v2860 = vsub.f32 %v726, %v2859
  %2861 = vmatmul.f32.gmra.mxu0 %v2860
  %v2862 = vpop.f32.mrf.mxu0
  %v2863 = vadd.f32 %v2644, %v2862
  %v2864 = vand.u32 %v729, 4294901760
  %v2865 = vsub.f32 %v729, %v2864
  %2866 = vmatmul.f32.gmra.mxu0 %v2865
  %v2867 = vpop.f32.mrf.mxu0
  %v2868 = vadd.f32 %v2648, %v2867
  %v2869 = vand.u32 %v732, 4294901760
  %v2870 = vsub.f32 %v732, %v2869
  %2871 = vmatmul.f32.gmra.mxu0 %v2870
  %v2872 = vpop.f32.mrf.mxu0
  %v2873 = vadd.f32 %v2652, %v2872
  %v2874 = vand.u32 %v735, 4294901760
  %v2875 = vsub.f32 %v735, %v2874
  %2876 = vmatmul.f32.gmra.mxu0 %v2875
  %v2877 = vpop.f32.mrf.mxu0
  %v2878 = vadd.f32 %v2656, %v2877
  %v2879 = vand.u32 %v738, 4294901760
  %v2880 = vsub.f32 %v738, %v2879
  %2881 = vmatmul.f32.gmra.mxu0 %v2880
  %v2882 = vpop.f32.mrf.mxu0
  %v2883 = vadd.f32 %v2660, %v2882
  %2884 = vdwg.mxu0
  %2885 = vmatpush.msra.mxu0 0.0
  %2886 = vmatpush.msra.mxu0 0.0
  %2887 = vmatpush.msra.mxu0 0.0
  %2888 = vmatpush.msra.mxu0 0.0
  %2889 = vmatpush.msra.mxu0 0.0
  %2890 = vmatpush.msra.mxu0 0.0
  %2891 = vmatpush.msra.mxu0 0.0
  %2892 = vmatpush.msra.mxu0 0.0
  %v2893 = vand.u32 %v618, 4294901760
  %2894 = vmatpush.msra.mxu0 %v2893
  %v2895 = vand.u32 %v616, 4294901760
  %2896 = vmatpush.msra.mxu0 %v2895
  %v2897 = vand.u32 %v614, 4294901760
  %2898 = vmatpush.msra.mxu0 %v2897
  %v2899 = vand.u32 %v612, 4294901760
  %2900 = vmatpush.msra.mxu0 %v2899
  %v2901 = vand.u32 %v610, 4294901760
  %2902 = vmatpush.msra.mxu0 %v2901
  %v2903 = vand.u32 %v608, 4294901760
  %2904 = vmatpush.msra.mxu0 %v2903
  %v2905 = vand.u32 %v606, 4294901760
  %2906 = vmatpush.msra.mxu0 %v2905
  %v2907 = vand.u32 %v604, 4294901760
  %2908 = vmatpush.msra.mxu0 %v2907
  %v2909 = vand.u32 %v627, 4294901760
  %v2910 = vsub.f32 %v627, %v2909
  %v2911 = vand.u32 %v2910, 4294901760
  %2912 = vmatmul.f32.gmra.mxu0 %v2911
  %v2913 = vpop.f32.mrf.mxu0
  %v2914 = vadd.f32 %v2698, %v2913
  %v2915 = vand.u32 %v630, 4294901760
  %v2916 = vsub.f32 %v630, %v2915
  %v2917 = vand.u32 %v2916, 4294901760
  %2918 = vmatmul.f32.gmra.mxu0 %v2917
  %v2919 = vpop.f32.mrf.mxu0
  %v2920 = vadd.f32 %v2703, %v2919
  %v2921 = vand.u32 %v633, 4294901760
  %v2922 = vsub.f32 %v633, %v2921
  %v2923 = vand.u32 %v2922, 4294901760
  %2924 = vmatmul.f32.gmra.mxu0 %v2923
  %v2925 = vpop.f32.mrf.mxu0
  %v2926 = vadd.f32 %v2708, %v2925
  %v2927 = vand.u32 %v636, 4294901760
  %v2928 = vsub.f32 %v636, %v2927
  %v2929 = vand.u32 %v2928, 4294901760
  %2930 = vmatmul.f32.gmra.mxu0 %v2929
  %v2931 = vpop.f32.mrf.mxu0
  %v2932 = vadd.f32 %v2713, %v2931
  %v2933 = vand.u32 %v639, 4294901760
  %v2934 = vsub.f32 %v639, %v2933
  %v2935 = vand.u32 %v2934, 4294901760
  %2936 = vmatmul.f32.gmra.mxu0 %v2935
  %v2937 = vpop.f32.mrf.mxu0
  %v2938 = vadd.f32 %v2718, %v2937
  %v2939 = vand.u32 %v642, 4294901760
  %v2940 = vsub.f32 %v642, %v2939
  %v2941 = vand.u32 %v2940, 4294901760
  %2942 = vmatmul.f32.gmra.mxu0 %v2941
  %v2943 = vpop.f32.mrf.mxu0
  %v2944 = vadd.f32 %v2723, %v2943
  %v2945 = vand.u32 %v645, 4294901760
  %v2946 = vsub.f32 %v645, %v2945
  %v2947 = vand.u32 %v2946, 4294901760
  %2948 = vmatmul.f32.gmra.mxu0 %v2947
  %v2949 = vpop.f32.mrf.mxu0
  %v2950 = vadd.f32 %v2728, %v2949
  %v2951 = vand.u32 %v648, 4294901760
  %v2952 = vsub.f32 %v648, %v2951
  %v2953 = vand.u32 %v2952, 4294901760
  %2954 = vmatmul.f32.gmra.mxu0 %v2953
  %v2955 = vpop.f32.mrf.mxu0
  %v2956 = vadd.f32 %v2733, %v2955
  %v2957 = vand.u32 %v651, 4294901760
  %v2958 = vsub.f32 %v651, %v2957
  %v2959 = vand.u32 %v2958, 4294901760
  %2960 = vmatmul.f32.gmra.mxu0 %v2959
  %v2961 = vpop.f32.mrf.mxu0
  %v2962 = vadd.f32 %v2738, %v2961
  %v2963 = vand.u32 %v654, 4294901760
  %v2964 = vsub.f32 %v654, %v2963
  %v2965 = vand.u32 %v2964, 4294901760
  %2966 = vmatmul.f32.gmra.mxu0 %v2965
  %v2967 = vpop.f32.mrf.mxu0
  %v2968 = vadd.f32 %v2743, %v2967
  %v2969 = vand.u32 %v657, 4294901760
  %v2970 = vsub.f32 %v657, %v2969
  %v2971 = vand.u32 %v2970, 4294901760
  %2972 = vmatmul.f32.gmra.mxu0 %v2971
  %v2973 = vpop.f32.mrf.mxu0
  %v2974 = vadd.f32 %v2748, %v2973
  %v2975 = vand.u32 %v660, 4294901760
  %v2976 = vsub.f32 %v660, %v2975
  %v2977 = vand.u32 %v2976, 4294901760
  %2978 = vmatmul.f32.gmra.mxu0 %v2977
  %v2979 = vpop.f32.mrf.mxu0
  %v2980 = vadd.f32 %v2753, %v2979
  %v2981 = vand.u32 %v663, 4294901760
  %v2982 = vsub.f32 %v663, %v2981
  %v2983 = vand.u32 %v2982, 4294901760
  %2984 = vmatmul.f32.gmra.mxu0 %v2983
  %v2985 = vpop.f32.mrf.mxu0
  %v2986 = vadd.f32 %v2758, %v2985
  %v2987 = vand.u32 %v666, 4294901760
  %v2988 = vsub.f32 %v666, %v2987
  %v2989 = vand.u32 %v2988, 4294901760
  %2990 = vmatmul.f32.gmra.mxu0 %v2989
  %v2991 = vpop.f32.mrf.mxu0
  %v2992 = vadd.f32 %v2763, %v2991
  %v2993 = vand.u32 %v669, 4294901760
  %v2994 = vsub.f32 %v669, %v2993
  %v2995 = vand.u32 %v2994, 4294901760
  %2996 = vmatmul.f32.gmra.mxu0 %v2995
  %v2997 = vpop.f32.mrf.mxu0
  %v2998 = vadd.f32 %v2768, %v2997
  %v2999 = vand.u32 %v672, 4294901760
  %v3000 = vsub.f32 %v672, %v2999
  %v3001 = vand.u32 %v3000, 4294901760
  %3002 = vmatmul.f32.gmra.mxu0 %v3001
  %v3003 = vpop.f32.mrf.mxu0
  %v3004 = vadd.f32 %v2773, %v3003
  %v3005 = vand.u32 %v675, 4294901760
  %v3006 = vsub.f32 %v675, %v3005
  %v3007 = vand.u32 %v3006, 4294901760
  %3008 = vmatmul.f32.gmra.mxu0 %v3007
  %v3009 = vpop.f32.mrf.mxu0
  %v3010 = vadd.f32 %v2778, %v3009
  %v3011 = vand.u32 %v678, 4294901760
  %v3012 = vsub.f32 %v678, %v3011
  %v3013 = vand.u32 %v3012, 4294901760
  %3014 = vmatmul.f32.gmra.mxu0 %v3013
  %v3015 = vpop.f32.mrf.mxu0
  %v3016 = vadd.f32 %v2783, %v3015
  %v3017 = vand.u32 %v681, 4294901760
  %v3018 = vsub.f32 %v681, %v3017
  %v3019 = vand.u32 %v3018, 4294901760
  %3020 = vmatmul.f32.gmra.mxu0 %v3019
  %v3021 = vpop.f32.mrf.mxu0
  %v3022 = vadd.f32 %v2788, %v3021
  %v3023 = vand.u32 %v684, 4294901760
  %v3024 = vsub.f32 %v684, %v3023
  %v3025 = vand.u32 %v3024, 4294901760
  %3026 = vmatmul.f32.gmra.mxu0 %v3025
  %v3027 = vpop.f32.mrf.mxu0
  %v3028 = vadd.f32 %v2793, %v3027
  %v3029 = vand.u32 %v687, 4294901760
  %v3030 = vsub.f32 %v687, %v3029
  %v3031 = vand.u32 %v3030, 4294901760
  %3032 = vmatmul.f32.gmra.mxu0 %v3031
  %v3033 = vpop.f32.mrf.mxu0
  %v3034 = vadd.f32 %v2798, %v3033
  %v3035 = vand.u32 %v690, 4294901760
  %v3036 = vsub.f32 %v690, %v3035
  %v3037 = vand.u32 %v3036, 4294901760
  %3038 = vmatmul.f32.gmra.mxu0 %v3037
  %v3039 = vpop.f32.mrf.mxu0
  %v3040 = vadd.f32 %v2803, %v3039
  %v3041 = vand.u32 %v693, 4294901760
  %v3042 = vsub.f32 %v693, %v3041
  %v3043 = vand.u32 %v3042, 4294901760
  %3044 = vmatmul.f32.gmra.mxu0 %v3043
  %v3045 = vpop.f32.mrf.mxu0
  %v3046 = vadd.f32 %v2808, %v3045
  %v3047 = vand.u32 %v696, 4294901760
  %v3048 = vsub.f32 %v696, %v3047
  %v3049 = vand.u32 %v3048, 4294901760
  %3050 = vmatmul.f32.gmra.mxu0 %v3049
  %v3051 = vpop.f32.mrf.mxu0
  %v3052 = vadd.f32 %v2813, %v3051
  %v3053 = vand.u32 %v699, 4294901760
  %v3054 = vsub.f32 %v699, %v3053
  %v3055 = vand.u32 %v3054, 4294901760
  %3056 = vmatmul.f32.gmra.mxu0 %v3055
  %v3057 = vpop.f32.mrf.mxu0
  %v3058 = vadd.f32 %v2818, %v3057
  %v3059 = vand.u32 %v702, 4294901760
  %v3060 = vsub.f32 %v702, %v3059
  %v3061 = vand.u32 %v3060, 4294901760
  %3062 = vmatmul.f32.gmra.mxu0 %v3061
  %v3063 = vpop.f32.mrf.mxu0
  %v3064 = vadd.f32 %v2823, %v3063
  %v3065 = vand.u32 %v705, 4294901760
  %v3066 = vsub.f32 %v705, %v3065
  %v3067 = vand.u32 %v3066, 4294901760
  %3068 = vmatmul.f32.gmra.mxu0 %v3067
  %v3069 = vpop.f32.mrf.mxu0
  %v3070 = vadd.f32 %v2828, %v3069
  %v3071 = vand.u32 %v708, 4294901760
  %v3072 = vsub.f32 %v708, %v3071
  %v3073 = vand.u32 %v3072, 4294901760
  %3074 = vmatmul.f32.gmra.mxu0 %v3073
  %v3075 = vpop.f32.mrf.mxu0
  %v3076 = vadd.f32 %v2833, %v3075
  %v3077 = vand.u32 %v711, 4294901760
  %v3078 = vsub.f32 %v711, %v3077
  %v3079 = vand.u32 %v3078, 4294901760
  %3080 = vmatmul.f32.gmra.mxu0 %v3079
  %v3081 = vpop.f32.mrf.mxu0
  %v3082 = vadd.f32 %v2838, %v3081
  %v3083 = vand.u32 %v714, 4294901760
  %v3084 = vsub.f32 %v714, %v3083
  %v3085 = vand.u32 %v3084, 4294901760
  %3086 = vmatmul.f32.gmra.mxu0 %v3085
  %v3087 = vpop.f32.mrf.mxu0
  %v3088 = vadd.f32 %v2843, %v3087
  %v3089 = vand.u32 %v717, 4294901760
  %v3090 = vsub.f32 %v717, %v3089
  %v3091 = vand.u32 %v3090, 4294901760
  %3092 = vmatmul.f32.gmra.mxu0 %v3091
  %v3093 = vpop.f32.mrf.mxu0
  %v3094 = vadd.f32 %v2848, %v3093
  %v3095 = vand.u32 %v720, 4294901760
  %v3096 = vsub.f32 %v720, %v3095
  %v3097 = vand.u32 %v3096, 4294901760
  %3098 = vmatmul.f32.gmra.mxu0 %v3097
  %v3099 = vpop.f32.mrf.mxu0
  %v3100 = vadd.f32 %v2853, %v3099
  %v3101 = vand.u32 %v723, 4294901760
  %v3102 = vsub.f32 %v723, %v3101
  %v3103 = vand.u32 %v3102, 4294901760
  %3104 = vmatmul.f32.gmra.mxu0 %v3103
  %v3105 = vpop.f32.mrf.mxu0
  %v3106 = vadd.f32 %v2858, %v3105
  %v3107 = vand.u32 %v726, 4294901760
  %v3108 = vsub.f32 %v726, %v3107
  %v3109 = vand.u32 %v3108, 4294901760
  %3110 = vmatmul.f32.gmra.mxu0 %v3109
  %v3111 = vpop.f32.mrf.mxu0
  %v3112 = vadd.f32 %v2863, %v3111
  %v3113 = vand.u32 %v729, 4294901760
  %v3114 = vsub.f32 %v729, %v3113
  %v3115 = vand.u32 %v3114, 4294901760
  %3116 = vmatmul.f32.gmra.mxu0 %v3115
  %v3117 = vpop.f32.mrf.mxu0
  %v3118 = vadd.f32 %v2868, %v3117
  %v3119 = vand.u32 %v732, 4294901760
  %v3120 = vsub.f32 %v732, %v3119
  %v3121 = vand.u32 %v3120, 4294901760
  %3122 = vmatmul.f32.gmra.mxu0 %v3121
  %v3123 = vpop.f32.mrf.mxu0
  %v3124 = vadd.f32 %v2873, %v3123
  %v3125 = vand.u32 %v735, 4294901760
  %v3126 = vsub.f32 %v735, %v3125
  %v3127 = vand.u32 %v3126, 4294901760
  %3128 = vmatmul.f32.gmra.mxu0 %v3127
  %v3129 = vpop.f32.mrf.mxu0
  %v3130 = vadd.f32 %v2878, %v3129
  %v3131 = vand.u32 %v738, 4294901760
  %v3132 = vsub.f32 %v738, %v3131
  %v3133 = vand.u32 %v3132, 4294901760
  %3134 = vmatmul.f32.gmra.mxu0 %v3133
  %v3135 = vpop.f32.mrf.mxu0
  %v3136 = vadd.f32 %v2883, %v3135
  %3137 = vdwg.mxu0
  %3138 = vmatpush.msra.mxu0 0.0
  %3139 = vmatpush.msra.mxu0 0.0
  %3140 = vmatpush.msra.mxu0 0.0
  %3141 = vmatpush.msra.mxu0 0.0
  %3142 = vmatpush.msra.mxu0 0.0
  %3143 = vmatpush.msra.mxu0 0.0
  %3144 = vmatpush.msra.mxu0 0.0
  %3145 = vmatpush.msra.mxu0 0.0
  %v3146 = vand.u32 %v618, 4294901760
  %v3147 = vsub.f32 %v618, %v3146
  %v3148 = vand.u32 %v3147, 4294901760
  %3149 = vmatpush.msra.mxu0 %v3148
  %v3150 = vand.u32 %v616, 4294901760
  %v3151 = vsub.f32 %v616, %v3150
  %v3152 = vand.u32 %v3151, 4294901760
  %3153 = vmatpush.msra.mxu0 %v3152
  %v3154 = vand.u32 %v614, 4294901760
  %v3155 = vsub.f32 %v614, %v3154
  %v3156 = vand.u32 %v3155, 4294901760
  %3157 = vmatpush.msra.mxu0 %v3156
  %v3158 = vand.u32 %v612, 4294901760
  %v3159 = vsub.f32 %v612, %v3158
  %v3160 = vand.u32 %v3159, 4294901760
  %3161 = vmatpush.msra.mxu0 %v3160
  %v3162 = vand.u32 %v610, 4294901760
  %v3163 = vsub.f32 %v610, %v3162
  %v3164 = vand.u32 %v3163, 4294901760
  %3165 = vmatpush.msra.mxu0 %v3164
  %v3166 = vand.u32 %v608, 4294901760
  %v3167 = vsub.f32 %v608, %v3166
  %v3168 = vand.u32 %v3167, 4294901760
  %3169 = vmatpush.msra.mxu0 %v3168
  %v3170 = vand.u32 %v606, 4294901760
  %v3171 = vsub.f32 %v606, %v3170
  %v3172 = vand.u32 %v3171, 4294901760
  %3173 = vmatpush.msra.mxu0 %v3172
  %v3174 = vand.u32 %v604, 4294901760
  %v3175 = vsub.f32 %v604, %v3174
  %v3176 = vand.u32 %v3175, 4294901760
  %3177 = vmatpush.msra.mxu0 %v3176
  %v3178 = vand.u32 %v627, 4294901760
  %3179 = vmatmul.f32.gmra.mxu0 %v3178
  %v3180 = vpop.f32.mrf.mxu0
  %v3181 = vadd.f32 %v2914, %v3180
  %v3182 = vand.u32 %v630, 4294901760
  %3183 = vmatmul.f32.gmra.mxu0 %v3182
  %v3184 = vpop.f32.mrf.mxu0
  %v3185 = vadd.f32 %v2920, %v3184
  %v3186 = vand.u32 %v633, 4294901760
  %3187 = vmatmul.f32.gmra.mxu0 %v3186
  %v3188 = vpop.f32.mrf.mxu0
  %v3189 = vadd.f32 %v2926, %v3188
  %v3190 = vand.u32 %v636, 4294901760
  %3191 = vmatmul.f32.gmra.mxu0 %v3190
  %v3192 = vpop.f32.mrf.mxu0
  %v3193 = vadd.f32 %v2932, %v3192
  %v3194 = vand.u32 %v639, 4294901760
  %3195 = vmatmul.f32.gmra.mxu0 %v3194
  %v3196 = vpop.f32.mrf.mxu0
  %v3197 = vadd.f32 %v2938, %v3196
  %v3198 = vand.u32 %v642, 4294901760
  %3199 = vmatmul.f32.gmra.mxu0 %v3198
  %v3200 = vpop.f32.mrf.mxu0
  %v3201 = vadd.f32 %v2944, %v3200
  %v3202 = vand.u32 %v645, 4294901760
  %3203 = vmatmul.f32.gmra.mxu0 %v3202
  %v3204 = vpop.f32.mrf.mxu0
  %v3205 = vadd.f32 %v2950, %v3204
  %v3206 = vand.u32 %v648, 4294901760
  %3207 = vmatmul.f32.gmra.mxu0 %v3206
  %v3208 = vpop.f32.mrf.mxu0
  %v3209 = vadd.f32 %v2956, %v3208
  %v3210 = vand.u32 %v651, 4294901760
  %3211 = vmatmul.f32.gmra.mxu0 %v3210
  %v3212 = vpop.f32.mrf.mxu0
  %v3213 = vadd.f32 %v2962, %v3212
  %v3214 = vand.u32 %v654, 4294901760
  %3215 = vmatmul.f32.gmra.mxu0 %v3214
  %v3216 = vpop.f32.mrf.mxu0
  %v3217 = vadd.f32 %v2968, %v3216
  %v3218 = vand.u32 %v657, 4294901760
  %3219 = vmatmul.f32.gmra.mxu0 %v3218
  %v3220 = vpop.f32.mrf.mxu0
  %v3221 = vadd.f32 %v2974, %v3220
  %v3222 = vand.u32 %v660, 4294901760
  %3223 = vmatmul.f32.gmra.mxu0 %v3222
  %v3224 = vpop.f32.mrf.mxu0
  %v3225 = vadd.f32 %v2980, %v3224
  %v3226 = vand.u32 %v663, 4294901760
  %3227 = vmatmul.f32.gmra.mxu0 %v3226
  %v3228 = vpop.f32.mrf.mxu0
  %v3229 = vadd.f32 %v2986, %v3228
  %v3230 = vand.u32 %v666, 4294901760
  %3231 = vmatmul.f32.gmra.mxu0 %v3230
  %v3232 = vpop.f32.mrf.mxu0
  %v3233 = vadd.f32 %v2992, %v3232
  %v3234 = vand.u32 %v669, 4294901760
  %3235 = vmatmul.f32.gmra.mxu0 %v3234
  %v3236 = vpop.f32.mrf.mxu0
  %v3237 = vadd.f32 %v2998, %v3236
  %v3238 = vand.u32 %v672, 4294901760
  %3239 = vmatmul.f32.gmra.mxu0 %v3238
  %v3240 = vpop.f32.mrf.mxu0
  %v3241 = vadd.f32 %v3004, %v3240
  %v3242 = vand.u32 %v675, 4294901760
  %3243 = vmatmul.f32.gmra.mxu0 %v3242
  %v3244 = vpop.f32.mrf.mxu0
  %v3245 = vadd.f32 %v3010, %v3244
  %v3246 = vand.u32 %v678, 4294901760
  %3247 = vmatmul.f32.gmra.mxu0 %v3246
  %v3248 = vpop.f32.mrf.mxu0
  %v3249 = vadd.f32 %v3016, %v3248
  %v3250 = vand.u32 %v681, 4294901760
  %3251 = vmatmul.f32.gmra.mxu0 %v3250
  %v3252 = vpop.f32.mrf.mxu0
  %v3253 = vadd.f32 %v3022, %v3252
  %v3254 = vand.u32 %v684, 4294901760
  %3255 = vmatmul.f32.gmra.mxu0 %v3254
  %v3256 = vpop.f32.mrf.mxu0
  %v3257 = vadd.f32 %v3028, %v3256
  %v3258 = vand.u32 %v687, 4294901760
  %3259 = vmatmul.f32.gmra.mxu0 %v3258
  %v3260 = vpop.f32.mrf.mxu0
  %v3261 = vadd.f32 %v3034, %v3260
  %v3262 = vand.u32 %v690, 4294901760
  %3263 = vmatmul.f32.gmra.mxu0 %v3262
  %v3264 = vpop.f32.mrf.mxu0
  %v3265 = vadd.f32 %v3040, %v3264
  %v3266 = vand.u32 %v693, 4294901760
  %3267 = vmatmul.f32.gmra.mxu0 %v3266
  %v3268 = vpop.f32.mrf.mxu0
  %v3269 = vadd.f32 %v3046, %v3268
  %v3270 = vand.u32 %v696, 4294901760
  %3271 = vmatmul.f32.gmra.mxu0 %v3270
  %v3272 = vpop.f32.mrf.mxu0
  %v3273 = vadd.f32 %v3052, %v3272
  %v3274 = vand.u32 %v699, 4294901760
  %3275 = vmatmul.f32.gmra.mxu0 %v3274
  %v3276 = vpop.f32.mrf.mxu0
  %v3277 = vadd.f32 %v3058, %v3276
  %v3278 = vand.u32 %v702, 4294901760
  %3279 = vmatmul.f32.gmra.mxu0 %v3278
  %v3280 = vpop.f32.mrf.mxu0
  %v3281 = vadd.f32 %v3064, %v3280
  %v3282 = vand.u32 %v705, 4294901760
  %3283 = vmatmul.f32.gmra.mxu0 %v3282
  %v3284 = vpop.f32.mrf.mxu0
  %v3285 = vadd.f32 %v3070, %v3284
  %v3286 = vand.u32 %v708, 4294901760
  %3287 = vmatmul.f32.gmra.mxu0 %v3286
  %v3288 = vpop.f32.mrf.mxu0
  %v3289 = vadd.f32 %v3076, %v3288
  %v3290 = vand.u32 %v711, 4294901760
  %3291 = vmatmul.f32.gmra.mxu0 %v3290
  %v3292 = vpop.f32.mrf.mxu0
  %v3293 = vadd.f32 %v3082, %v3292
  %v3294 = vand.u32 %v714, 4294901760
  %3295 = vmatmul.f32.gmra.mxu0 %v3294
  %v3296 = vpop.f32.mrf.mxu0
  %v3297 = vadd.f32 %v3088, %v3296
  %v3298 = vand.u32 %v717, 4294901760
  %3299 = vmatmul.f32.gmra.mxu0 %v3298
  %v3300 = vpop.f32.mrf.mxu0
  %v3301 = vadd.f32 %v3094, %v3300
  %v3302 = vand.u32 %v720, 4294901760
  %3303 = vmatmul.f32.gmra.mxu0 %v3302
  %v3304 = vpop.f32.mrf.mxu0
  %v3305 = vadd.f32 %v3100, %v3304
  %v3306 = vand.u32 %v723, 4294901760
  %3307 = vmatmul.f32.gmra.mxu0 %v3306
  %v3308 = vpop.f32.mrf.mxu0
  %v3309 = vadd.f32 %v3106, %v3308
  %v3310 = vand.u32 %v726, 4294901760
  %3311 = vmatmul.f32.gmra.mxu0 %v3310
  %v3312 = vpop.f32.mrf.mxu0
  %v3313 = vadd.f32 %v3112, %v3312
  %v3314 = vand.u32 %v729, 4294901760
  %3315 = vmatmul.f32.gmra.mxu0 %v3314
  %v3316 = vpop.f32.mrf.mxu0
  %v3317 = vadd.f32 %v3118, %v3316
  %v3318 = vand.u32 %v732, 4294901760
  %3319 = vmatmul.f32.gmra.mxu0 %v3318
  %v3320 = vpop.f32.mrf.mxu0
  %v3321 = vadd.f32 %v3124, %v3320
  %v3322 = vand.u32 %v735, 4294901760
  %3323 = vmatmul.f32.gmra.mxu0 %v3322
  %v3324 = vpop.f32.mrf.mxu0
  %v3325 = vadd.f32 %v3130, %v3324
  %v3326 = vand.u32 %v738, 4294901760
  %3327 = vmatmul.f32.gmra.mxu0 %v3326
  %v3328 = vpop.f32.mrf.mxu0
  %v3329 = vadd.f32 %v3136, %v3328
  %3330 = vdwg.mxu0
  %3331 = vmatpush.msra.mxu0 0.0
  %3332 = vmatpush.msra.mxu0 0.0
  %3333 = vmatpush.msra.mxu0 0.0
  %3334 = vmatpush.msra.mxu0 0.0
  %3335 = vmatpush.msra.mxu0 0.0
  %3336 = vmatpush.msra.mxu0 0.0
  %3337 = vmatpush.msra.mxu0 0.0
  %3338 = vmatpush.msra.mxu0 0.0
  %v3339 = vand.u32 %v618, 4294901760
  %3340 = vmatpush.msra.mxu0 %v3339
  %v3341 = vand.u32 %v616, 4294901760
  %3342 = vmatpush.msra.mxu0 %v3341
  %v3343 = vand.u32 %v614, 4294901760
  %3344 = vmatpush.msra.mxu0 %v3343
  %v3345 = vand.u32 %v612, 4294901760
  %3346 = vmatpush.msra.mxu0 %v3345
  %v3347 = vand.u32 %v610, 4294901760
  %3348 = vmatpush.msra.mxu0 %v3347
  %v3349 = vand.u32 %v608, 4294901760
  %3350 = vmatpush.msra.mxu0 %v3349
  %v3351 = vand.u32 %v606, 4294901760
  %3352 = vmatpush.msra.mxu0 %v3351
  %v3353 = vand.u32 %v604, 4294901760
  %3354 = vmatpush.msra.mxu0 %v3353
  %v3355 = vand.u32 %v627, 4294901760
  %3356 = vmatmul.f32.gmra.mxu0 %v3355
  %v3357 = vpop.f32.mrf.mxu0
  %v3358 = vadd.f32 %v3181, %v3357
  %v3359 = vand.u32 %v630, 4294901760
  %3360 = vmatmul.f32.gmra.mxu0 %v3359
  %v3361 = vpop.f32.mrf.mxu0
  %v3362 = vadd.f32 %v3185, %v3361
  %v3363 = vand.u32 %v633, 4294901760
  %3364 = vmatmul.f32.gmra.mxu0 %v3363
  %v3365 = vpop.f32.mrf.mxu0
  %v3366 = vadd.f32 %v3189, %v3365
  %v3367 = vand.u32 %v636, 4294901760
  %3368 = vmatmul.f32.gmra.mxu0 %v3367
  %v3369 = vpop.f32.mrf.mxu0
  %v3370 = vadd.f32 %v3193, %v3369
  %v3371 = vand.u32 %v639, 4294901760
  %3372 = vmatmul.f32.gmra.mxu0 %v3371
  %v3373 = vpop.f32.mrf.mxu0
  %v3374 = vadd.f32 %v3197, %v3373
  %v3375 = vand.u32 %v642, 4294901760
  %3376 = vmatmul.f32.gmra.mxu0 %v3375
  %v3377 = vpop.f32.mrf.mxu0
  %v3378 = vadd.f32 %v3201, %v3377
  %v3379 = vand.u32 %v645, 4294901760
  %3380 = vmatmul.f32.gmra.mxu0 %v3379
  %v3381 = vpop.f32.mrf.mxu0
  %v3382 = vadd.f32 %v3205, %v3381
  %v3383 = vand.u32 %v648, 4294901760
  %3384 = vmatmul.f32.gmra.mxu0 %v3383
  %v3385 = vpop.f32.mrf.mxu0
  %v3386 = vadd.f32 %v3209, %v3385
  %v3387 = vand.u32 %v651, 4294901760
  %3388 = vmatmul.f32.gmra.mxu0 %v3387
  %v3389 = vpop.f32.mrf.mxu0
  %v3390 = vadd.f32 %v3213, %v3389
  %v3391 = vand.u32 %v654, 4294901760
  %3392 = vmatmul.f32.gmra.mxu0 %v3391
  %v3393 = vpop.f32.mrf.mxu0
  %v3394 = vadd.f32 %v3217, %v3393
  %v3395 = vand.u32 %v657, 4294901760
  %3396 = vmatmul.f32.gmra.mxu0 %v3395
  %v3397 = vpop.f32.mrf.mxu0
  %v3398 = vadd.f32 %v3221, %v3397
  %v3399 = vand.u32 %v660, 4294901760
  %3400 = vmatmul.f32.gmra.mxu0 %v3399
  %v3401 = vpop.f32.mrf.mxu0
  %v3402 = vadd.f32 %v3225, %v3401
  %v3403 = vand.u32 %v663, 4294901760
  %3404 = vmatmul.f32.gmra.mxu0 %v3403
  %v3405 = vpop.f32.mrf.mxu0
  %v3406 = vadd.f32 %v3229, %v3405
  %v3407 = vand.u32 %v666, 4294901760
  %3408 = vmatmul.f32.gmra.mxu0 %v3407
  %v3409 = vpop.f32.mrf.mxu0
  %v3410 = vadd.f32 %v3233, %v3409
  %v3411 = vand.u32 %v669, 4294901760
  %3412 = vmatmul.f32.gmra.mxu0 %v3411
  %v3413 = vpop.f32.mrf.mxu0
  %v3414 = vadd.f32 %v3237, %v3413
  %v3415 = vand.u32 %v672, 4294901760
  %3416 = vmatmul.f32.gmra.mxu0 %v3415
  %v3417 = vpop.f32.mrf.mxu0
  %v3418 = vadd.f32 %v3241, %v3417
  %v3419 = vand.u32 %v675, 4294901760
  %3420 = vmatmul.f32.gmra.mxu0 %v3419
  %v3421 = vpop.f32.mrf.mxu0
  %v3422 = vadd.f32 %v3245, %v3421
  %v3423 = vand.u32 %v678, 4294901760
  %3424 = vmatmul.f32.gmra.mxu0 %v3423
  %v3425 = vpop.f32.mrf.mxu0
  %v3426 = vadd.f32 %v3249, %v3425
  %v3427 = vand.u32 %v681, 4294901760
  %3428 = vmatmul.f32.gmra.mxu0 %v3427
  %v3429 = vpop.f32.mrf.mxu0
  %v3430 = vadd.f32 %v3253, %v3429
  %v3431 = vand.u32 %v684, 4294901760
  %3432 = vmatmul.f32.gmra.mxu0 %v3431
  %v3433 = vpop.f32.mrf.mxu0
  %v3434 = vadd.f32 %v3257, %v3433
  %v3435 = vand.u32 %v687, 4294901760
  %3436 = vmatmul.f32.gmra.mxu0 %v3435
  %v3437 = vpop.f32.mrf.mxu0
  %v3438 = vadd.f32 %v3261, %v3437
  %v3439 = vand.u32 %v690, 4294901760
  %3440 = vmatmul.f32.gmra.mxu0 %v3439
  %v3441 = vpop.f32.mrf.mxu0
  %v3442 = vadd.f32 %v3265, %v3441
  %v3443 = vand.u32 %v693, 4294901760
  %3444 = vmatmul.f32.gmra.mxu0 %v3443
  %v3445 = vpop.f32.mrf.mxu0
  %v3446 = vadd.f32 %v3269, %v3445
  %v3447 = vand.u32 %v696, 4294901760
  %3448 = vmatmul.f32.gmra.mxu0 %v3447
  %v3449 = vpop.f32.mrf.mxu0
  %v3450 = vadd.f32 %v3273, %v3449
  %v3451 = vand.u32 %v699, 4294901760
  %3452 = vmatmul.f32.gmra.mxu0 %v3451
  %v3453 = vpop.f32.mrf.mxu0
  %v3454 = vadd.f32 %v3277, %v3453
  %v3455 = vand.u32 %v702, 4294901760
  %3456 = vmatmul.f32.gmra.mxu0 %v3455
  %v3457 = vpop.f32.mrf.mxu0
  %v3458 = vadd.f32 %v3281, %v3457
  %v3459 = vand.u32 %v705, 4294901760
  %3460 = vmatmul.f32.gmra.mxu0 %v3459
  %v3461 = vpop.f32.mrf.mxu0
  %v3462 = vadd.f32 %v3285, %v3461
  %v3463 = vand.u32 %v708, 4294901760
  %3464 = vmatmul.f32.gmra.mxu0 %v3463
  %v3465 = vpop.f32.mrf.mxu0
  %v3466 = vadd.f32 %v3289, %v3465
  %v3467 = vand.u32 %v711, 4294901760
  %3468 = vmatmul.f32.gmra.mxu0 %v3467
  %v3469 = vpop.f32.mrf.mxu0
  %v3470 = vadd.f32 %v3293, %v3469
  %v3471 = vand.u32 %v714, 4294901760
  %3472 = vmatmul.f32.gmra.mxu0 %v3471
  %v3473 = vpop.f32.mrf.mxu0
  %v3474 = vadd.f32 %v3297, %v3473
  %v3475 = vand.u32 %v717, 4294901760
  %3476 = vmatmul.f32.gmra.mxu0 %v3475
  %v3477 = vpop.f32.mrf.mxu0
  %v3478 = vadd.f32 %v3301, %v3477
  %v3479 = vand.u32 %v720, 4294901760
  %3480 = vmatmul.f32.gmra.mxu0 %v3479
  %v3481 = vpop.f32.mrf.mxu0
  %v3482 = vadd.f32 %v3305, %v3481
  %v3483 = vand.u32 %v723, 4294901760
  %3484 = vmatmul.f32.gmra.mxu0 %v3483
  %v3485 = vpop.f32.mrf.mxu0
  %v3486 = vadd.f32 %v3309, %v3485
  %v3487 = vand.u32 %v726, 4294901760
  %3488 = vmatmul.f32.gmra.mxu0 %v3487
  %v3489 = vpop.f32.mrf.mxu0
  %v3490 = vadd.f32 %v3313, %v3489
  %v3491 = vand.u32 %v729, 4294901760
  %3492 = vmatmul.f32.gmra.mxu0 %v3491
  %v3493 = vpop.f32.mrf.mxu0
  %v3494 = vadd.f32 %v3317, %v3493
  %v3495 = vand.u32 %v732, 4294901760
  %3496 = vmatmul.f32.gmra.mxu0 %v3495
  %v3497 = vpop.f32.mrf.mxu0
  %v3498 = vadd.f32 %v3321, %v3497
  %v3499 = vand.u32 %v735, 4294901760
  %3500 = vmatmul.f32.gmra.mxu0 %v3499
  %v3501 = vpop.f32.mrf.mxu0
  %v3502 = vadd.f32 %v3325, %v3501
  %v3503 = vand.u32 %v738, 4294901760
  %3504 = vmatmul.f32.gmra.mxu0 %v3503
  %v3505 = vpop.f32.mrf.mxu0
  %v3506 = vadd.f32 %v3329, %v3505
  %3507 = vdwg.mxu0
  %v3508 = vmax.f32 %v1974, 0.0
  %v3509 = vmax.f32 %v3358, 0.0
  %v3510 = vmax.f32 %v1978, 0.0
  %v3511 = vmax.f32 %v3362, 0.0
  %v3512 = vmax.f32 %v1982, 0.0
  %v3513 = vmax.f32 %v3366, 0.0
  %v3514 = vmax.f32 %v1986, 0.0
  %v3515 = vmax.f32 %v3370, 0.0
  %v3516 = vmax.f32 %v1990, 0.0
  %v3517 = vmax.f32 %v3374, 0.0
  %v3518 = vmax.f32 %v1994, 0.0
  %v3519 = vmax.f32 %v3378, 0.0
  %v3520 = vmax.f32 %v1998, 0.0
  %v3521 = vmax.f32 %v3382, 0.0
  %v3522 = vmax.f32 %v2002, 0.0
  %v3523 = vmax.f32 %v3386, 0.0
  %v3524 = vmax.f32 %v2006, 0.0
  %v3525 = vmax.f32 %v3390, 0.0
  %v3526 = vmax.f32 %v2010, 0.0
  %v3527 = vmax.f32 %v3394, 0.0
  %v3528 = vmax.f32 %v2014, 0.0
  %v3529 = vmax.f32 %v3398, 0.0
  %v3530 = vmax.f32 %v2018, 0.0
  %v3531 = vmax.f32 %v3402, 0.0
  %v3532 = vmax.f32 %v2022, 0.0
  %v3533 = vmax.f32 %v3406, 0.0
  %v3534 = vmax.f32 %v2026, 0.0
  %v3535 = vmax.f32 %v3410, 0.0
  %v3536 = vmax.f32 %v2030, 0.0
  %v3537 = vmax.f32 %v3414, 0.0
  %v3538 = vmax.f32 %v2034, 0.0
  %v3539 = vmax.f32 %v3418, 0.0
  %v3540 = vmax.f32 %v2038, 0.0
  %v3541 = vmax.f32 %v3422, 0.0
  %v3542 = vmax.f32 %v2042, 0.0
  %v3543 = vmax.f32 %v3426, 0.0
  %v3544 = vmax.f32 %v2046, 0.0
  %v3545 = vmax.f32 %v3430, 0.0
  %v3546 = vmax.f32 %v2050, 0.0
  %v3547 = vmax.f32 %v3434, 0.0
  %v3548 = vmax.f32 %v2054, 0.0
  %v3549 = vmax.f32 %v3438, 0.0
  %v3550 = vmax.f32 %v2058, 0.0
  %v3551 = vmax.f32 %v3442, 0.0
  %v3552 = vmax.f32 %v2062, 0.0
  %v3553 = vmax.f32 %v3446, 0.0
  %v3554 = vmax.f32 %v2066, 0.0
  %v3555 = vmax.f32 %v3450, 0.0
  %v3556 = vmax.f32 %v2070, 0.0
  %v3557 = vmax.f32 %v3454, 0.0
  %v3558 = vmax.f32 %v2074, 0.0
  %v3559 = vmax.f32 %v3458, 0.0
  %v3560 = vmax.f32 %v2078, 0.0
  %v3561 = vmax.f32 %v3462, 0.0
  %v3562 = vmax.f32 %v2082, 0.0
  %v3563 = vmax.f32 %v3466, 0.0
  %v3564 = vmax.f32 %v2086, 0.0
  %v3565 = vmax.f32 %v3470, 0.0
  %v3566 = vmax.f32 %v2090, 0.0
  %v3567 = vmax.f32 %v3474, 0.0
  %v3568 = vmax.f32 %v2094, 0.0
  %v3569 = vmax.f32 %v3478, 0.0
  %v3570 = vmax.f32 %v2098, 0.0
  %v3571 = vmax.f32 %v3482, 0.0
  %v3572 = vmax.f32 %v2102, 0.0
  %v3573 = vmax.f32 %v3486, 0.0
  %v3574 = vmax.f32 %v2106, 0.0
  %v3575 = vmax.f32 %v3490, 0.0
  %v3576 = vmax.f32 %v2110, 0.0
  %v3577 = vmax.f32 %v3494, 0.0
  %v3578 = vmax.f32 %v2114, 0.0
  %v3579 = vmax.f32 %v3498, 0.0
  %v3580 = vmax.f32 %v2118, 0.0
  %v3581 = vmax.f32 %v3502, 0.0
  %v3582 = vmax.f32 %v2122, 0.0
  %v3583 = vmax.f32 %v3506, 0.0
  %v3584 = vld [vmem:[%s5] sm:$0xff]
  %v3585 = vld [vmem:[%s5 + $0x8] sm:$0xff]
  %v3586 = vld [vmem:[%s5 + $0x10] sm:$0xff]
  %v3587 = vld [vmem:[%s5 + $0x18] sm:$0xff]
  %v3588 = vld [vmem:[%s5 + $0x20] sm:$0xff]
  %v3589 = vld [vmem:[%s5 + $0x28] sm:$0xff]
  %v3590 = vld [vmem:[%s5 + $0x30] sm:$0xff]
  %v3591 = vld [vmem:[%s5 + $0x38] sm:$0xff]
  %v3592 = vld [vmem:[%s5 + $0x40] sm:$0xff]
  %v3593 = vld [vmem:[%s5 + $0x48] sm:$0xff]
  %v3594 = vld [vmem:[%s5 + $0x50] sm:$0xff]
  %v3595 = vld [vmem:[%s5 + $0x58] sm:$0xff]
  %v3596 = vld [vmem:[%s5 + $0x60] sm:$0xff]
  %v3597 = vld [vmem:[%s5 + $0x68] sm:$0xff]
  %v3598 = vld [vmem:[%s5 + $0x70] sm:$0xff]
  %v3599 = vld [vmem:[%s5 + $0x78] sm:$0xff]
  %v3600 = vld [vmem:[%s5 + $0x80] sm:$0xff]
  %v3601 = vld [vmem:[%s5 + $0x88] sm:$0xff]
  %v3602 = vld [vmem:[%s5 + $0x90] sm:$0xff]
  %v3603 = vld [vmem:[%s5 + $0x98] sm:$0xff]
  %v3604 = vld [vmem:[%s5 + $0xa0] sm:$0xff]
  %v3605 = vld [vmem:[%s5 + $0xa8] sm:$0xff]
  %v3606 = vld [vmem:[%s5 + $0xb0] sm:$0xff]
  %v3607 = vld [vmem:[%s5 + $0xb8] sm:$0xff]
  %v3608 = vld [vmem:[%s5 + $0xc0] sm:$0xff]
  %v3609 = vld [vmem:[%s5 + $0xc8] sm:$0xff]
  %v3610 = vld [vmem:[%s5 + $0xd0] sm:$0xff]
  %v3611 = vld [vmem:[%s5 + $0xd8] sm:$0xff]
  %v3612 = vld [vmem:[%s5 + $0xe0] sm:$0xff]
  %v3613 = vld [vmem:[%s5 + $0xe8] sm:$0xff]
  %v3614 = vld [vmem:[%s5 + $0xf0] sm:$0xff]
  %v3615 = vld [vmem:[%s5 + $0xf8] sm:$0xff]
  %v3616 = vld [vmem:[%s6] sm:$0x1]
  %v3618 = vperm.slane %v3616, 0
  %v3620 = vand.u32 %v3599, 4294901760
  %3621 = vmatpush.msra.mxu0 %v3620
  %v3622 = vand.u32 %v3598, 4294901760
  %3623 = vmatpush.msra.mxu0 %v3622
  %v3624 = vand.u32 %v3597, 4294901760
  %3625 = vmatpush.msra.mxu0 %v3624
  %v3626 = vand.u32 %v3596, 4294901760
  %3627 = vmatpush.msra.mxu0 %v3626
  %v3628 = vand.u32 %v3595, 4294901760
  %3629 = vmatpush.msra.mxu0 %v3628
  %v3630 = vand.u32 %v3594, 4294901760
  %3631 = vmatpush.msra.mxu0 %v3630
  %v3632 = vand.u32 %v3593, 4294901760
  %3633 = vmatpush.msra.mxu0 %v3632
  %v3634 = vand.u32 %v3592, 4294901760
  %3635 = vmatpush.msra.mxu0 %v3634
  %v3636 = vand.u32 %v3591, 4294901760
  %3637 = vmatpush.msra.mxu0 %v3636
  %v3638 = vand.u32 %v3590, 4294901760
  %3639 = vmatpush.msra.mxu0 %v3638
  %v3640 = vand.u32 %v3589, 4294901760
  %3641 = vmatpush.msra.mxu0 %v3640
  %v3642 = vand.u32 %v3588, 4294901760
  %3643 = vmatpush.msra.mxu0 %v3642
  %v3644 = vand.u32 %v3587, 4294901760
  %3645 = vmatpush.msra.mxu0 %v3644
  %v3646 = vand.u32 %v3586, 4294901760
  %3647 = vmatpush.msra.mxu0 %v3646
  %v3648 = vand.u32 %v3585, 4294901760
  %3649 = vmatpush.msra.mxu0 %v3648
  %v3650 = vand.u32 %v3584, 4294901760
  %3651 = vmatpush.msra.mxu0 %v3650
  %v3652 = vand.u32 %v3508, 4294901760
  %v3653 = vsub.f32 %v3508, %v3652
  %v3654 = vand.u32 %v3653, 4294901760
  %v3655 = vsub.f32 %v3653, %v3654
  %v3656 = vand.u32 %v3655, 4294901760
  %3657 = vmatmul.f32.gmra.mxu0 %v3656
  %v3658 = vpop.f32.mrf.mxu0
  %v3659 = vadd.f32 %v3618, %v3658
  %v3660 = vand.u32 %v3510, 4294901760
  %v3661 = vsub.f32 %v3510, %v3660
  %v3662 = vand.u32 %v3661, 4294901760
  %v3663 = vsub.f32 %v3661, %v3662
  %v3664 = vand.u32 %v3663, 4294901760
  %3665 = vmatmul.f32.gmra.mxu0 %v3664
  %v3666 = vpop.f32.mrf.mxu0
  %v3667 = vadd.f32 %v3618, %v3666
  %v3668 = vand.u32 %v3512, 4294901760
  %v3669 = vsub.f32 %v3512, %v3668
  %v3670 = vand.u32 %v3669, 4294901760
  %v3671 = vsub.f32 %v3669, %v3670
  %v3672 = vand.u32 %v3671, 4294901760
  %3673 = vmatmul.f32.gmra.mxu0 %v3672
  %v3674 = vpop.f32.mrf.mxu0
  %v3675 = vadd.f32 %v3618, %v3674
  %v3676 = vand.u32 %v3514, 4294901760
  %v3677 = vsub.f32 %v3514, %v3676
  %v3678 = vand.u32 %v3677, 4294901760
  %v3679 = vsub.f32 %v3677, %v3678
  %v3680 = vand.u32 %v3679, 4294901760
  %3681 = vmatmul.f32.gmra.mxu0 %v3680
  %v3682 = vpop.f32.mrf.mxu0
  %v3683 = vadd.f32 %v3618, %v3682
  %v3684 = vand.u32 %v3516, 4294901760
  %v3685 = vsub.f32 %v3516, %v3684
  %v3686 = vand.u32 %v3685, 4294901760
  %v3687 = vsub.f32 %v3685, %v3686
  %v3688 = vand.u32 %v3687, 4294901760
  %3689 = vmatmul.f32.gmra.mxu0 %v3688
  %v3690 = vpop.f32.mrf.mxu0
  %v3691 = vadd.f32 %v3618, %v3690
  %v3692 = vand.u32 %v3518, 4294901760
  %v3693 = vsub.f32 %v3518, %v3692
  %v3694 = vand.u32 %v3693, 4294901760
  %v3695 = vsub.f32 %v3693, %v3694
  %v3696 = vand.u32 %v3695, 4294901760
  %3697 = vmatmul.f32.gmra.mxu0 %v3696
  %v3698 = vpop.f32.mrf.mxu0
  %v3699 = vadd.f32 %v3618, %v3698
  %v3700 = vand.u32 %v3520, 4294901760
  %v3701 = vsub.f32 %v3520, %v3700
  %v3702 = vand.u32 %v3701, 4294901760
  %v3703 = vsub.f32 %v3701, %v3702
  %v3704 = vand.u32 %v3703, 4294901760
  %3705 = vmatmul.f32.gmra.mxu0 %v3704
  %v3706 = vpop.f32.mrf.mxu0
  %v3707 = vadd.f32 %v3618, %v3706
  %v3708 = vand.u32 %v3522, 4294901760
  %v3709 = vsub.f32 %v3522, %v3708
  %v3710 = vand.u32 %v3709, 4294901760
  %v3711 = vsub.f32 %v3709, %v3710
  %v3712 = vand.u32 %v3711, 4294901760
  %3713 = vmatmul.f32.gmra.mxu0 %v3712
  %v3714 = vpop.f32.mrf.mxu0
  %v3715 = vadd.f32 %v3618, %v3714
  %v3716 = vand.u32 %v3524, 4294901760
  %v3717 = vsub.f32 %v3524, %v3716
  %v3718 = vand.u32 %v3717, 4294901760
  %v3719 = vsub.f32 %v3717, %v3718
  %v3720 = vand.u32 %v3719, 4294901760
  %3721 = vmatmul.f32.gmra.mxu0 %v3720
  %v3722 = vpop.f32.mrf.mxu0
  %v3723 = vadd.f32 %v3618, %v3722
  %v3724 = vand.u32 %v3526, 4294901760
  %v3725 = vsub.f32 %v3526, %v3724
  %v3726 = vand.u32 %v3725, 4294901760
  %v3727 = vsub.f32 %v3725, %v3726
  %v3728 = vand.u32 %v3727, 4294901760
  %3729 = vmatmul.f32.gmra.mxu0 %v3728
  %v3730 = vpop.f32.mrf.mxu0
  %v3731 = vadd.f32 %v3618, %v3730
  %v3732 = vand.u32 %v3528, 4294901760
  %v3733 = vsub.f32 %v3528, %v3732
  %v3734 = vand.u32 %v3733, 4294901760
  %v3735 = vsub.f32 %v3733, %v3734
  %v3736 = vand.u32 %v3735, 4294901760
  %3737 = vmatmul.f32.gmra.mxu0 %v3736
  %v3738 = vpop.f32.mrf.mxu0
  %v3739 = vadd.f32 %v3618, %v3738
  %v3740 = vand.u32 %v3530, 4294901760
  %v3741 = vsub.f32 %v3530, %v3740
  %v3742 = vand.u32 %v3741, 4294901760
  %v3743 = vsub.f32 %v3741, %v3742
  %v3744 = vand.u32 %v3743, 4294901760
  %3745 = vmatmul.f32.gmra.mxu0 %v3744
  %v3746 = vpop.f32.mrf.mxu0
  %v3747 = vadd.f32 %v3618, %v3746
  %v3748 = vand.u32 %v3532, 4294901760
  %v3749 = vsub.f32 %v3532, %v3748
  %v3750 = vand.u32 %v3749, 4294901760
  %v3751 = vsub.f32 %v3749, %v3750
  %v3752 = vand.u32 %v3751, 4294901760
  %3753 = vmatmul.f32.gmra.mxu0 %v3752
  %v3754 = vpop.f32.mrf.mxu0
  %v3755 = vadd.f32 %v3618, %v3754
  %v3756 = vand.u32 %v3534, 4294901760
  %v3757 = vsub.f32 %v3534, %v3756
  %v3758 = vand.u32 %v3757, 4294901760
  %v3759 = vsub.f32 %v3757, %v3758
  %v3760 = vand.u32 %v3759, 4294901760
  %3761 = vmatmul.f32.gmra.mxu0 %v3760
  %v3762 = vpop.f32.mrf.mxu0
  %v3763 = vadd.f32 %v3618, %v3762
  %v3764 = vand.u32 %v3536, 4294901760
  %v3765 = vsub.f32 %v3536, %v3764
  %v3766 = vand.u32 %v3765, 4294901760
  %v3767 = vsub.f32 %v3765, %v3766
  %v3768 = vand.u32 %v3767, 4294901760
  %3769 = vmatmul.f32.gmra.mxu0 %v3768
  %v3770 = vpop.f32.mrf.mxu0
  %v3771 = vadd.f32 %v3618, %v3770
  %v3772 = vand.u32 %v3538, 4294901760
  %v3773 = vsub.f32 %v3538, %v3772
  %v3774 = vand.u32 %v3773, 4294901760
  %v3775 = vsub.f32 %v3773, %v3774
  %v3776 = vand.u32 %v3775, 4294901760
  %3777 = vmatmul.f32.gmra.mxu0 %v3776
  %v3778 = vpop.f32.mrf.mxu0
  %v3779 = vadd.f32 %v3618, %v3778
  %v3780 = vand.u32 %v3540, 4294901760
  %v3781 = vsub.f32 %v3540, %v3780
  %v3782 = vand.u32 %v3781, 4294901760
  %v3783 = vsub.f32 %v3781, %v3782
  %v3784 = vand.u32 %v3783, 4294901760
  %3785 = vmatmul.f32.gmra.mxu0 %v3784
  %v3786 = vpop.f32.mrf.mxu0
  %v3787 = vadd.f32 %v3618, %v3786
  %v3788 = vand.u32 %v3542, 4294901760
  %v3789 = vsub.f32 %v3542, %v3788
  %v3790 = vand.u32 %v3789, 4294901760
  %v3791 = vsub.f32 %v3789, %v3790
  %v3792 = vand.u32 %v3791, 4294901760
  %3793 = vmatmul.f32.gmra.mxu0 %v3792
  %v3794 = vpop.f32.mrf.mxu0
  %v3795 = vadd.f32 %v3618, %v3794
  %v3796 = vand.u32 %v3544, 4294901760
  %v3797 = vsub.f32 %v3544, %v3796
  %v3798 = vand.u32 %v3797, 4294901760
  %v3799 = vsub.f32 %v3797, %v3798
  %v3800 = vand.u32 %v3799, 4294901760
  %3801 = vmatmul.f32.gmra.mxu0 %v3800
  %v3802 = vpop.f32.mrf.mxu0
  %v3803 = vadd.f32 %v3618, %v3802
  %v3804 = vand.u32 %v3546, 4294901760
  %v3805 = vsub.f32 %v3546, %v3804
  %v3806 = vand.u32 %v3805, 4294901760
  %v3807 = vsub.f32 %v3805, %v3806
  %v3808 = vand.u32 %v3807, 4294901760
  %3809 = vmatmul.f32.gmra.mxu0 %v3808
  %v3810 = vpop.f32.mrf.mxu0
  %v3811 = vadd.f32 %v3618, %v3810
  %v3812 = vand.u32 %v3548, 4294901760
  %v3813 = vsub.f32 %v3548, %v3812
  %v3814 = vand.u32 %v3813, 4294901760
  %v3815 = vsub.f32 %v3813, %v3814
  %v3816 = vand.u32 %v3815, 4294901760
  %3817 = vmatmul.f32.gmra.mxu0 %v3816
  %v3818 = vpop.f32.mrf.mxu0
  %v3819 = vadd.f32 %v3618, %v3818
  %v3820 = vand.u32 %v3550, 4294901760
  %v3821 = vsub.f32 %v3550, %v3820
  %v3822 = vand.u32 %v3821, 4294901760
  %v3823 = vsub.f32 %v3821, %v3822
  %v3824 = vand.u32 %v3823, 4294901760
  %3825 = vmatmul.f32.gmra.mxu0 %v3824
  %v3826 = vpop.f32.mrf.mxu0
  %v3827 = vadd.f32 %v3618, %v3826
  %v3828 = vand.u32 %v3552, 4294901760
  %v3829 = vsub.f32 %v3552, %v3828
  %v3830 = vand.u32 %v3829, 4294901760
  %v3831 = vsub.f32 %v3829, %v3830
  %v3832 = vand.u32 %v3831, 4294901760
  %3833 = vmatmul.f32.gmra.mxu0 %v3832
  %v3834 = vpop.f32.mrf.mxu0
  %v3835 = vadd.f32 %v3618, %v3834
  %v3836 = vand.u32 %v3554, 4294901760
  %v3837 = vsub.f32 %v3554, %v3836
  %v3838 = vand.u32 %v3837, 4294901760
  %v3839 = vsub.f32 %v3837, %v3838
  %v3840 = vand.u32 %v3839, 4294901760
  %3841 = vmatmul.f32.gmra.mxu0 %v3840
  %v3842 = vpop.f32.mrf.mxu0
  %v3843 = vadd.f32 %v3618, %v3842
  %v3844 = vand.u32 %v3556, 4294901760
  %v3845 = vsub.f32 %v3556, %v3844
  %v3846 = vand.u32 %v3845, 4294901760
  %v3847 = vsub.f32 %v3845, %v3846
  %v3848 = vand.u32 %v3847, 4294901760
  %3849 = vmatmul.f32.gmra.mxu0 %v3848
  %v3850 = vpop.f32.mrf.mxu0
  %v3851 = vadd.f32 %v3618, %v3850
  %v3852 = vand.u32 %v3558, 4294901760
  %v3853 = vsub.f32 %v3558, %v3852
  %v3854 = vand.u32 %v3853, 4294901760
  %v3855 = vsub.f32 %v3853, %v3854
  %v3856 = vand.u32 %v3855, 4294901760
  %3857 = vmatmul.f32.gmra.mxu0 %v3856
  %v3858 = vpop.f32.mrf.mxu0
  %v3859 = vadd.f32 %v3618, %v3858
  %v3860 = vand.u32 %v3560, 4294901760
  %v3861 = vsub.f32 %v3560, %v3860
  %v3862 = vand.u32 %v3861, 4294901760
  %v3863 = vsub.f32 %v3861, %v3862
  %v3864 = vand.u32 %v3863, 4294901760
  %3865 = vmatmul.f32.gmra.mxu0 %v3864
  %v3866 = vpop.f32.mrf.mxu0
  %v3867 = vadd.f32 %v3618, %v3866
  %v3868 = vand.u32 %v3562, 4294901760
  %v3869 = vsub.f32 %v3562, %v3868
  %v3870 = vand.u32 %v3869, 4294901760
  %v3871 = vsub.f32 %v3869, %v3870
  %v3872 = vand.u32 %v3871, 4294901760
  %3873 = vmatmul.f32.gmra.mxu0 %v3872
  %v3874 = vpop.f32.mrf.mxu0
  %v3875 = vadd.f32 %v3618, %v3874
  %v3876 = vand.u32 %v3564, 4294901760
  %v3877 = vsub.f32 %v3564, %v3876
  %v3878 = vand.u32 %v3877, 4294901760
  %v3879 = vsub.f32 %v3877, %v3878
  %v3880 = vand.u32 %v3879, 4294901760
  %3881 = vmatmul.f32.gmra.mxu0 %v3880
  %v3882 = vpop.f32.mrf.mxu0
  %v3883 = vadd.f32 %v3618, %v3882
  %v3884 = vand.u32 %v3566, 4294901760
  %v3885 = vsub.f32 %v3566, %v3884
  %v3886 = vand.u32 %v3885, 4294901760
  %v3887 = vsub.f32 %v3885, %v3886
  %v3888 = vand.u32 %v3887, 4294901760
  %3889 = vmatmul.f32.gmra.mxu0 %v3888
  %v3890 = vpop.f32.mrf.mxu0
  %v3891 = vadd.f32 %v3618, %v3890
  %v3892 = vand.u32 %v3568, 4294901760
  %v3893 = vsub.f32 %v3568, %v3892
  %v3894 = vand.u32 %v3893, 4294901760
  %v3895 = vsub.f32 %v3893, %v3894
  %v3896 = vand.u32 %v3895, 4294901760
  %3897 = vmatmul.f32.gmra.mxu0 %v3896
  %v3898 = vpop.f32.mrf.mxu0
  %v3899 = vadd.f32 %v3618, %v3898
  %v3900 = vand.u32 %v3570, 4294901760
  %v3901 = vsub.f32 %v3570, %v3900
  %v3902 = vand.u32 %v3901, 4294901760
  %v3903 = vsub.f32 %v3901, %v3902
  %v3904 = vand.u32 %v3903, 4294901760
  %3905 = vmatmul.f32.gmra.mxu0 %v3904
  %v3906 = vpop.f32.mrf.mxu0
  %v3907 = vadd.f32 %v3618, %v3906
  %v3908 = vand.u32 %v3572, 4294901760
  %v3909 = vsub.f32 %v3572, %v3908
  %v3910 = vand.u32 %v3909, 4294901760
  %v3911 = vsub.f32 %v3909, %v3910
  %v3912 = vand.u32 %v3911, 4294901760
  %3913 = vmatmul.f32.gmra.mxu0 %v3912
  %v3914 = vpop.f32.mrf.mxu0
  %v3915 = vadd.f32 %v3618, %v3914
  %v3916 = vand.u32 %v3574, 4294901760
  %v3917 = vsub.f32 %v3574, %v3916
  %v3918 = vand.u32 %v3917, 4294901760
  %v3919 = vsub.f32 %v3917, %v3918
  %v3920 = vand.u32 %v3919, 4294901760
  %3921 = vmatmul.f32.gmra.mxu0 %v3920
  %v3922 = vpop.f32.mrf.mxu0
  %v3923 = vadd.f32 %v3618, %v3922
  %v3924 = vand.u32 %v3576, 4294901760
  %v3925 = vsub.f32 %v3576, %v3924
  %v3926 = vand.u32 %v3925, 4294901760
  %v3927 = vsub.f32 %v3925, %v3926
  %v3928 = vand.u32 %v3927, 4294901760
  %3929 = vmatmul.f32.gmra.mxu0 %v3928
  %v3930 = vpop.f32.mrf.mxu0
  %v3931 = vadd.f32 %v3618, %v3930
  %v3932 = vand.u32 %v3578, 4294901760
  %v3933 = vsub.f32 %v3578, %v3932
  %v3934 = vand.u32 %v3933, 4294901760
  %v3935 = vsub.f32 %v3933, %v3934
  %v3936 = vand.u32 %v3935, 4294901760
  %3937 = vmatmul.f32.gmra.mxu0 %v3936
  %v3938 = vpop.f32.mrf.mxu0
  %v3939 = vadd.f32 %v3618, %v3938
  %v3940 = vand.u32 %v3580, 4294901760
  %v3941 = vsub.f32 %v3580, %v3940
  %v3942 = vand.u32 %v3941, 4294901760
  %v3943 = vsub.f32 %v3941, %v3942
  %v3944 = vand.u32 %v3943, 4294901760
  %3945 = vmatmul.f32.gmra.mxu0 %v3944
  %v3946 = vpop.f32.mrf.mxu0
  %v3947 = vadd.f32 %v3618, %v3946
  %v3948 = vand.u32 %v3582, 4294901760
  %v3949 = vsub.f32 %v3582, %v3948
  %v3950 = vand.u32 %v3949, 4294901760
  %v3951 = vsub.f32 %v3949, %v3950
  %v3952 = vand.u32 %v3951, 4294901760
  %3953 = vmatmul.f32.gmra.mxu0 %v3952
  %v3954 = vpop.f32.mrf.mxu0
  %v3955 = vadd.f32 %v3618, %v3954
  %3956 = vdwg.mxu0
  %v3957 = vand.u32 %v3599, 4294901760
  %v3958 = vsub.f32 %v3599, %v3957
  %v3959 = vand.u32 %v3958, 4294901760
  %v3960 = vsub.f32 %v3958, %v3959
  %v3961 = vand.u32 %v3960, 4294901760
  %3962 = vmatpush.msra.mxu0 %v3961
  %v3963 = vand.u32 %v3598, 4294901760
  %v3964 = vsub.f32 %v3598, %v3963
  %v3965 = vand.u32 %v3964, 4294901760
  %v3966 = vsub.f32 %v3964, %v3965
  %v3967 = vand.u32 %v3966, 4294901760
  %3968 = vmatpush.msra.mxu0 %v3967
  %v3969 = vand.u32 %v3597, 4294901760
  %v3970 = vsub.f32 %v3597, %v3969
  %v3971 = vand.u32 %v3970, 4294901760
  %v3972 = vsub.f32 %v3970, %v3971
  %v3973 = vand.u32 %v3972, 4294901760
  %3974 = vmatpush.msra.mxu0 %v3973
  %v3975 = vand.u32 %v3596, 4294901760
  %v3976 = vsub.f32 %v3596, %v3975
  %v3977 = vand.u32 %v3976, 4294901760
  %v3978 = vsub.f32 %v3976, %v3977
  %v3979 = vand.u32 %v3978, 4294901760
  %3980 = vmatpush.msra.mxu0 %v3979
  %v3981 = vand.u32 %v3595, 4294901760
  %v3982 = vsub.f32 %v3595, %v3981
  %v3983 = vand.u32 %v3982, 4294901760
  %v3984 = vsub.f32 %v3982, %v3983
  %v3985 = vand.u32 %v3984, 4294901760
  %3986 = vmatpush.msra.mxu0 %v3985
  %v3987 = vand.u32 %v3594, 4294901760
  %v3988 = vsub.f32 %v3594, %v3987
  %v3989 = vand.u32 %v3988, 4294901760
  %v3990 = vsub.f32 %v3988, %v3989
  %v3991 = vand.u32 %v3990, 4294901760
  %3992 = vmatpush.msra.mxu0 %v3991
  %v3993 = vand.u32 %v3593, 4294901760
  %v3994 = vsub.f32 %v3593, %v3993
  %v3995 = vand.u32 %v3994, 4294901760
  %v3996 = vsub.f32 %v3994, %v3995
  %v3997 = vand.u32 %v3996, 4294901760
  %3998 = vmatpush.msra.mxu0 %v3997
  %v3999 = vand.u32 %v3592, 4294901760
  %v4000 = vsub.f32 %v3592, %v3999
  %v4001 = vand.u32 %v4000, 4294901760
  %v4002 = vsub.f32 %v4000, %v4001
  %v4003 = vand.u32 %v4002, 4294901760
  %4004 = vmatpush.msra.mxu0 %v4003
  %v4005 = vand.u32 %v3591, 4294901760
  %v4006 = vsub.f32 %v3591, %v4005
  %v4007 = vand.u32 %v4006, 4294901760
  %v4008 = vsub.f32 %v4006, %v4007
  %v4009 = vand.u32 %v4008, 4294901760
  %4010 = vmatpush.msra.mxu0 %v4009
  %v4011 = vand.u32 %v3590, 4294901760
  %v4012 = vsub.f32 %v3590, %v4011
  %v4013 = vand.u32 %v4012, 4294901760
  %v4014 = vsub.f32 %v4012, %v4013
  %v4015 = vand.u32 %v4014, 4294901760
  %4016 = vmatpush.msra.mxu0 %v4015
  %v4017 = vand.u32 %v3589, 4294901760
  %v4018 = vsub.f32 %v3589, %v4017
  %v4019 = vand.u32 %v4018, 4294901760
  %v4020 = vsub.f32 %v4018, %v4019
  %v4021 = vand.u32 %v4020, 4294901760
  %4022 = vmatpush.msra.mxu0 %v4021
  %v4023 = vand.u32 %v3588, 4294901760
  %v4024 = vsub.f32 %v3588, %v4023
  %v4025 = vand.u32 %v4024, 4294901760
  %v4026 = vsub.f32 %v4024, %v4025
  %v4027 = vand.u32 %v4026, 4294901760
  %4028 = vmatpush.msra.mxu0 %v4027
  %v4029 = vand.u32 %v3587, 4294901760
  %v4030 = vsub.f32 %v3587, %v4029
  %v4031 = vand.u32 %v4030, 4294901760
  %v4032 = vsub.f32 %v4030, %v4031
  %v4033 = vand.u32 %v4032, 4294901760
  %4034 = vmatpush.msra.mxu0 %v4033
  %v4035 = vand.u32 %v3586, 4294901760
  %v4036 = vsub.f32 %v3586, %v4035
  %v4037 = vand.u32 %v4036, 4294901760
  %v4038 = vsub.f32 %v4036, %v4037
  %v4039 = vand.u32 %v4038, 4294901760
  %4040 = vmatpush.msra.mxu0 %v4039
  %v4041 = vand.u32 %v3585, 4294901760
  %v4042 = vsub.f32 %v3585, %v4041
  %v4043 = vand.u32 %v4042, 4294901760
  %v4044 = vsub.f32 %v4042, %v4043
  %v4045 = vand.u32 %v4044, 4294901760
  %4046 = vmatpush.msra.mxu0 %v4045
  %v4047 = vand.u32 %v3584, 4294901760
  %v4048 = vsub.f32 %v3584, %v4047
  %v4049 = vand.u32 %v4048, 4294901760
  %v4050 = vsub.f32 %v4048, %v4049
  %v4051 = vand.u32 %v4050, 4294901760
  %4052 = vmatpush.msra.mxu0 %v4051
  %v4053 = vand.u32 %v3508, 4294901760
  %4054 = vmatmul.f32.gmra.mxu0 %v4053
  %v4055 = vpop.f32.mrf.mxu0
  %v4056 = vadd.f32 %v3659, %v4055
  %v4057 = vand.u32 %v3510, 4294901760
  %4058 = vmatmul.f32.gmra.mxu0 %v4057
  %v4059 = vpop.f32.mrf.mxu0
  %v4060 = vadd.f32 %v3667, %v4059
  %v4061 = vand.u32 %v3512, 4294901760
  %4062 = vmatmul.f32.gmra.mxu0 %v4061
  %v4063 = vpop.f32.mrf.mxu0
  %v4064 = vadd.f32 %v3675, %v4063
  %v4065 = vand.u32 %v3514, 4294901760
  %4066 = vmatmul.f32.gmra.mxu0 %v4065
  %v4067 = vpop.f32.mrf.mxu0
  %v4068 = vadd.f32 %v3683, %v4067
  %v4069 = vand.u32 %v3516, 4294901760
  %4070 = vmatmul.f32.gmra.mxu0 %v4069
  %v4071 = vpop.f32.mrf.mxu0
  %v4072 = vadd.f32 %v3691, %v4071
  %v4073 = vand.u32 %v3518, 4294901760
  %4074 = vmatmul.f32.gmra.mxu0 %v4073
  %v4075 = vpop.f32.mrf.mxu0
  %v4076 = vadd.f32 %v3699, %v4075
  %v4077 = vand.u32 %v3520, 4294901760
  %4078 = vmatmul.f32.gmra.mxu0 %v4077
  %v4079 = vpop.f32.mrf.mxu0
  %v4080 = vadd.f32 %v3707, %v4079
  %v4081 = vand.u32 %v3522, 4294901760
  %4082 = vmatmul.f32.gmra.mxu0 %v4081
  %v4083 = vpop.f32.mrf.mxu0
  %v4084 = vadd.f32 %v3715, %v4083
  %v4085 = vand.u32 %v3524, 4294901760
  %4086 = vmatmul.f32.gmra.mxu0 %v4085
  %v4087 = vpop.f32.mrf.mxu0
  %v4088 = vadd.f32 %v3723, %v4087
  %v4089 = vand.u32 %v3526, 4294901760
  %4090 = vmatmul.f32.gmra.mxu0 %v4089
  %v4091 = vpop.f32.mrf.mxu0
  %v4092 = vadd.f32 %v3731, %v4091
  %v4093 = vand.u32 %v3528, 4294901760
  %4094 = vmatmul.f32.gmra.mxu0 %v4093
  %v4095 = vpop.f32.mrf.mxu0
  %v4096 = vadd.f32 %v3739, %v4095
  %v4097 = vand.u32 %v3530, 4294901760
  %4098 = vmatmul.f32.gmra.mxu0 %v4097
  %v4099 = vpop.f32.mrf.mxu0
  %v4100 = vadd.f32 %v3747, %v4099
  %v4101 = vand.u32 %v3532, 4294901760
  %4102 = vmatmul.f32.gmra.mxu0 %v4101
  %v4103 = vpop.f32.mrf.mxu0
  %v4104 = vadd.f32 %v3755, %v4103
  %v4105 = vand.u32 %v3534, 4294901760
  %4106 = vmatmul.f32.gmra.mxu0 %v4105
  %v4107 = vpop.f32.mrf.mxu0
  %v4108 = vadd.f32 %v3763, %v4107
  %v4109 = vand.u32 %v3536, 4294901760
  %4110 = vmatmul.f32.gmra.mxu0 %v4109
  %v4111 = vpop.f32.mrf.mxu0
  %v4112 = vadd.f32 %v3771, %v4111
  %v4113 = vand.u32 %v3538, 4294901760
  %4114 = vmatmul.f32.gmra.mxu0 %v4113
  %v4115 = vpop.f32.mrf.mxu0
  %v4116 = vadd.f32 %v3779, %v4115
  %v4117 = vand.u32 %v3540, 4294901760
  %4118 = vmatmul.f32.gmra.mxu0 %v4117
  %v4119 = vpop.f32.mrf.mxu0
  %v4120 = vadd.f32 %v3787, %v4119
  %v4121 = vand.u32 %v3542, 4294901760
  %4122 = vmatmul.f32.gmra.mxu0 %v4121
  %v4123 = vpop.f32.mrf.mxu0
  %v4124 = vadd.f32 %v3795, %v4123
  %v4125 = vand.u32 %v3544, 4294901760
  %4126 = vmatmul.f32.gmra.mxu0 %v4125
  %v4127 = vpop.f32.mrf.mxu0
  %v4128 = vadd.f32 %v3803, %v4127
  %v4129 = vand.u32 %v3546, 4294901760
  %4130 = vmatmul.f32.gmra.mxu0 %v4129
  %v4131 = vpop.f32.mrf.mxu0
  %v4132 = vadd.f32 %v3811, %v4131
  %v4133 = vand.u32 %v3548, 4294901760
  %4134 = vmatmul.f32.gmra.mxu0 %v4133
  %v4135 = vpop.f32.mrf.mxu0
  %v4136 = vadd.f32 %v3819, %v4135
  %v4137 = vand.u32 %v3550, 4294901760
  %4138 = vmatmul.f32.gmra.mxu0 %v4137
  %v4139 = vpop.f32.mrf.mxu0
  %v4140 = vadd.f32 %v3827, %v4139
  %v4141 = vand.u32 %v3552, 4294901760
  %4142 = vmatmul.f32.gmra.mxu0 %v4141
  %v4143 = vpop.f32.mrf.mxu0
  %v4144 = vadd.f32 %v3835, %v4143
  %v4145 = vand.u32 %v3554, 4294901760
  %4146 = vmatmul.f32.gmra.mxu0 %v4145
  %v4147 = vpop.f32.mrf.mxu0
  %v4148 = vadd.f32 %v3843, %v4147
  %v4149 = vand.u32 %v3556, 4294901760
  %4150 = vmatmul.f32.gmra.mxu0 %v4149
  %v4151 = vpop.f32.mrf.mxu0
  %v4152 = vadd.f32 %v3851, %v4151
  %v4153 = vand.u32 %v3558, 4294901760
  %4154 = vmatmul.f32.gmra.mxu0 %v4153
  %v4155 = vpop.f32.mrf.mxu0
  %v4156 = vadd.f32 %v3859, %v4155
  %v4157 = vand.u32 %v3560, 4294901760
  %4158 = vmatmul.f32.gmra.mxu0 %v4157
  %v4159 = vpop.f32.mrf.mxu0
  %v4160 = vadd.f32 %v3867, %v4159
  %v4161 = vand.u32 %v3562, 4294901760
  %4162 = vmatmul.f32.gmra.mxu0 %v4161
  %v4163 = vpop.f32.mrf.mxu0
  %v4164 = vadd.f32 %v3875, %v4163
  %v4165 = vand.u32 %v3564, 4294901760
  %4166 = vmatmul.f32.gmra.mxu0 %v4165
  %v4167 = vpop.f32.mrf.mxu0
  %v4168 = vadd.f32 %v3883, %v4167
  %v4169 = vand.u32 %v3566, 4294901760
  %4170 = vmatmul.f32.gmra.mxu0 %v4169
  %v4171 = vpop.f32.mrf.mxu0
  %v4172 = vadd.f32 %v3891, %v4171
  %v4173 = vand.u32 %v3568, 4294901760
  %4174 = vmatmul.f32.gmra.mxu0 %v4173
  %v4175 = vpop.f32.mrf.mxu0
  %v4176 = vadd.f32 %v3899, %v4175
  %v4177 = vand.u32 %v3570, 4294901760
  %4178 = vmatmul.f32.gmra.mxu0 %v4177
  %v4179 = vpop.f32.mrf.mxu0
  %v4180 = vadd.f32 %v3907, %v4179
  %v4181 = vand.u32 %v3572, 4294901760
  %4182 = vmatmul.f32.gmra.mxu0 %v4181
  %v4183 = vpop.f32.mrf.mxu0
  %v4184 = vadd.f32 %v3915, %v4183
  %v4185 = vand.u32 %v3574, 4294901760
  %4186 = vmatmul.f32.gmra.mxu0 %v4185
  %v4187 = vpop.f32.mrf.mxu0
  %v4188 = vadd.f32 %v3923, %v4187
  %v4189 = vand.u32 %v3576, 4294901760
  %4190 = vmatmul.f32.gmra.mxu0 %v4189
  %v4191 = vpop.f32.mrf.mxu0
  %v4192 = vadd.f32 %v3931, %v4191
  %v4193 = vand.u32 %v3578, 4294901760
  %4194 = vmatmul.f32.gmra.mxu0 %v4193
  %v4195 = vpop.f32.mrf.mxu0
  %v4196 = vadd.f32 %v3939, %v4195
  %v4197 = vand.u32 %v3580, 4294901760
  %4198 = vmatmul.f32.gmra.mxu0 %v4197
  %v4199 = vpop.f32.mrf.mxu0
  %v4200 = vadd.f32 %v3947, %v4199
  %v4201 = vand.u32 %v3582, 4294901760
  %4202 = vmatmul.f32.gmra.mxu0 %v4201
  %v4203 = vpop.f32.mrf.mxu0
  %v4204 = vadd.f32 %v3955, %v4203
  %4205 = vdwg.mxu0
  %v4206 = vand.u32 %v3599, 4294901760
  %v4207 = vsub.f32 %v3599, %v4206
  %4208 = vmatpush.msra.mxu0 %v4207
  %v4209 = vand.u32 %v3598, 4294901760
  %v4210 = vsub.f32 %v3598, %v4209
  %4211 = vmatpush.msra.mxu0 %v4210
  %v4212 = vand.u32 %v3597, 4294901760
  %v4213 = vsub.f32 %v3597, %v4212
  %4214 = vmatpush.msra.mxu0 %v4213
  %v4215 = vand.u32 %v3596, 4294901760
  %v4216 = vsub.f32 %v3596, %v4215
  %4217 = vmatpush.msra.mxu0 %v4216
  %v4218 = vand.u32 %v3595, 4294901760
  %v4219 = vsub.f32 %v3595, %v4218
  %4220 = vmatpush.msra.mxu0 %v4219
  %v4221 = vand.u32 %v3594, 4294901760
  %v4222 = vsub.f32 %v3594, %v4221
  %4223 = vmatpush.msra.mxu0 %v4222
  %v4224 = vand.u32 %v3593, 4294901760
  %v4225 = vsub.f32 %v3593, %v4224
  %4226 = vmatpush.msra.mxu0 %v4225
  %v4227 = vand.u32 %v3592, 4294901760
  %v4228 = vsub.f32 %v3592, %v4227
  %4229 = vmatpush.msra.mxu0 %v4228
  %v4230 = vand.u32 %v3591, 4294901760
  %v4231 = vsub.f32 %v3591, %v4230
  %4232 = vmatpush.msra.mxu0 %v4231
  %v4233 = vand.u32 %v3590, 4294901760
  %v4234 = vsub.f32 %v3590, %v4233
  %4235 = vmatpush.msra.mxu0 %v4234
  %v4236 = vand.u32 %v3589, 4294901760
  %v4237 = vsub.f32 %v3589, %v4236
  %4238 = vmatpush.msra.mxu0 %v4237
  %v4239 = vand.u32 %v3588, 4294901760
  %v4240 = vsub.f32 %v3588, %v4239
  %4241 = vmatpush.msra.mxu0 %v4240
  %v4242 = vand.u32 %v3587, 4294901760
  %v4243 = vsub.f32 %v3587, %v4242
  %4244 = vmatpush.msra.mxu0 %v4243
  %v4245 = vand.u32 %v3586, 4294901760
  %v4246 = vsub.f32 %v3586, %v4245
  %4247 = vmatpush.msra.mxu0 %v4246
  %v4248 = vand.u32 %v3585, 4294901760
  %v4249 = vsub.f32 %v3585, %v4248
  %4250 = vmatpush.msra.mxu0 %v4249
  %v4251 = vand.u32 %v3584, 4294901760
  %v4252 = vsub.f32 %v3584, %v4251
  %4253 = vmatpush.msra.mxu0 %v4252
  %v4254 = vand.u32 %v3508, 4294901760
  %v4255 = vsub.f32 %v3508, %v4254
  %4256 = vmatmul.f32.gmra.mxu0 %v4255
  %v4257 = vpop.f32.mrf.mxu0
  %v4258 = vadd.f32 %v4056, %v4257
  %v4259 = vand.u32 %v3510, 4294901760
  %v4260 = vsub.f32 %v3510, %v4259
  %4261 = vmatmul.f32.gmra.mxu0 %v4260
  %v4262 = vpop.f32.mrf.mxu0
  %v4263 = vadd.f32 %v4060, %v4262
  %v4264 = vand.u32 %v3512, 4294901760
  %v4265 = vsub.f32 %v3512, %v4264
  %4266 = vmatmul.f32.gmra.mxu0 %v4265
  %v4267 = vpop.f32.mrf.mxu0
  %v4268 = vadd.f32 %v4064, %v4267
  %v4269 = vand.u32 %v3514, 4294901760
  %v4270 = vsub.f32 %v3514, %v4269
  %4271 = vmatmul.f32.gmra.mxu0 %v4270
  %v4272 = vpop.f32.mrf.mxu0
  %v4273 = vadd.f32 %v4068, %v4272
  %v4274 = vand.u32 %v3516, 4294901760
  %v4275 = vsub.f32 %v3516, %v4274
  %4276 = vmatmul.f32.gmra.mxu0 %v4275
  %v4277 = vpop.f32.mrf.mxu0
  %v4278 = vadd.f32 %v4072, %v4277
  %v4279 = vand.u32 %v3518, 4294901760
  %v4280 = vsub.f32 %v3518, %v4279
  %4281 = vmatmul.f32.gmra.mxu0 %v4280
  %v4282 = vpop.f32.mrf.mxu0
  %v4283 = vadd.f32 %v4076, %v4282
  %v4284 = vand.u32 %v3520, 4294901760
  %v4285 = vsub.f32 %v3520, %v4284
  %4286 = vmatmul.f32.gmra.mxu0 %v4285
  %v4287 = vpop.f32.mrf.mxu0
  %v4288 = vadd.f32 %v4080, %v4287
  %v4289 = vand.u32 %v3522, 4294901760
  %v4290 = vsub.f32 %v3522, %v4289
  %4291 = vmatmul.f32.gmra.mxu0 %v4290
  %v4292 = vpop.f32.mrf.mxu0
  %v4293 = vadd.f32 %v4084, %v4292
  %v4294 = vand.u32 %v3524, 4294901760
  %v4295 = vsub.f32 %v3524, %v4294
  %4296 = vmatmul.f32.gmra.mxu0 %v4295
  %v4297 = vpop.f32.mrf.mxu0
  %v4298 = vadd.f32 %v4088, %v4297
  %v4299 = vand.u32 %v3526, 4294901760
  %v4300 = vsub.f32 %v3526, %v4299
  %4301 = vmatmul.f32.gmra.mxu0 %v4300
  %v4302 = vpop.f32.mrf.mxu0
  %v4303 = vadd.f32 %v4092, %v4302
  %v4304 = vand.u32 %v3528, 4294901760
  %v4305 = vsub.f32 %v3528, %v4304
  %4306 = vmatmul.f32.gmra.mxu0 %v4305
  %v4307 = vpop.f32.mrf.mxu0
  %v4308 = vadd.f32 %v4096, %v4307
  %v4309 = vand.u32 %v3530, 4294901760
  %v4310 = vsub.f32 %v3530, %v4309
  %4311 = vmatmul.f32.gmra.mxu0 %v4310
  %v4312 = vpop.f32.mrf.mxu0
  %v4313 = vadd.f32 %v4100, %v4312
  %v4314 = vand.u32 %v3532, 4294901760
  %v4315 = vsub.f32 %v3532, %v4314
  %4316 = vmatmul.f32.gmra.mxu0 %v4315
  %v4317 = vpop.f32.mrf.mxu0
  %v4318 = vadd.f32 %v4104, %v4317
  %v4319 = vand.u32 %v3534, 4294901760
  %v4320 = vsub.f32 %v3534, %v4319
  %4321 = vmatmul.f32.gmra.mxu0 %v4320
  %v4322 = vpop.f32.mrf.mxu0
  %v4323 = vadd.f32 %v4108, %v4322
  %v4324 = vand.u32 %v3536, 4294901760
  %v4325 = vsub.f32 %v3536, %v4324
  %4326 = vmatmul.f32.gmra.mxu0 %v4325
  %v4327 = vpop.f32.mrf.mxu0
  %v4328 = vadd.f32 %v4112, %v4327
  %v4329 = vand.u32 %v3538, 4294901760
  %v4330 = vsub.f32 %v3538, %v4329
  %4331 = vmatmul.f32.gmra.mxu0 %v4330
  %v4332 = vpop.f32.mrf.mxu0
  %v4333 = vadd.f32 %v4116, %v4332
  %v4334 = vand.u32 %v3540, 4294901760
  %v4335 = vsub.f32 %v3540, %v4334
  %4336 = vmatmul.f32.gmra.mxu0 %v4335
  %v4337 = vpop.f32.mrf.mxu0
  %v4338 = vadd.f32 %v4120, %v4337
  %v4339 = vand.u32 %v3542, 4294901760
  %v4340 = vsub.f32 %v3542, %v4339
  %4341 = vmatmul.f32.gmra.mxu0 %v4340
  %v4342 = vpop.f32.mrf.mxu0
  %v4343 = vadd.f32 %v4124, %v4342
  %v4344 = vand.u32 %v3544, 4294901760
  %v4345 = vsub.f32 %v3544, %v4344
  %4346 = vmatmul.f32.gmra.mxu0 %v4345
  %v4347 = vpop.f32.mrf.mxu0
  %v4348 = vadd.f32 %v4128, %v4347
  %v4349 = vand.u32 %v3546, 4294901760
  %v4350 = vsub.f32 %v3546, %v4349
  %4351 = vmatmul.f32.gmra.mxu0 %v4350
  %v4352 = vpop.f32.mrf.mxu0
  %v4353 = vadd.f32 %v4132, %v4352
  %v4354 = vand.u32 %v3548, 4294901760
  %v4355 = vsub.f32 %v3548, %v4354
  %4356 = vmatmul.f32.gmra.mxu0 %v4355
  %v4357 = vpop.f32.mrf.mxu0
  %v4358 = vadd.f32 %v4136, %v4357
  %v4359 = vand.u32 %v3550, 4294901760
  %v4360 = vsub.f32 %v3550, %v4359
  %4361 = vmatmul.f32.gmra.mxu0 %v4360
  %v4362 = vpop.f32.mrf.mxu0
  %v4363 = vadd.f32 %v4140, %v4362
  %v4364 = vand.u32 %v3552, 4294901760
  %v4365 = vsub.f32 %v3552, %v4364
  %4366 = vmatmul.f32.gmra.mxu0 %v4365
  %v4367 = vpop.f32.mrf.mxu0
  %v4368 = vadd.f32 %v4144, %v4367
  %v4369 = vand.u32 %v3554, 4294901760
  %v4370 = vsub.f32 %v3554, %v4369
  %4371 = vmatmul.f32.gmra.mxu0 %v4370
  %v4372 = vpop.f32.mrf.mxu0
  %v4373 = vadd.f32 %v4148, %v4372
  %v4374 = vand.u32 %v3556, 4294901760
  %v4375 = vsub.f32 %v3556, %v4374
  %4376 = vmatmul.f32.gmra.mxu0 %v4375
  %v4377 = vpop.f32.mrf.mxu0
  %v4378 = vadd.f32 %v4152, %v4377
  %v4379 = vand.u32 %v3558, 4294901760
  %v4380 = vsub.f32 %v3558, %v4379
  %4381 = vmatmul.f32.gmra.mxu0 %v4380
  %v4382 = vpop.f32.mrf.mxu0
  %v4383 = vadd.f32 %v4156, %v4382
  %v4384 = vand.u32 %v3560, 4294901760
  %v4385 = vsub.f32 %v3560, %v4384
  %4386 = vmatmul.f32.gmra.mxu0 %v4385
  %v4387 = vpop.f32.mrf.mxu0
  %v4388 = vadd.f32 %v4160, %v4387
  %v4389 = vand.u32 %v3562, 4294901760
  %v4390 = vsub.f32 %v3562, %v4389
  %4391 = vmatmul.f32.gmra.mxu0 %v4390
  %v4392 = vpop.f32.mrf.mxu0
  %v4393 = vadd.f32 %v4164, %v4392
  %v4394 = vand.u32 %v3564, 4294901760
  %v4395 = vsub.f32 %v3564, %v4394
  %4396 = vmatmul.f32.gmra.mxu0 %v4395
  %v4397 = vpop.f32.mrf.mxu0
  %v4398 = vadd.f32 %v4168, %v4397
  %v4399 = vand.u32 %v3566, 4294901760
  %v4400 = vsub.f32 %v3566, %v4399
  %4401 = vmatmul.f32.gmra.mxu0 %v4400
  %v4402 = vpop.f32.mrf.mxu0
  %v4403 = vadd.f32 %v4172, %v4402
  %v4404 = vand.u32 %v3568, 4294901760
  %v4405 = vsub.f32 %v3568, %v4404
  %4406 = vmatmul.f32.gmra.mxu0 %v4405
  %v4407 = vpop.f32.mrf.mxu0
  %v4408 = vadd.f32 %v4176, %v4407
  %v4409 = vand.u32 %v3570, 4294901760
  %v4410 = vsub.f32 %v3570, %v4409
  %4411 = vmatmul.f32.gmra.mxu0 %v4410
  %v4412 = vpop.f32.mrf.mxu0
  %v4413 = vadd.f32 %v4180, %v4412
  %v4414 = vand.u32 %v3572, 4294901760
  %v4415 = vsub.f32 %v3572, %v4414
  %4416 = vmatmul.f32.gmra.mxu0 %v4415
  %v4417 = vpop.f32.mrf.mxu0
  %v4418 = vadd.f32 %v4184, %v4417
  %v4419 = vand.u32 %v3574, 4294901760
  %v4420 = vsub.f32 %v3574, %v4419
  %4421 = vmatmul.f32.gmra.mxu0 %v4420
  %v4422 = vpop.f32.mrf.mxu0
  %v4423 = vadd.f32 %v4188, %v4422
  %v4424 = vand.u32 %v3576, 4294901760
  %v4425 = vsub.f32 %v3576, %v4424
  %4426 = vmatmul.f32.gmra.mxu0 %v4425
  %v4427 = vpop.f32.mrf.mxu0
  %v4428 = vadd.f32 %v4192, %v4427
  %v4429 = vand.u32 %v3578, 4294901760
  %v4430 = vsub.f32 %v3578, %v4429
  %4431 = vmatmul.f32.gmra.mxu0 %v4430
  %v4432 = vpop.f32.mrf.mxu0
  %v4433 = vadd.f32 %v4196, %v4432
  %v4434 = vand.u32 %v3580, 4294901760
  %v4435 = vsub.f32 %v3580, %v4434
  %4436 = vmatmul.f32.gmra.mxu0 %v4435
  %v4437 = vpop.f32.mrf.mxu0
  %v4438 = vadd.f32 %v4200, %v4437
  %v4439 = vand.u32 %v3582, 4294901760
  %v4440 = vsub.f32 %v3582, %v4439
  %4441 = vmatmul.f32.gmra.mxu0 %v4440
  %v4442 = vpop.f32.mrf.mxu0
  %v4443 = vadd.f32 %v4204, %v4442
  %4444 = vdwg.mxu0
  %v4445 = vand.u32 %v3599, 4294901760
  %4446 = vmatpush.msra.mxu0 %v4445
  %v4447 = vand.u32 %v3598, 4294901760
  %4448 = vmatpush.msra.mxu0 %v4447
  %v4449 = vand.u32 %v3597, 4294901760
  %4450 = vmatpush.msra.mxu0 %v4449
  %v4451 = vand.u32 %v3596, 4294901760
  %4452 = vmatpush.msra.mxu0 %v4451
  %v4453 = vand.u32 %v3595, 4294901760
  %4454 = vmatpush.msra.mxu0 %v4453
  %v4455 = vand.u32 %v3594, 4294901760
  %4456 = vmatpush.msra.mxu0 %v4455
  %v4457 = vand.u32 %v3593, 4294901760
  %4458 = vmatpush.msra.mxu0 %v4457
  %v4459 = vand.u32 %v3592, 4294901760
  %4460 = vmatpush.msra.mxu0 %v4459
  %v4461 = vand.u32 %v3591, 4294901760
  %4462 = vmatpush.msra.mxu0 %v4461
  %v4463 = vand.u32 %v3590, 4294901760
  %4464 = vmatpush.msra.mxu0 %v4463
  %v4465 = vand.u32 %v3589, 4294901760
  %4466 = vmatpush.msra.mxu0 %v4465
  %v4467 = vand.u32 %v3588, 4294901760
  %4468 = vmatpush.msra.mxu0 %v4467
  %v4469 = vand.u32 %v3587, 4294901760
  %4470 = vmatpush.msra.mxu0 %v4469
  %v4471 = vand.u32 %v3586, 4294901760
  %4472 = vmatpush.msra.mxu0 %v4471
  %v4473 = vand.u32 %v3585, 4294901760
  %4474 = vmatpush.msra.mxu0 %v4473
  %v4475 = vand.u32 %v3584, 4294901760
  %4476 = vmatpush.msra.mxu0 %v4475
  %v4477 = vand.u32 %v3508, 4294901760
  %v4478 = vsub.f32 %v3508, %v4477
  %v4479 = vand.u32 %v4478, 4294901760
  %4480 = vmatmul.f32.gmra.mxu0 %v4479
  %v4481 = vpop.f32.mrf.mxu0
  %v4482 = vadd.f32 %v4258, %v4481
  %v4483 = vand.u32 %v3510, 4294901760
  %v4484 = vsub.f32 %v3510, %v4483
  %v4485 = vand.u32 %v4484, 4294901760
  %4486 = vmatmul.f32.gmra.mxu0 %v4485
  %v4487 = vpop.f32.mrf.mxu0
  %v4488 = vadd.f32 %v4263, %v4487
  %v4489 = vand.u32 %v3512, 4294901760
  %v4490 = vsub.f32 %v3512, %v4489
  %v4491 = vand.u32 %v4490, 4294901760
  %4492 = vmatmul.f32.gmra.mxu0 %v4491
  %v4493 = vpop.f32.mrf.mxu0
  %v4494 = vadd.f32 %v4268, %v4493
  %v4495 = vand.u32 %v3514, 4294901760
  %v4496 = vsub.f32 %v3514, %v4495
  %v4497 = vand.u32 %v4496, 4294901760
  %4498 = vmatmul.f32.gmra.mxu0 %v4497
  %v4499 = vpop.f32.mrf.mxu0
  %v4500 = vadd.f32 %v4273, %v4499
  %v4501 = vand.u32 %v3516, 4294901760
  %v4502 = vsub.f32 %v3516, %v4501
  %v4503 = vand.u32 %v4502, 4294901760
  %4504 = vmatmul.f32.gmra.mxu0 %v4503
  %v4505 = vpop.f32.mrf.mxu0
  %v4506 = vadd.f32 %v4278, %v4505
  %v4507 = vand.u32 %v3518, 4294901760
  %v4508 = vsub.f32 %v3518, %v4507
  %v4509 = vand.u32 %v4508, 4294901760
  %4510 = vmatmul.f32.gmra.mxu0 %v4509
  %v4511 = vpop.f32.mrf.mxu0
  %v4512 = vadd.f32 %v4283, %v4511
  %v4513 = vand.u32 %v3520, 4294901760
  %v4514 = vsub.f32 %v3520, %v4513
  %v4515 = vand.u32 %v4514, 4294901760
  %4516 = vmatmul.f32.gmra.mxu0 %v4515
  %v4517 = vpop.f32.mrf.mxu0
  %v4518 = vadd.f32 %v4288, %v4517
  %v4519 = vand.u32 %v3522, 4294901760
  %v4520 = vsub.f32 %v3522, %v4519
  %v4521 = vand.u32 %v4520, 4294901760
  %4522 = vmatmul.f32.gmra.mxu0 %v4521
  %v4523 = vpop.f32.mrf.mxu0
  %v4524 = vadd.f32 %v4293, %v4523
  %v4525 = vand.u32 %v3524, 4294901760
  %v4526 = vsub.f32 %v3524, %v4525
  %v4527 = vand.u32 %v4526, 4294901760
  %4528 = vmatmul.f32.gmra.mxu0 %v4527
  %v4529 = vpop.f32.mrf.mxu0
  %v4530 = vadd.f32 %v4298, %v4529
  %v4531 = vand.u32 %v3526, 4294901760
  %v4532 = vsub.f32 %v3526, %v4531
  %v4533 = vand.u32 %v4532, 4294901760
  %4534 = vmatmul.f32.gmra.mxu0 %v4533
  %v4535 = vpop.f32.mrf.mxu0
  %v4536 = vadd.f32 %v4303, %v4535
  %v4537 = vand.u32 %v3528, 4294901760
  %v4538 = vsub.f32 %v3528, %v4537
  %v4539 = vand.u32 %v4538, 4294901760
  %4540 = vmatmul.f32.gmra.mxu0 %v4539
  %v4541 = vpop.f32.mrf.mxu0
  %v4542 = vadd.f32 %v4308, %v4541
  %v4543 = vand.u32 %v3530, 4294901760
  %v4544 = vsub.f32 %v3530, %v4543
  %v4545 = vand.u32 %v4544, 4294901760
  %4546 = vmatmul.f32.gmra.mxu0 %v4545
  %v4547 = vpop.f32.mrf.mxu0
  %v4548 = vadd.f32 %v4313, %v4547
  %v4549 = vand.u32 %v3532, 4294901760
  %v4550 = vsub.f32 %v3532, %v4549
  %v4551 = vand.u32 %v4550, 4294901760
  %4552 = vmatmul.f32.gmra.mxu0 %v4551
  %v4553 = vpop.f32.mrf.mxu0
  %v4554 = vadd.f32 %v4318, %v4553
  %v4555 = vand.u32 %v3534, 4294901760
  %v4556 = vsub.f32 %v3534, %v4555
  %v4557 = vand.u32 %v4556, 4294901760
  %4558 = vmatmul.f32.gmra.mxu0 %v4557
  %v4559 = vpop.f32.mrf.mxu0
  %v4560 = vadd.f32 %v4323, %v4559
  %v4561 = vand.u32 %v3536, 4294901760
  %v4562 = vsub.f32 %v3536, %v4561
  %v4563 = vand.u32 %v4562, 4294901760
  %4564 = vmatmul.f32.gmra.mxu0 %v4563
  %v4565 = vpop.f32.mrf.mxu0
  %v4566 = vadd.f32 %v4328, %v4565
  %v4567 = vand.u32 %v3538, 4294901760
  %v4568 = vsub.f32 %v3538, %v4567
  %v4569 = vand.u32 %v4568, 4294901760
  %4570 = vmatmul.f32.gmra.mxu0 %v4569
  %v4571 = vpop.f32.mrf.mxu0
  %v4572 = vadd.f32 %v4333, %v4571
  %v4573 = vand.u32 %v3540, 4294901760
  %v4574 = vsub.f32 %v3540, %v4573
  %v4575 = vand.u32 %v4574, 4294901760
  %4576 = vmatmul.f32.gmra.mxu0 %v4575
  %v4577 = vpop.f32.mrf.mxu0
  %v4578 = vadd.f32 %v4338, %v4577
  %v4579 = vand.u32 %v3542, 4294901760
  %v4580 = vsub.f32 %v3542, %v4579
  %v4581 = vand.u32 %v4580, 4294901760
  %4582 = vmatmul.f32.gmra.mxu0 %v4581
  %v4583 = vpop.f32.mrf.mxu0
  %v4584 = vadd.f32 %v4343, %v4583
  %v4585 = vand.u32 %v3544, 4294901760
  %v4586 = vsub.f32 %v3544, %v4585
  %v4587 = vand.u32 %v4586, 4294901760
  %4588 = vmatmul.f32.gmra.mxu0 %v4587
  %v4589 = vpop.f32.mrf.mxu0
  %v4590 = vadd.f32 %v4348, %v4589
  %v4591 = vand.u32 %v3546, 4294901760
  %v4592 = vsub.f32 %v3546, %v4591
  %v4593 = vand.u32 %v4592, 4294901760
  %4594 = vmatmul.f32.gmra.mxu0 %v4593
  %v4595 = vpop.f32.mrf.mxu0
  %v4596 = vadd.f32 %v4353, %v4595
  %v4597 = vand.u32 %v3548, 4294901760
  %v4598 = vsub.f32 %v3548, %v4597
  %v4599 = vand.u32 %v4598, 4294901760
  %4600 = vmatmul.f32.gmra.mxu0 %v4599
  %v4601 = vpop.f32.mrf.mxu0
  %v4602 = vadd.f32 %v4358, %v4601
  %v4603 = vand.u32 %v3550, 4294901760
  %v4604 = vsub.f32 %v3550, %v4603
  %v4605 = vand.u32 %v4604, 4294901760
  %4606 = vmatmul.f32.gmra.mxu0 %v4605
  %v4607 = vpop.f32.mrf.mxu0
  %v4608 = vadd.f32 %v4363, %v4607
  %v4609 = vand.u32 %v3552, 4294901760
  %v4610 = vsub.f32 %v3552, %v4609
  %v4611 = vand.u32 %v4610, 4294901760
  %4612 = vmatmul.f32.gmra.mxu0 %v4611
  %v4613 = vpop.f32.mrf.mxu0
  %v4614 = vadd.f32 %v4368, %v4613
  %v4615 = vand.u32 %v3554, 4294901760
  %v4616 = vsub.f32 %v3554, %v4615
  %v4617 = vand.u32 %v4616, 4294901760
  %4618 = vmatmul.f32.gmra.mxu0 %v4617
  %v4619 = vpop.f32.mrf.mxu0
  %v4620 = vadd.f32 %v4373, %v4619
  %v4621 = vand.u32 %v3556, 4294901760
  %v4622 = vsub.f32 %v3556, %v4621
  %v4623 = vand.u32 %v4622, 4294901760
  %4624 = vmatmul.f32.gmra.mxu0 %v4623
  %v4625 = vpop.f32.mrf.mxu0
  %v4626 = vadd.f32 %v4378, %v4625
  %v4627 = vand.u32 %v3558, 4294901760
  %v4628 = vsub.f32 %v3558, %v4627
  %v4629 = vand.u32 %v4628, 4294901760
  %4630 = vmatmul.f32.gmra.mxu0 %v4629
  %v4631 = vpop.f32.mrf.mxu0
  %v4632 = vadd.f32 %v4383, %v4631
  %v4633 = vand.u32 %v3560, 4294901760
  %v4634 = vsub.f32 %v3560, %v4633
  %v4635 = vand.u32 %v4634, 4294901760
  %4636 = vmatmul.f32.gmra.mxu0 %v4635
  %v4637 = vpop.f32.mrf.mxu0
  %v4638 = vadd.f32 %v4388, %v4637
  %v4639 = vand.u32 %v3562, 4294901760
  %v4640 = vsub.f32 %v3562, %v4639
  %v4641 = vand.u32 %v4640, 4294901760
  %4642 = vmatmul.f32.gmra.mxu0 %v4641
  %v4643 = vpop.f32.mrf.mxu0
  %v4644 = vadd.f32 %v4393, %v4643
  %v4645 = vand.u32 %v3564, 4294901760
  %v4646 = vsub.f32 %v3564, %v4645
  %v4647 = vand.u32 %v4646, 4294901760
  %4648 = vmatmul.f32.gmra.mxu0 %v4647
  %v4649 = vpop.f32.mrf.mxu0
  %v4650 = vadd.f32 %v4398, %v4649
  %v4651 = vand.u32 %v3566, 4294901760
  %v4652 = vsub.f32 %v3566, %v4651
  %v4653 = vand.u32 %v4652, 4294901760
  %4654 = vmatmul.f32.gmra.mxu0 %v4653
  %v4655 = vpop.f32.mrf.mxu0
  %v4656 = vadd.f32 %v4403, %v4655
  %v4657 = vand.u32 %v3568, 4294901760
  %v4658 = vsub.f32 %v3568, %v4657
  %v4659 = vand.u32 %v4658, 4294901760
  %4660 = vmatmul.f32.gmra.mxu0 %v4659
  %v4661 = vpop.f32.mrf.mxu0
  %v4662 = vadd.f32 %v4408, %v4661
  %v4663 = vand.u32 %v3570, 4294901760
  %v4664 = vsub.f32 %v3570, %v4663
  %v4665 = vand.u32 %v4664, 4294901760
  %4666 = vmatmul.f32.gmra.mxu0 %v4665
  %v4667 = vpop.f32.mrf.mxu0
  %v4668 = vadd.f32 %v4413, %v4667
  %v4669 = vand.u32 %v3572, 4294901760
  %v4670 = vsub.f32 %v3572, %v4669
  %v4671 = vand.u32 %v4670, 4294901760
  %4672 = vmatmul.f32.gmra.mxu0 %v4671
  %v4673 = vpop.f32.mrf.mxu0
  %v4674 = vadd.f32 %v4418, %v4673
  %v4675 = vand.u32 %v3574, 4294901760
  %v4676 = vsub.f32 %v3574, %v4675
  %v4677 = vand.u32 %v4676, 4294901760
  %4678 = vmatmul.f32.gmra.mxu0 %v4677
  %v4679 = vpop.f32.mrf.mxu0
  %v4680 = vadd.f32 %v4423, %v4679
  %v4681 = vand.u32 %v3576, 4294901760
  %v4682 = vsub.f32 %v3576, %v4681
  %v4683 = vand.u32 %v4682, 4294901760
  %4684 = vmatmul.f32.gmra.mxu0 %v4683
  %v4685 = vpop.f32.mrf.mxu0
  %v4686 = vadd.f32 %v4428, %v4685
  %v4687 = vand.u32 %v3578, 4294901760
  %v4688 = vsub.f32 %v3578, %v4687
  %v4689 = vand.u32 %v4688, 4294901760
  %4690 = vmatmul.f32.gmra.mxu0 %v4689
  %v4691 = vpop.f32.mrf.mxu0
  %v4692 = vadd.f32 %v4433, %v4691
  %v4693 = vand.u32 %v3580, 4294901760
  %v4694 = vsub.f32 %v3580, %v4693
  %v4695 = vand.u32 %v4694, 4294901760
  %4696 = vmatmul.f32.gmra.mxu0 %v4695
  %v4697 = vpop.f32.mrf.mxu0
  %v4698 = vadd.f32 %v4438, %v4697
  %v4699 = vand.u32 %v3582, 4294901760
  %v4700 = vsub.f32 %v3582, %v4699
  %v4701 = vand.u32 %v4700, 4294901760
  %4702 = vmatmul.f32.gmra.mxu0 %v4701
  %v4703 = vpop.f32.mrf.mxu0
  %v4704 = vadd.f32 %v4443, %v4703
  %4705 = vdwg.mxu0
  %v4706 = vand.u32 %v3599, 4294901760
  %v4707 = vsub.f32 %v3599, %v4706
  %v4708 = vand.u32 %v4707, 4294901760
  %4709 = vmatpush.msra.mxu0 %v4708
  %v4710 = vand.u32 %v3598, 4294901760
  %v4711 = vsub.f32 %v3598, %v4710
  %v4712 = vand.u32 %v4711, 4294901760
  %4713 = vmatpush.msra.mxu0 %v4712
  %v4714 = vand.u32 %v3597, 4294901760
  %v4715 = vsub.f32 %v3597, %v4714
  %v4716 = vand.u32 %v4715, 4294901760
  %4717 = vmatpush.msra.mxu0 %v4716
  %v4718 = vand.u32 %v3596, 4294901760
  %v4719 = vsub.f32 %v3596, %v4718
  %v4720 = vand.u32 %v4719, 4294901760
  %4721 = vmatpush.msra.mxu0 %v4720
  %v4722 = vand.u32 %v3595, 4294901760
  %v4723 = vsub.f32 %v3595, %v4722
  %v4724 = vand.u32 %v4723, 4294901760
  %4725 = vmatpush.msra.mxu0 %v4724
  %v4726 = vand.u32 %v3594, 4294901760
  %v4727 = vsub.f32 %v3594, %v4726
  %v4728 = vand.u32 %v4727, 4294901760
  %4729 = vmatpush.msra.mxu0 %v4728
  %v4730 = vand.u32 %v3593, 4294901760
  %v4731 = vsub.f32 %v3593, %v4730
  %v4732 = vand.u32 %v4731, 4294901760
  %4733 = vmatpush.msra.mxu0 %v4732
  %v4734 = vand.u32 %v3592, 4294901760
  %v4735 = vsub.f32 %v3592, %v4734
  %v4736 = vand.u32 %v4735, 4294901760
  %4737 = vmatpush.msra.mxu0 %v4736
  %v4738 = vand.u32 %v3591, 4294901760
  %v4739 = vsub.f32 %v3591, %v4738
  %v4740 = vand.u32 %v4739, 4294901760
  %4741 = vmatpush.msra.mxu0 %v4740
  %v4742 = vand.u32 %v3590, 4294901760
  %v4743 = vsub.f32 %v3590, %v4742
  %v4744 = vand.u32 %v4743, 4294901760
  %4745 = vmatpush.msra.mxu0 %v4744
  %v4746 = vand.u32 %v3589, 4294901760
  %v4747 = vsub.f32 %v3589, %v4746
  %v4748 = vand.u32 %v4747, 4294901760
  %4749 = vmatpush.msra.mxu0 %v4748
  %v4750 = vand.u32 %v3588, 4294901760
  %v4751 = vsub.f32 %v3588, %v4750
  %v4752 = vand.u32 %v4751, 4294901760
  %4753 = vmatpush.msra.mxu0 %v4752
  %v4754 = vand.u32 %v3587, 4294901760
  %v4755 = vsub.f32 %v3587, %v4754
  %v4756 = vand.u32 %v4755, 4294901760
  %4757 = vmatpush.msra.mxu0 %v4756
  %v4758 = vand.u32 %v3586, 4294901760
  %v4759 = vsub.f32 %v3586, %v4758
  %v4760 = vand.u32 %v4759, 4294901760
  %4761 = vmatpush.msra.mxu0 %v4760
  %v4762 = vand.u32 %v3585, 4294901760
  %v4763 = vsub.f32 %v3585, %v4762
  %v4764 = vand.u32 %v4763, 4294901760
  %4765 = vmatpush.msra.mxu0 %v4764
  %v4766 = vand.u32 %v3584, 4294901760
  %v4767 = vsub.f32 %v3584, %v4766
  %v4768 = vand.u32 %v4767, 4294901760
  %4769 = vmatpush.msra.mxu0 %v4768
  %v4770 = vand.u32 %v3508, 4294901760
  %4771 = vmatmul.f32.gmra.mxu0 %v4770
  %v4772 = vpop.f32.mrf.mxu0
  %v4773 = vadd.f32 %v4482, %v4772
  %v4774 = vand.u32 %v3510, 4294901760
  %4775 = vmatmul.f32.gmra.mxu0 %v4774
  %v4776 = vpop.f32.mrf.mxu0
  %v4777 = vadd.f32 %v4488, %v4776
  %v4778 = vand.u32 %v3512, 4294901760
  %4779 = vmatmul.f32.gmra.mxu0 %v4778
  %v4780 = vpop.f32.mrf.mxu0
  %v4781 = vadd.f32 %v4494, %v4780
  %v4782 = vand.u32 %v3514, 4294901760
  %4783 = vmatmul.f32.gmra.mxu0 %v4782
  %v4784 = vpop.f32.mrf.mxu0
  %v4785 = vadd.f32 %v4500, %v4784
  %v4786 = vand.u32 %v3516, 4294901760
  %4787 = vmatmul.f32.gmra.mxu0 %v4786
  %v4788 = vpop.f32.mrf.mxu0
  %v4789 = vadd.f32 %v4506, %v4788
  %v4790 = vand.u32 %v3518, 4294901760
  %4791 = vmatmul.f32.gmra.mxu0 %v4790
  %v4792 = vpop.f32.mrf.mxu0
  %v4793 = vadd.f32 %v4512, %v4792
  %v4794 = vand.u32 %v3520, 4294901760
  %4795 = vmatmul.f32.gmra.mxu0 %v4794
  %v4796 = vpop.f32.mrf.mxu0
  %v4797 = vadd.f32 %v4518, %v4796
  %v4798 = vand.u32 %v3522, 4294901760
  %4799 = vmatmul.f32.gmra.mxu0 %v4798
  %v4800 = vpop.f32.mrf.mxu0
  %v4801 = vadd.f32 %v4524, %v4800
  %v4802 = vand.u32 %v3524, 4294901760
  %4803 = vmatmul.f32.gmra.mxu0 %v4802
  %v4804 = vpop.f32.mrf.mxu0
  %v4805 = vadd.f32 %v4530, %v4804
  %v4806 = vand.u32 %v3526, 4294901760
  %4807 = vmatmul.f32.gmra.mxu0 %v4806
  %v4808 = vpop.f32.mrf.mxu0
  %v4809 = vadd.f32 %v4536, %v4808
  %v4810 = vand.u32 %v3528, 4294901760
  %4811 = vmatmul.f32.gmra.mxu0 %v4810
  %v4812 = vpop.f32.mrf.mxu0
  %v4813 = vadd.f32 %v4542, %v4812
  %v4814 = vand.u32 %v3530, 4294901760
  %4815 = vmatmul.f32.gmra.mxu0 %v4814
  %v4816 = vpop.f32.mrf.mxu0
  %v4817 = vadd.f32 %v4548, %v4816
  %v4818 = vand.u32 %v3532, 4294901760
  %4819 = vmatmul.f32.gmra.mxu0 %v4818
  %v4820 = vpop.f32.mrf.mxu0
  %v4821 = vadd.f32 %v4554, %v4820
  %v4822 = vand.u32 %v3534, 4294901760
  %4823 = vmatmul.f32.gmra.mxu0 %v4822
  %v4824 = vpop.f32.mrf.mxu0
  %v4825 = vadd.f32 %v4560, %v4824
  %v4826 = vand.u32 %v3536, 4294901760
  %4827 = vmatmul.f32.gmra.mxu0 %v4826
  %v4828 = vpop.f32.mrf.mxu0
  %v4829 = vadd.f32 %v4566, %v4828
  %v4830 = vand.u32 %v3538, 4294901760
  %4831 = vmatmul.f32.gmra.mxu0 %v4830
  %v4832 = vpop.f32.mrf.mxu0
  %v4833 = vadd.f32 %v4572, %v4832
  %v4834 = vand.u32 %v3540, 4294901760
  %4835 = vmatmul.f32.gmra.mxu0 %v4834
  %v4836 = vpop.f32.mrf.mxu0
  %v4837 = vadd.f32 %v4578, %v4836
  %v4838 = vand.u32 %v3542, 4294901760
  %4839 = vmatmul.f32.gmra.mxu0 %v4838
  %v4840 = vpop.f32.mrf.mxu0
  %v4841 = vadd.f32 %v4584, %v4840
  %v4842 = vand.u32 %v3544, 4294901760
  %4843 = vmatmul.f32.gmra.mxu0 %v4842
  %v4844 = vpop.f32.mrf.mxu0
  %v4845 = vadd.f32 %v4590, %v4844
  %v4846 = vand.u32 %v3546, 4294901760
  %4847 = vmatmul.f32.gmra.mxu0 %v4846
  %v4848 = vpop.f32.mrf.mxu0
  %v4849 = vadd.f32 %v4596, %v4848
  %v4850 = vand.u32 %v3548, 4294901760
  %4851 = vmatmul.f32.gmra.mxu0 %v4850
  %v4852 = vpop.f32.mrf.mxu0
  %v4853 = vadd.f32 %v4602, %v4852
  %v4854 = vand.u32 %v3550, 4294901760
  %4855 = vmatmul.f32.gmra.mxu0 %v4854
  %v4856 = vpop.f32.mrf.mxu0
  %v4857 = vadd.f32 %v4608, %v4856
  %v4858 = vand.u32 %v3552, 4294901760
  %4859 = vmatmul.f32.gmra.mxu0 %v4858
  %v4860 = vpop.f32.mrf.mxu0
  %v4861 = vadd.f32 %v4614, %v4860
  %v4862 = vand.u32 %v3554, 4294901760
  %4863 = vmatmul.f32.gmra.mxu0 %v4862
  %v4864 = vpop.f32.mrf.mxu0
  %v4865 = vadd.f32 %v4620, %v4864
  %v4866 = vand.u32 %v3556, 4294901760
  %4867 = vmatmul.f32.gmra.mxu0 %v4866
  %v4868 = vpop.f32.mrf.mxu0
  %v4869 = vadd.f32 %v4626, %v4868
  %v4870 = vand.u32 %v3558, 4294901760
  %4871 = vmatmul.f32.gmra.mxu0 %v4870
  %v4872 = vpop.f32.mrf.mxu0
  %v4873 = vadd.f32 %v4632, %v4872
  %v4874 = vand.u32 %v3560, 4294901760
  %4875 = vmatmul.f32.gmra.mxu0 %v4874
  %v4876 = vpop.f32.mrf.mxu0
  %v4877 = vadd.f32 %v4638, %v4876
  %v4878 = vand.u32 %v3562, 4294901760
  %4879 = vmatmul.f32.gmra.mxu0 %v4878
  %v4880 = vpop.f32.mrf.mxu0
  %v4881 = vadd.f32 %v4644, %v4880
  %v4882 = vand.u32 %v3564, 4294901760
  %4883 = vmatmul.f32.gmra.mxu0 %v4882
  %v4884 = vpop.f32.mrf.mxu0
  %v4885 = vadd.f32 %v4650, %v4884
  %v4886 = vand.u32 %v3566, 4294901760
  %4887 = vmatmul.f32.gmra.mxu0 %v4886
  %v4888 = vpop.f32.mrf.mxu0
  %v4889 = vadd.f32 %v4656, %v4888
  %v4890 = vand.u32 %v3568, 4294901760
  %4891 = vmatmul.f32.gmra.mxu0 %v4890
  %v4892 = vpop.f32.mrf.mxu0
  %v4893 = vadd.f32 %v4662, %v4892
  %v4894 = vand.u32 %v3570, 4294901760
  %4895 = vmatmul.f32.gmra.mxu0 %v4894
  %v4896 = vpop.f32.mrf.mxu0
  %v4897 = vadd.f32 %v4668, %v4896
  %v4898 = vand.u32 %v3572, 4294901760
  %4899 = vmatmul.f32.gmra.mxu0 %v4898
  %v4900 = vpop.f32.mrf.mxu0
  %v4901 = vadd.f32 %v4674, %v4900
  %v4902 = vand.u32 %v3574, 4294901760
  %4903 = vmatmul.f32.gmra.mxu0 %v4902
  %v4904 = vpop.f32.mrf.mxu0
  %v4905 = vadd.f32 %v4680, %v4904
  %v4906 = vand.u32 %v3576, 4294901760
  %4907 = vmatmul.f32.gmra.mxu0 %v4906
  %v4908 = vpop.f32.mrf.mxu0
  %v4909 = vadd.f32 %v4686, %v4908
  %v4910 = vand.u32 %v3578, 4294901760
  %4911 = vmatmul.f32.gmra.mxu0 %v4910
  %v4912 = vpop.f32.mrf.mxu0
  %v4913 = vadd.f32 %v4692, %v4912
  %v4914 = vand.u32 %v3580, 4294901760
  %4915 = vmatmul.f32.gmra.mxu0 %v4914
  %v4916 = vpop.f32.mrf.mxu0
  %v4917 = vadd.f32 %v4698, %v4916
  %v4918 = vand.u32 %v3582, 4294901760
  %4919 = vmatmul.f32.gmra.mxu0 %v4918
  %v4920 = vpop.f32.mrf.mxu0
  %v4921 = vadd.f32 %v4704, %v4920
  %4922 = vdwg.mxu0
  %v4923 = vand.u32 %v3599, 4294901760
  %4924 = vmatpush.msra.mxu0 %v4923
  %v4925 = vand.u32 %v3598, 4294901760
  %4926 = vmatpush.msra.mxu0 %v4925
  %v4927 = vand.u32 %v3597, 4294901760
  %4928 = vmatpush.msra.mxu0 %v4927
  %v4929 = vand.u32 %v3596, 4294901760
  %4930 = vmatpush.msra.mxu0 %v4929
  %v4931 = vand.u32 %v3595, 4294901760
  %4932 = vmatpush.msra.mxu0 %v4931
  %v4933 = vand.u32 %v3594, 4294901760
  %4934 = vmatpush.msra.mxu0 %v4933
  %v4935 = vand.u32 %v3593, 4294901760
  %4936 = vmatpush.msra.mxu0 %v4935
  %v4937 = vand.u32 %v3592, 4294901760
  %4938 = vmatpush.msra.mxu0 %v4937
  %v4939 = vand.u32 %v3591, 4294901760
  %4940 = vmatpush.msra.mxu0 %v4939
  %v4941 = vand.u32 %v3590, 4294901760
  %4942 = vmatpush.msra.mxu0 %v4941
  %v4943 = vand.u32 %v3589, 4294901760
  %4944 = vmatpush.msra.mxu0 %v4943
  %v4945 = vand.u32 %v3588, 4294901760
  %4946 = vmatpush.msra.mxu0 %v4945
  %v4947 = vand.u32 %v3587, 4294901760
  %4948 = vmatpush.msra.mxu0 %v4947
  %v4949 = vand.u32 %v3586, 4294901760
  %4950 = vmatpush.msra.mxu0 %v4949
  %v4951 = vand.u32 %v3585, 4294901760
  %4952 = vmatpush.msra.mxu0 %v4951
  %v4953 = vand.u32 %v3584, 4294901760
  %4954 = vmatpush.msra.mxu0 %v4953
  %v4955 = vand.u32 %v3508, 4294901760
  %4956 = vmatmul.f32.gmra.mxu0 %v4955
  %v4957 = vpop.f32.mrf.mxu0
  %v4958 = vadd.f32 %v4773, %v4957
  %v4959 = vand.u32 %v3510, 4294901760
  %4960 = vmatmul.f32.gmra.mxu0 %v4959
  %v4961 = vpop.f32.mrf.mxu0
  %v4962 = vadd.f32 %v4777, %v4961
  %v4963 = vand.u32 %v3512, 4294901760
  %4964 = vmatmul.f32.gmra.mxu0 %v4963
  %v4965 = vpop.f32.mrf.mxu0
  %v4966 = vadd.f32 %v4781, %v4965
  %v4967 = vand.u32 %v3514, 4294901760
  %4968 = vmatmul.f32.gmra.mxu0 %v4967
  %v4969 = vpop.f32.mrf.mxu0
  %v4970 = vadd.f32 %v4785, %v4969
  %v4971 = vand.u32 %v3516, 4294901760
  %4972 = vmatmul.f32.gmra.mxu0 %v4971
  %v4973 = vpop.f32.mrf.mxu0
  %v4974 = vadd.f32 %v4789, %v4973
  %v4975 = vand.u32 %v3518, 4294901760
  %4976 = vmatmul.f32.gmra.mxu0 %v4975
  %v4977 = vpop.f32.mrf.mxu0
  %v4978 = vadd.f32 %v4793, %v4977
  %v4979 = vand.u32 %v3520, 4294901760
  %4980 = vmatmul.f32.gmra.mxu0 %v4979
  %v4981 = vpop.f32.mrf.mxu0
  %v4982 = vadd.f32 %v4797, %v4981
  %v4983 = vand.u32 %v3522, 4294901760
  %4984 = vmatmul.f32.gmra.mxu0 %v4983
  %v4985 = vpop.f32.mrf.mxu0
  %v4986 = vadd.f32 %v4801, %v4985
  %v4987 = vand.u32 %v3524, 4294901760
  %4988 = vmatmul.f32.gmra.mxu0 %v4987
  %v4989 = vpop.f32.mrf.mxu0
  %v4990 = vadd.f32 %v4805, %v4989
  %v4991 = vand.u32 %v3526, 4294901760
  %4992 = vmatmul.f32.gmra.mxu0 %v4991
  %v4993 = vpop.f32.mrf.mxu0
  %v4994 = vadd.f32 %v4809, %v4993
  %v4995 = vand.u32 %v3528, 4294901760
  %4996 = vmatmul.f32.gmra.mxu0 %v4995
  %v4997 = vpop.f32.mrf.mxu0
  %v4998 = vadd.f32 %v4813, %v4997
  %v4999 = vand.u32 %v3530, 4294901760
  %5000 = vmatmul.f32.gmra.mxu0 %v4999
  %v5001 = vpop.f32.mrf.mxu0
  %v5002 = vadd.f32 %v4817, %v5001
  %v5003 = vand.u32 %v3532, 4294901760
  %5004 = vmatmul.f32.gmra.mxu0 %v5003
  %v5005 = vpop.f32.mrf.mxu0
  %v5006 = vadd.f32 %v4821, %v5005
  %v5007 = vand.u32 %v3534, 4294901760
  %5008 = vmatmul.f32.gmra.mxu0 %v5007
  %v5009 = vpop.f32.mrf.mxu0
  %v5010 = vadd.f32 %v4825, %v5009
  %v5011 = vand.u32 %v3536, 4294901760
  %5012 = vmatmul.f32.gmra.mxu0 %v5011
  %v5013 = vpop.f32.mrf.mxu0
  %v5014 = vadd.f32 %v4829, %v5013
  %v5015 = vand.u32 %v3538, 4294901760
  %5016 = vmatmul.f32.gmra.mxu0 %v5015
  %v5017 = vpop.f32.mrf.mxu0
  %v5018 = vadd.f32 %v4833, %v5017
  %v5019 = vand.u32 %v3540, 4294901760
  %5020 = vmatmul.f32.gmra.mxu0 %v5019
  %v5021 = vpop.f32.mrf.mxu0
  %v5022 = vadd.f32 %v4837, %v5021
  %v5023 = vand.u32 %v3542, 4294901760
  %5024 = vmatmul.f32.gmra.mxu0 %v5023
  %v5025 = vpop.f32.mrf.mxu0
  %v5026 = vadd.f32 %v4841, %v5025
  %v5027 = vand.u32 %v3544, 4294901760
  %5028 = vmatmul.f32.gmra.mxu0 %v5027
  %v5029 = vpop.f32.mrf.mxu0
  %v5030 = vadd.f32 %v4845, %v5029
  %v5031 = vand.u32 %v3546, 4294901760
  %5032 = vmatmul.f32.gmra.mxu0 %v5031
  %v5033 = vpop.f32.mrf.mxu0
  %v5034 = vadd.f32 %v4849, %v5033
  %v5035 = vand.u32 %v3548, 4294901760
  %5036 = vmatmul.f32.gmra.mxu0 %v5035
  %v5037 = vpop.f32.mrf.mxu0
  %v5038 = vadd.f32 %v4853, %v5037
  %v5039 = vand.u32 %v3550, 4294901760
  %5040 = vmatmul.f32.gmra.mxu0 %v5039
  %v5041 = vpop.f32.mrf.mxu0
  %v5042 = vadd.f32 %v4857, %v5041
  %v5043 = vand.u32 %v3552, 4294901760
  %5044 = vmatmul.f32.gmra.mxu0 %v5043
  %v5045 = vpop.f32.mrf.mxu0
  %v5046 = vadd.f32 %v4861, %v5045
  %v5047 = vand.u32 %v3554, 4294901760
  %5048 = vmatmul.f32.gmra.mxu0 %v5047
  %v5049 = vpop.f32.mrf.mxu0
  %v5050 = vadd.f32 %v4865, %v5049
  %v5051 = vand.u32 %v3556, 4294901760
  %5052 = vmatmul.f32.gmra.mxu0 %v5051
  %v5053 = vpop.f32.mrf.mxu0
  %v5054 = vadd.f32 %v4869, %v5053
  %v5055 = vand.u32 %v3558, 4294901760
  %5056 = vmatmul.f32.gmra.mxu0 %v5055
  %v5057 = vpop.f32.mrf.mxu0
  %v5058 = vadd.f32 %v4873, %v5057
  %v5059 = vand.u32 %v3560, 4294901760
  %5060 = vmatmul.f32.gmra.mxu0 %v5059
  %v5061 = vpop.f32.mrf.mxu0
  %v5062 = vadd.f32 %v4877, %v5061
  %v5063 = vand.u32 %v3562, 4294901760
  %5064 = vmatmul.f32.gmra.mxu0 %v5063
  %v5065 = vpop.f32.mrf.mxu0
  %v5066 = vadd.f32 %v4881, %v5065
  %v5067 = vand.u32 %v3564, 4294901760
  %5068 = vmatmul.f32.gmra.mxu0 %v5067
  %v5069 = vpop.f32.mrf.mxu0
  %v5070 = vadd.f32 %v4885, %v5069
  %v5071 = vand.u32 %v3566, 4294901760
  %5072 = vmatmul.f32.gmra.mxu0 %v5071
  %v5073 = vpop.f32.mrf.mxu0
  %v5074 = vadd.f32 %v4889, %v5073
  %v5075 = vand.u32 %v3568, 4294901760
  %5076 = vmatmul.f32.gmra.mxu0 %v5075
  %v5077 = vpop.f32.mrf.mxu0
  %v5078 = vadd.f32 %v4893, %v5077
  %v5079 = vand.u32 %v3570, 4294901760
  %5080 = vmatmul.f32.gmra.mxu0 %v5079
  %v5081 = vpop.f32.mrf.mxu0
  %v5082 = vadd.f32 %v4897, %v5081
  %v5083 = vand.u32 %v3572, 4294901760
  %5084 = vmatmul.f32.gmra.mxu0 %v5083
  %v5085 = vpop.f32.mrf.mxu0
  %v5086 = vadd.f32 %v4901, %v5085
  %v5087 = vand.u32 %v3574, 4294901760
  %5088 = vmatmul.f32.gmra.mxu0 %v5087
  %v5089 = vpop.f32.mrf.mxu0
  %v5090 = vadd.f32 %v4905, %v5089
  %v5091 = vand.u32 %v3576, 4294901760
  %5092 = vmatmul.f32.gmra.mxu0 %v5091
  %v5093 = vpop.f32.mrf.mxu0
  %v5094 = vadd.f32 %v4909, %v5093
  %v5095 = vand.u32 %v3578, 4294901760
  %5096 = vmatmul.f32.gmra.mxu0 %v5095
  %v5097 = vpop.f32.mrf.mxu0
  %v5098 = vadd.f32 %v4913, %v5097
  %v5099 = vand.u32 %v3580, 4294901760
  %5100 = vmatmul.f32.gmra.mxu0 %v5099
  %v5101 = vpop.f32.mrf.mxu0
  %v5102 = vadd.f32 %v4917, %v5101
  %v5103 = vand.u32 %v3582, 4294901760
  %5104 = vmatmul.f32.gmra.mxu0 %v5103
  %v5105 = vpop.f32.mrf.mxu0
  %v5106 = vadd.f32 %v4921, %v5105
  %5107 = vdwg.mxu0
  %v5108 = vand.u32 %v3615, 4294901760
  %5109 = vmatpush.msra.mxu0 %v5108
  %v5110 = vand.u32 %v3614, 4294901760
  %5111 = vmatpush.msra.mxu0 %v5110
  %v5112 = vand.u32 %v3613, 4294901760
  %5113 = vmatpush.msra.mxu0 %v5112
  %v5114 = vand.u32 %v3612, 4294901760
  %5115 = vmatpush.msra.mxu0 %v5114
  %v5116 = vand.u32 %v3611, 4294901760
  %5117 = vmatpush.msra.mxu0 %v5116
  %v5118 = vand.u32 %v3610, 4294901760
  %5119 = vmatpush.msra.mxu0 %v5118
  %v5120 = vand.u32 %v3609, 4294901760
  %5121 = vmatpush.msra.mxu0 %v5120
  %v5122 = vand.u32 %v3608, 4294901760
  %5123 = vmatpush.msra.mxu0 %v5122
  %v5124 = vand.u32 %v3607, 4294901760
  %5125 = vmatpush.msra.mxu0 %v5124
  %v5126 = vand.u32 %v3606, 4294901760
  %5127 = vmatpush.msra.mxu0 %v5126
  %v5128 = vand.u32 %v3605, 4294901760
  %5129 = vmatpush.msra.mxu0 %v5128
  %v5130 = vand.u32 %v3604, 4294901760
  %5131 = vmatpush.msra.mxu0 %v5130
  %v5132 = vand.u32 %v3603, 4294901760
  %5133 = vmatpush.msra.mxu0 %v5132
  %v5134 = vand.u32 %v3602, 4294901760
  %5135 = vmatpush.msra.mxu0 %v5134
  %v5136 = vand.u32 %v3601, 4294901760
  %5137 = vmatpush.msra.mxu0 %v5136
  %v5138 = vand.u32 %v3600, 4294901760
  %5139 = vmatpush.msra.mxu0 %v5138
  %v5140 = vand.u32 %v3509, 4294901760
  %v5141 = vsub.f32 %v3509, %v5140
  %v5142 = vand.u32 %v5141, 4294901760
  %v5143 = vsub.f32 %v5141, %v5142
  %v5144 = vand.u32 %v5143, 4294901760
  %5145 = vmatmul.f32.gmra.mxu0 %v5144
  %v5146 = vpop.f32.mrf.mxu0
  %v5147 = vadd.f32 %v4958, %v5146
  %v5148 = vand.u32 %v3511, 4294901760
  %v5149 = vsub.f32 %v3511, %v5148
  %v5150 = vand.u32 %v5149, 4294901760
  %v5151 = vsub.f32 %v5149, %v5150
  %v5152 = vand.u32 %v5151, 4294901760
  %5153 = vmatmul.f32.gmra.mxu0 %v5152
  %v5154 = vpop.f32.mrf.mxu0
  %v5155 = vadd.f32 %v4962, %v5154
  %v5156 = vand.u32 %v3513, 4294901760
  %v5157 = vsub.f32 %v3513, %v5156
  %v5158 = vand.u32 %v5157, 4294901760
  %v5159 = vsub.f32 %v5157, %v5158
  %v5160 = vand.u32 %v5159, 4294901760
  %5161 = vmatmul.f32.gmra.mxu0 %v5160
  %v5162 = vpop.f32.mrf.mxu0
  %v5163 = vadd.f32 %v4966, %v5162
  %v5164 = vand.u32 %v3515, 4294901760
  %v5165 = vsub.f32 %v3515, %v5164
  %v5166 = vand.u32 %v5165, 4294901760
  %v5167 = vsub.f32 %v5165, %v5166
  %v5168 = vand.u32 %v5167, 4294901760
  %5169 = vmatmul.f32.gmra.mxu0 %v5168
  %v5170 = vpop.f32.mrf.mxu0
  %v5171 = vadd.f32 %v4970, %v5170
  %v5172 = vand.u32 %v3517, 4294901760
  %v5173 = vsub.f32 %v3517, %v5172
  %v5174 = vand.u32 %v5173, 4294901760
  %v5175 = vsub.f32 %v5173, %v5174
  %v5176 = vand.u32 %v5175, 4294901760
  %5177 = vmatmul.f32.gmra.mxu0 %v5176
  %v5178 = vpop.f32.mrf.mxu0
  %v5179 = vadd.f32 %v4974, %v5178
  %v5180 = vand.u32 %v3519, 4294901760
  %v5181 = vsub.f32 %v3519, %v5180
  %v5182 = vand.u32 %v5181, 4294901760
  %v5183 = vsub.f32 %v5181, %v5182
  %v5184 = vand.u32 %v5183, 4294901760
  %5185 = vmatmul.f32.gmra.mxu0 %v5184
  %v5186 = vpop.f32.mrf.mxu0
  %v5187 = vadd.f32 %v4978, %v5186
  %v5188 = vand.u32 %v3521, 4294901760
  %v5189 = vsub.f32 %v3521, %v5188
  %v5190 = vand.u32 %v5189, 4294901760
  %v5191 = vsub.f32 %v5189, %v5190
  %v5192 = vand.u32 %v5191, 4294901760
  %5193 = vmatmul.f32.gmra.mxu0 %v5192
  %v5194 = vpop.f32.mrf.mxu0
  %v5195 = vadd.f32 %v4982, %v5194
  %v5196 = vand.u32 %v3523, 4294901760
  %v5197 = vsub.f32 %v3523, %v5196
  %v5198 = vand.u32 %v5197, 4294901760
  %v5199 = vsub.f32 %v5197, %v5198
  %v5200 = vand.u32 %v5199, 4294901760
  %5201 = vmatmul.f32.gmra.mxu0 %v5200
  %v5202 = vpop.f32.mrf.mxu0
  %v5203 = vadd.f32 %v4986, %v5202
  %v5204 = vand.u32 %v3525, 4294901760
  %v5205 = vsub.f32 %v3525, %v5204
  %v5206 = vand.u32 %v5205, 4294901760
  %v5207 = vsub.f32 %v5205, %v5206
  %v5208 = vand.u32 %v5207, 4294901760
  %5209 = vmatmul.f32.gmra.mxu0 %v5208
  %v5210 = vpop.f32.mrf.mxu0
  %v5211 = vadd.f32 %v4990, %v5210
  %v5212 = vand.u32 %v3527, 4294901760
  %v5213 = vsub.f32 %v3527, %v5212
  %v5214 = vand.u32 %v5213, 4294901760
  %v5215 = vsub.f32 %v5213, %v5214
  %v5216 = vand.u32 %v5215, 4294901760
  %5217 = vmatmul.f32.gmra.mxu0 %v5216
  %v5218 = vpop.f32.mrf.mxu0
  %v5219 = vadd.f32 %v4994, %v5218
  %v5220 = vand.u32 %v3529, 4294901760
  %v5221 = vsub.f32 %v3529, %v5220
  %v5222 = vand.u32 %v5221, 4294901760
  %v5223 = vsub.f32 %v5221, %v5222
  %v5224 = vand.u32 %v5223, 4294901760
  %5225 = vmatmul.f32.gmra.mxu0 %v5224
  %v5226 = vpop.f32.mrf.mxu0
  %v5227 = vadd.f32 %v4998, %v5226
  %v5228 = vand.u32 %v3531, 4294901760
  %v5229 = vsub.f32 %v3531, %v5228
  %v5230 = vand.u32 %v5229, 4294901760
  %v5231 = vsub.f32 %v5229, %v5230
  %v5232 = vand.u32 %v5231, 4294901760
  %5233 = vmatmul.f32.gmra.mxu0 %v5232
  %v5234 = vpop.f32.mrf.mxu0
  %v5235 = vadd.f32 %v5002, %v5234
  %v5236 = vand.u32 %v3533, 4294901760
  %v5237 = vsub.f32 %v3533, %v5236
  %v5238 = vand.u32 %v5237, 4294901760
  %v5239 = vsub.f32 %v5237, %v5238
  %v5240 = vand.u32 %v5239, 4294901760
  %5241 = vmatmul.f32.gmra.mxu0 %v5240
  %v5242 = vpop.f32.mrf.mxu0
  %v5243 = vadd.f32 %v5006, %v5242
  %v5244 = vand.u32 %v3535, 4294901760
  %v5245 = vsub.f32 %v3535, %v5244
  %v5246 = vand.u32 %v5245, 4294901760
  %v5247 = vsub.f32 %v5245, %v5246
  %v5248 = vand.u32 %v5247, 4294901760
  %5249 = vmatmul.f32.gmra.mxu0 %v5248
  %v5250 = vpop.f32.mrf.mxu0
  %v5251 = vadd.f32 %v5010, %v5250
  %v5252 = vand.u32 %v3537, 4294901760
  %v5253 = vsub.f32 %v3537, %v5252
  %v5254 = vand.u32 %v5253, 4294901760
  %v5255 = vsub.f32 %v5253, %v5254
  %v5256 = vand.u32 %v5255, 4294901760
  %5257 = vmatmul.f32.gmra.mxu0 %v5256
  %v5258 = vpop.f32.mrf.mxu0
  %v5259 = vadd.f32 %v5014, %v5258
  %v5260 = vand.u32 %v3539, 4294901760
  %v5261 = vsub.f32 %v3539, %v5260
  %v5262 = vand.u32 %v5261, 4294901760
  %v5263 = vsub.f32 %v5261, %v5262
  %v5264 = vand.u32 %v5263, 4294901760
  %5265 = vmatmul.f32.gmra.mxu0 %v5264
  %v5266 = vpop.f32.mrf.mxu0
  %v5267 = vadd.f32 %v5018, %v5266
  %v5268 = vand.u32 %v3541, 4294901760
  %v5269 = vsub.f32 %v3541, %v5268
  %v5270 = vand.u32 %v5269, 4294901760
  %v5271 = vsub.f32 %v5269, %v5270
  %v5272 = vand.u32 %v5271, 4294901760
  %5273 = vmatmul.f32.gmra.mxu0 %v5272
  %v5274 = vpop.f32.mrf.mxu0
  %v5275 = vadd.f32 %v5022, %v5274
  %v5276 = vand.u32 %v3543, 4294901760
  %v5277 = vsub.f32 %v3543, %v5276
  %v5278 = vand.u32 %v5277, 4294901760
  %v5279 = vsub.f32 %v5277, %v5278
  %v5280 = vand.u32 %v5279, 4294901760
  %5281 = vmatmul.f32.gmra.mxu0 %v5280
  %v5282 = vpop.f32.mrf.mxu0
  %v5283 = vadd.f32 %v5026, %v5282
  %v5284 = vand.u32 %v3545, 4294901760
  %v5285 = vsub.f32 %v3545, %v5284
  %v5286 = vand.u32 %v5285, 4294901760
  %v5287 = vsub.f32 %v5285, %v5286
  %v5288 = vand.u32 %v5287, 4294901760
  %5289 = vmatmul.f32.gmra.mxu0 %v5288
  %v5290 = vpop.f32.mrf.mxu0
  %v5291 = vadd.f32 %v5030, %v5290
  %v5292 = vand.u32 %v3547, 4294901760
  %v5293 = vsub.f32 %v3547, %v5292
  %v5294 = vand.u32 %v5293, 4294901760
  %v5295 = vsub.f32 %v5293, %v5294
  %v5296 = vand.u32 %v5295, 4294901760
  %5297 = vmatmul.f32.gmra.mxu0 %v5296
  %v5298 = vpop.f32.mrf.mxu0
  %v5299 = vadd.f32 %v5034, %v5298
  %v5300 = vand.u32 %v3549, 4294901760
  %v5301 = vsub.f32 %v3549, %v5300
  %v5302 = vand.u32 %v5301, 4294901760
  %v5303 = vsub.f32 %v5301, %v5302
  %v5304 = vand.u32 %v5303, 4294901760
  %5305 = vmatmul.f32.gmra.mxu0 %v5304
  %v5306 = vpop.f32.mrf.mxu0
  %v5307 = vadd.f32 %v5038, %v5306
  %v5308 = vand.u32 %v3551, 4294901760
  %v5309 = vsub.f32 %v3551, %v5308
  %v5310 = vand.u32 %v5309, 4294901760
  %v5311 = vsub.f32 %v5309, %v5310
  %v5312 = vand.u32 %v5311, 4294901760
  %5313 = vmatmul.f32.gmra.mxu0 %v5312
  %v5314 = vpop.f32.mrf.mxu0
  %v5315 = vadd.f32 %v5042, %v5314
  %v5316 = vand.u32 %v3553, 4294901760
  %v5317 = vsub.f32 %v3553, %v5316
  %v5318 = vand.u32 %v5317, 4294901760
  %v5319 = vsub.f32 %v5317, %v5318
  %v5320 = vand.u32 %v5319, 4294901760
  %5321 = vmatmul.f32.gmra.mxu0 %v5320
  %v5322 = vpop.f32.mrf.mxu0
  %v5323 = vadd.f32 %v5046, %v5322
  %v5324 = vand.u32 %v3555, 4294901760
  %v5325 = vsub.f32 %v3555, %v5324
  %v5326 = vand.u32 %v5325, 4294901760
  %v5327 = vsub.f32 %v5325, %v5326
  %v5328 = vand.u32 %v5327, 4294901760
  %5329 = vmatmul.f32.gmra.mxu0 %v5328
  %v5330 = vpop.f32.mrf.mxu0
  %v5331 = vadd.f32 %v5050, %v5330
  %v5332 = vand.u32 %v3557, 4294901760
  %v5333 = vsub.f32 %v3557, %v5332
  %v5334 = vand.u32 %v5333, 4294901760
  %v5335 = vsub.f32 %v5333, %v5334
  %v5336 = vand.u32 %v5335, 4294901760
  %5337 = vmatmul.f32.gmra.mxu0 %v5336
  %v5338 = vpop.f32.mrf.mxu0
  %v5339 = vadd.f32 %v5054, %v5338
  %v5340 = vand.u32 %v3559, 4294901760
  %v5341 = vsub.f32 %v3559, %v5340
  %v5342 = vand.u32 %v5341, 4294901760
  %v5343 = vsub.f32 %v5341, %v5342
  %v5344 = vand.u32 %v5343, 4294901760
  %5345 = vmatmul.f32.gmra.mxu0 %v5344
  %v5346 = vpop.f32.mrf.mxu0
  %v5347 = vadd.f32 %v5058, %v5346
  %v5348 = vand.u32 %v3561, 4294901760
  %v5349 = vsub.f32 %v3561, %v5348
  %v5350 = vand.u32 %v5349, 4294901760
  %v5351 = vsub.f32 %v5349, %v5350
  %v5352 = vand.u32 %v5351, 4294901760
  %5353 = vmatmul.f32.gmra.mxu0 %v5352
  %v5354 = vpop.f32.mrf.mxu0
  %v5355 = vadd.f32 %v5062, %v5354
  %v5356 = vand.u32 %v3563, 4294901760
  %v5357 = vsub.f32 %v3563, %v5356
  %v5358 = vand.u32 %v5357, 4294901760
  %v5359 = vsub.f32 %v5357, %v5358
  %v5360 = vand.u32 %v5359, 4294901760
  %5361 = vmatmul.f32.gmra.mxu0 %v5360
  %v5362 = vpop.f32.mrf.mxu0
  %v5363 = vadd.f32 %v5066, %v5362
  %v5364 = vand.u32 %v3565, 4294901760
  %v5365 = vsub.f32 %v3565, %v5364
  %v5366 = vand.u32 %v5365, 4294901760
  %v5367 = vsub.f32 %v5365, %v5366
  %v5368 = vand.u32 %v5367, 4294901760
  %5369 = vmatmul.f32.gmra.mxu0 %v5368
  %v5370 = vpop.f32.mrf.mxu0
  %v5371 = vadd.f32 %v5070, %v5370
  %v5372 = vand.u32 %v3567, 4294901760
  %v5373 = vsub.f32 %v3567, %v5372
  %v5374 = vand.u32 %v5373, 4294901760
  %v5375 = vsub.f32 %v5373, %v5374
  %v5376 = vand.u32 %v5375, 4294901760
  %5377 = vmatmul.f32.gmra.mxu0 %v5376
  %v5378 = vpop.f32.mrf.mxu0
  %v5379 = vadd.f32 %v5074, %v5378
  %v5380 = vand.u32 %v3569, 4294901760
  %v5381 = vsub.f32 %v3569, %v5380
  %v5382 = vand.u32 %v5381, 4294901760
  %v5383 = vsub.f32 %v5381, %v5382
  %v5384 = vand.u32 %v5383, 4294901760
  %5385 = vmatmul.f32.gmra.mxu0 %v5384
  %v5386 = vpop.f32.mrf.mxu0
  %v5387 = vadd.f32 %v5078, %v5386
  %v5388 = vand.u32 %v3571, 4294901760
  %v5389 = vsub.f32 %v3571, %v5388
  %v5390 = vand.u32 %v5389, 4294901760
  %v5391 = vsub.f32 %v5389, %v5390
  %v5392 = vand.u32 %v5391, 4294901760
  %5393 = vmatmul.f32.gmra.mxu0 %v5392
  %v5394 = vpop.f32.mrf.mxu0
  %v5395 = vadd.f32 %v5082, %v5394
  %v5396 = vand.u32 %v3573, 4294901760
  %v5397 = vsub.f32 %v3573, %v5396
  %v5398 = vand.u32 %v5397, 4294901760
  %v5399 = vsub.f32 %v5397, %v5398
  %v5400 = vand.u32 %v5399, 4294901760
  %5401 = vmatmul.f32.gmra.mxu0 %v5400
  %v5402 = vpop.f32.mrf.mxu0
  %v5403 = vadd.f32 %v5086, %v5402
  %v5404 = vand.u32 %v3575, 4294901760
  %v5405 = vsub.f32 %v3575, %v5404
  %v5406 = vand.u32 %v5405, 4294901760
  %v5407 = vsub.f32 %v5405, %v5406
  %v5408 = vand.u32 %v5407, 4294901760
  %5409 = vmatmul.f32.gmra.mxu0 %v5408
  %v5410 = vpop.f32.mrf.mxu0
  %v5411 = vadd.f32 %v5090, %v5410
  %v5412 = vand.u32 %v3577, 4294901760
  %v5413 = vsub.f32 %v3577, %v5412
  %v5414 = vand.u32 %v5413, 4294901760
  %v5415 = vsub.f32 %v5413, %v5414
  %v5416 = vand.u32 %v5415, 4294901760
  %5417 = vmatmul.f32.gmra.mxu0 %v5416
  %v5418 = vpop.f32.mrf.mxu0
  %v5419 = vadd.f32 %v5094, %v5418
  %v5420 = vand.u32 %v3579, 4294901760
  %v5421 = vsub.f32 %v3579, %v5420
  %v5422 = vand.u32 %v5421, 4294901760
  %v5423 = vsub.f32 %v5421, %v5422
  %v5424 = vand.u32 %v5423, 4294901760
  %5425 = vmatmul.f32.gmra.mxu0 %v5424
  %v5426 = vpop.f32.mrf.mxu0
  %v5427 = vadd.f32 %v5098, %v5426
  %v5428 = vand.u32 %v3581, 4294901760
  %v5429 = vsub.f32 %v3581, %v5428
  %v5430 = vand.u32 %v5429, 4294901760
  %v5431 = vsub.f32 %v5429, %v5430
  %v5432 = vand.u32 %v5431, 4294901760
  %5433 = vmatmul.f32.gmra.mxu0 %v5432
  %v5434 = vpop.f32.mrf.mxu0
  %v5435 = vadd.f32 %v5102, %v5434
  %v5436 = vand.u32 %v3583, 4294901760
  %v5437 = vsub.f32 %v3583, %v5436
  %v5438 = vand.u32 %v5437, 4294901760
  %v5439 = vsub.f32 %v5437, %v5438
  %v5440 = vand.u32 %v5439, 4294901760
  %5441 = vmatmul.f32.gmra.mxu0 %v5440
  %v5442 = vpop.f32.mrf.mxu0
  %v5443 = vadd.f32 %v5106, %v5442
  %5444 = vdwg.mxu0
  %v5445 = vand.u32 %v3615, 4294901760
  %v5446 = vsub.f32 %v3615, %v5445
  %v5447 = vand.u32 %v5446, 4294901760
  %v5448 = vsub.f32 %v5446, %v5447
  %v5449 = vand.u32 %v5448, 4294901760
  %5450 = vmatpush.msra.mxu0 %v5449
  %v5451 = vand.u32 %v3614, 4294901760
  %v5452 = vsub.f32 %v3614, %v5451
  %v5453 = vand.u32 %v5452, 4294901760
  %v5454 = vsub.f32 %v5452, %v5453
  %v5455 = vand.u32 %v5454, 4294901760
  %5456 = vmatpush.msra.mxu0 %v5455
  %v5457 = vand.u32 %v3613, 4294901760
  %v5458 = vsub.f32 %v3613, %v5457
  %v5459 = vand.u32 %v5458, 4294901760
  %v5460 = vsub.f32 %v5458, %v5459
  %v5461 = vand.u32 %v5460, 4294901760
  %5462 = vmatpush.msra.mxu0 %v5461
  %v5463 = vand.u32 %v3612, 4294901760
  %v5464 = vsub.f32 %v3612, %v5463
  %v5465 = vand.u32 %v5464, 4294901760
  %v5466 = vsub.f32 %v5464, %v5465
  %v5467 = vand.u32 %v5466, 4294901760
  %5468 = vmatpush.msra.mxu0 %v5467
  %v5469 = vand.u32 %v3611, 4294901760
  %v5470 = vsub.f32 %v3611, %v5469
  %v5471 = vand.u32 %v5470, 4294901760
  %v5472 = vsub.f32 %v5470, %v5471
  %v5473 = vand.u32 %v5472, 4294901760
  %5474 = vmatpush.msra.mxu0 %v5473
  %v5475 = vand.u32 %v3610, 4294901760
  %v5476 = vsub.f32 %v3610, %v5475
  %v5477 = vand.u32 %v5476, 4294901760
  %v5478 = vsub.f32 %v5476, %v5477
  %v5479 = vand.u32 %v5478, 4294901760
  %5480 = vmatpush.msra.mxu0 %v5479
  %v5481 = vand.u32 %v3609, 4294901760
  %v5482 = vsub.f32 %v3609, %v5481
  %v5483 = vand.u32 %v5482, 4294901760
  %v5484 = vsub.f32 %v5482, %v5483
  %v5485 = vand.u32 %v5484, 4294901760
  %5486 = vmatpush.msra.mxu0 %v5485
  %v5487 = vand.u32 %v3608, 4294901760
  %v5488 = vsub.f32 %v3608, %v5487
  %v5489 = vand.u32 %v5488, 4294901760
  %v5490 = vsub.f32 %v5488, %v5489
  %v5491 = vand.u32 %v5490, 4294901760
  %5492 = vmatpush.msra.mxu0 %v5491
  %v5493 = vand.u32 %v3607, 4294901760
  %v5494 = vsub.f32 %v3607, %v5493
  %v5495 = vand.u32 %v5494, 4294901760
  %v5496 = vsub.f32 %v5494, %v5495
  %v5497 = vand.u32 %v5496, 4294901760
  %5498 = vmatpush.msra.mxu0 %v5497
  %v5499 = vand.u32 %v3606, 4294901760
  %v5500 = vsub.f32 %v3606, %v5499
  %v5501 = vand.u32 %v5500, 4294901760
  %v5502 = vsub.f32 %v5500, %v5501
  %v5503 = vand.u32 %v5502, 4294901760
  %5504 = vmatpush.msra.mxu0 %v5503
  %v5505 = vand.u32 %v3605, 4294901760
  %v5506 = vsub.f32 %v3605, %v5505
  %v5507 = vand.u32 %v5506, 4294901760
  %v5508 = vsub.f32 %v5506, %v5507
  %v5509 = vand.u32 %v5508, 4294901760
  %5510 = vmatpush.msra.mxu0 %v5509
  %v5511 = vand.u32 %v3604, 4294901760
  %v5512 = vsub.f32 %v3604, %v5511
  %v5513 = vand.u32 %v5512, 4294901760
  %v5514 = vsub.f32 %v5512, %v5513
  %v5515 = vand.u32 %v5514, 4294901760
  %5516 = vmatpush.msra.mxu0 %v5515
  %v5517 = vand.u32 %v3603, 4294901760
  %v5518 = vsub.f32 %v3603, %v5517
  %v5519 = vand.u32 %v5518, 4294901760
  %v5520 = vsub.f32 %v5518, %v5519
  %v5521 = vand.u32 %v5520, 4294901760
  %5522 = vmatpush.msra.mxu0 %v5521
  %v5523 = vand.u32 %v3602, 4294901760
  %v5524 = vsub.f32 %v3602, %v5523
  %v5525 = vand.u32 %v5524, 4294901760
  %v5526 = vsub.f32 %v5524, %v5525
  %v5527 = vand.u32 %v5526, 4294901760
  %5528 = vmatpush.msra.mxu0 %v5527
  %v5529 = vand.u32 %v3601, 4294901760
  %v5530 = vsub.f32 %v3601, %v5529
  %v5531 = vand.u32 %v5530, 4294901760
  %v5532 = vsub.f32 %v5530, %v5531
  %v5533 = vand.u32 %v5532, 4294901760
  %5534 = vmatpush.msra.mxu0 %v5533
  %v5535 = vand.u32 %v3600, 4294901760
  %v5536 = vsub.f32 %v3600, %v5535
  %v5537 = vand.u32 %v5536, 4294901760
  %v5538 = vsub.f32 %v5536, %v5537
  %v5539 = vand.u32 %v5538, 4294901760
  %5540 = vmatpush.msra.mxu0 %v5539
  %v5541 = vand.u32 %v3509, 4294901760
  %5542 = vmatmul.f32.gmra.mxu0 %v5541
  %v5543 = vpop.f32.mrf.mxu0
  %v5544 = vadd.f32 %v5147, %v5543
  %v5545 = vand.u32 %v3511, 4294901760
  %5546 = vmatmul.f32.gmra.mxu0 %v5545
  %v5547 = vpop.f32.mrf.mxu0
  %v5548 = vadd.f32 %v5155, %v5547
  %v5549 = vand.u32 %v3513, 4294901760
  %5550 = vmatmul.f32.gmra.mxu0 %v5549
  %v5551 = vpop.f32.mrf.mxu0
  %v5552 = vadd.f32 %v5163, %v5551
  %v5553 = vand.u32 %v3515, 4294901760
  %5554 = vmatmul.f32.gmra.mxu0 %v5553
  %v5555 = vpop.f32.mrf.mxu0
  %v5556 = vadd.f32 %v5171, %v5555
  %v5557 = vand.u32 %v3517, 4294901760
  %5558 = vmatmul.f32.gmra.mxu0 %v5557
  %v5559 = vpop.f32.mrf.mxu0
  %v5560 = vadd.f32 %v5179, %v5559
  %v5561 = vand.u32 %v3519, 4294901760
  %5562 = vmatmul.f32.gmra.mxu0 %v5561
  %v5563 = vpop.f32.mrf.mxu0
  %v5564 = vadd.f32 %v5187, %v5563
  %v5565 = vand.u32 %v3521, 4294901760
  %5566 = vmatmul.f32.gmra.mxu0 %v5565
  %v5567 = vpop.f32.mrf.mxu0
  %v5568 = vadd.f32 %v5195, %v5567
  %v5569 = vand.u32 %v3523, 4294901760
  %5570 = vmatmul.f32.gmra.mxu0 %v5569
  %v5571 = vpop.f32.mrf.mxu0
  %v5572 = vadd.f32 %v5203, %v5571
  %v5573 = vand.u32 %v3525, 4294901760
  %5574 = vmatmul.f32.gmra.mxu0 %v5573
  %v5575 = vpop.f32.mrf.mxu0
  %v5576 = vadd.f32 %v5211, %v5575
  %v5577 = vand.u32 %v3527, 4294901760
  %5578 = vmatmul.f32.gmra.mxu0 %v5577
  %v5579 = vpop.f32.mrf.mxu0
  %v5580 = vadd.f32 %v5219, %v5579
  %v5581 = vand.u32 %v3529, 4294901760
  %5582 = vmatmul.f32.gmra.mxu0 %v5581
  %v5583 = vpop.f32.mrf.mxu0
  %v5584 = vadd.f32 %v5227, %v5583
  %v5585 = vand.u32 %v3531, 4294901760
  %5586 = vmatmul.f32.gmra.mxu0 %v5585
  %v5587 = vpop.f32.mrf.mxu0
  %v5588 = vadd.f32 %v5235, %v5587
  %v5589 = vand.u32 %v3533, 4294901760
  %5590 = vmatmul.f32.gmra.mxu0 %v5589
  %v5591 = vpop.f32.mrf.mxu0
  %v5592 = vadd.f32 %v5243, %v5591
  %v5593 = vand.u32 %v3535, 4294901760
  %5594 = vmatmul.f32.gmra.mxu0 %v5593
  %v5595 = vpop.f32.mrf.mxu0
  %v5596 = vadd.f32 %v5251, %v5595
  %v5597 = vand.u32 %v3537, 4294901760
  %5598 = vmatmul.f32.gmra.mxu0 %v5597
  %v5599 = vpop.f32.mrf.mxu0
  %v5600 = vadd.f32 %v5259, %v5599
  %v5601 = vand.u32 %v3539, 4294901760
  %5602 = vmatmul.f32.gmra.mxu0 %v5601
  %v5603 = vpop.f32.mrf.mxu0
  %v5604 = vadd.f32 %v5267, %v5603
  %v5605 = vand.u32 %v3541, 4294901760
  %5606 = vmatmul.f32.gmra.mxu0 %v5605
  %v5607 = vpop.f32.mrf.mxu0
  %v5608 = vadd.f32 %v5275, %v5607
  %v5609 = vand.u32 %v3543, 4294901760
  %5610 = vmatmul.f32.gmra.mxu0 %v5609
  %v5611 = vpop.f32.mrf.mxu0
  %v5612 = vadd.f32 %v5283, %v5611
  %v5613 = vand.u32 %v3545, 4294901760
  %5614 = vmatmul.f32.gmra.mxu0 %v5613
  %v5615 = vpop.f32.mrf.mxu0
  %v5616 = vadd.f32 %v5291, %v5615
  %v5617 = vand.u32 %v3547, 4294901760
  %5618 = vmatmul.f32.gmra.mxu0 %v5617
  %v5619 = vpop.f32.mrf.mxu0
  %v5620 = vadd.f32 %v5299, %v5619
  %v5621 = vand.u32 %v3549, 4294901760
  %5622 = vmatmul.f32.gmra.mxu0 %v5621
  %v5623 = vpop.f32.mrf.mxu0
  %v5624 = vadd.f32 %v5307, %v5623
  %v5625 = vand.u32 %v3551, 4294901760
  %5626 = vmatmul.f32.gmra.mxu0 %v5625
  %v5627 = vpop.f32.mrf.mxu0
  %v5628 = vadd.f32 %v5315, %v5627
  %v5629 = vand.u32 %v3553, 4294901760
  %5630 = vmatmul.f32.gmra.mxu0 %v5629
  %v5631 = vpop.f32.mrf.mxu0
  %v5632 = vadd.f32 %v5323, %v5631
  %v5633 = vand.u32 %v3555, 4294901760
  %5634 = vmatmul.f32.gmra.mxu0 %v5633
  %v5635 = vpop.f32.mrf.mxu0
  %v5636 = vadd.f32 %v5331, %v5635
  %v5637 = vand.u32 %v3557, 4294901760
  %5638 = vmatmul.f32.gmra.mxu0 %v5637
  %v5639 = vpop.f32.mrf.mxu0
  %v5640 = vadd.f32 %v5339, %v5639
  %v5641 = vand.u32 %v3559, 4294901760
  %5642 = vmatmul.f32.gmra.mxu0 %v5641
  %v5643 = vpop.f32.mrf.mxu0
  %v5644 = vadd.f32 %v5347, %v5643
  %v5645 = vand.u32 %v3561, 4294901760
  %5646 = vmatmul.f32.gmra.mxu0 %v5645
  %v5647 = vpop.f32.mrf.mxu0
  %v5648 = vadd.f32 %v5355, %v5647
  %v5649 = vand.u32 %v3563, 4294901760
  %5650 = vmatmul.f32.gmra.mxu0 %v5649
  %v5651 = vpop.f32.mrf.mxu0
  %v5652 = vadd.f32 %v5363, %v5651
  %v5653 = vand.u32 %v3565, 4294901760
  %5654 = vmatmul.f32.gmra.mxu0 %v5653
  %v5655 = vpop.f32.mrf.mxu0
  %v5656 = vadd.f32 %v5371, %v5655
  %v5657 = vand.u32 %v3567, 4294901760
  %5658 = vmatmul.f32.gmra.mxu0 %v5657
  %v5659 = vpop.f32.mrf.mxu0
  %v5660 = vadd.f32 %v5379, %v5659
  %v5661 = vand.u32 %v3569, 4294901760
  %5662 = vmatmul.f32.gmra.mxu0 %v5661
  %v5663 = vpop.f32.mrf.mxu0
  %v5664 = vadd.f32 %v5387, %v5663
  %v5665 = vand.u32 %v3571, 4294901760
  %5666 = vmatmul.f32.gmra.mxu0 %v5665
  %v5667 = vpop.f32.mrf.mxu0
  %v5668 = vadd.f32 %v5395, %v5667
  %v5669 = vand.u32 %v3573, 4294901760
  %5670 = vmatmul.f32.gmra.mxu0 %v5669
  %v5671 = vpop.f32.mrf.mxu0
  %v5672 = vadd.f32 %v5403, %v5671
  %v5673 = vand.u32 %v3575, 4294901760
  %5674 = vmatmul.f32.gmra.mxu0 %v5673
  %v5675 = vpop.f32.mrf.mxu0
  %v5676 = vadd.f32 %v5411, %v5675
  %v5677 = vand.u32 %v3577, 4294901760
  %5678 = vmatmul.f32.gmra.mxu0 %v5677
  %v5679 = vpop.f32.mrf.mxu0
  %v5680 = vadd.f32 %v5419, %v5679
  %v5681 = vand.u32 %v3579, 4294901760
  %5682 = vmatmul.f32.gmra.mxu0 %v5681
  %v5683 = vpop.f32.mrf.mxu0
  %v5684 = vadd.f32 %v5427, %v5683
  %v5685 = vand.u32 %v3581, 4294901760
  %5686 = vmatmul.f32.gmra.mxu0 %v5685
  %v5687 = vpop.f32.mrf.mxu0
  %v5688 = vadd.f32 %v5435, %v5687
  %v5689 = vand.u32 %v3583, 4294901760
  %5690 = vmatmul.f32.gmra.mxu0 %v5689
  %v5691 = vpop.f32.mrf.mxu0
  %v5692 = vadd.f32 %v5443, %v5691
  %5693 = vdwg.mxu0
  %v5694 = vand.u32 %v3615, 4294901760
  %v5695 = vsub.f32 %v3615, %v5694
  %5696 = vmatpush.msra.mxu0 %v5695
  %v5697 = vand.u32 %v3614, 4294901760
  %v5698 = vsub.f32 %v3614, %v5697
  %5699 = vmatpush.msra.mxu0 %v5698
  %v5700 = vand.u32 %v3613, 4294901760
  %v5701 = vsub.f32 %v3613, %v5700
  %5702 = vmatpush.msra.mxu0 %v5701
  %v5703 = vand.u32 %v3612, 4294901760
  %v5704 = vsub.f32 %v3612, %v5703
  %5705 = vmatpush.msra.mxu0 %v5704
  %v5706 = vand.u32 %v3611, 4294901760
  %v5707 = vsub.f32 %v3611, %v5706
  %5708 = vmatpush.msra.mxu0 %v5707
  %v5709 = vand.u32 %v3610, 4294901760
  %v5710 = vsub.f32 %v3610, %v5709
  %5711 = vmatpush.msra.mxu0 %v5710
  %v5712 = vand.u32 %v3609, 4294901760
  %v5713 = vsub.f32 %v3609, %v5712
  %5714 = vmatpush.msra.mxu0 %v5713
  %v5715 = vand.u32 %v3608, 4294901760
  %v5716 = vsub.f32 %v3608, %v5715
  %5717 = vmatpush.msra.mxu0 %v5716
  %v5718 = vand.u32 %v3607, 4294901760
  %v5719 = vsub.f32 %v3607, %v5718
  %5720 = vmatpush.msra.mxu0 %v5719
  %v5721 = vand.u32 %v3606, 4294901760
  %v5722 = vsub.f32 %v3606, %v5721
  %5723 = vmatpush.msra.mxu0 %v5722
  %v5724 = vand.u32 %v3605, 4294901760
  %v5725 = vsub.f32 %v3605, %v5724
  %5726 = vmatpush.msra.mxu0 %v5725
  %v5727 = vand.u32 %v3604, 4294901760
  %v5728 = vsub.f32 %v3604, %v5727
  %5729 = vmatpush.msra.mxu0 %v5728
  %v5730 = vand.u32 %v3603, 4294901760
  %v5731 = vsub.f32 %v3603, %v5730
  %5732 = vmatpush.msra.mxu0 %v5731
  %v5733 = vand.u32 %v3602, 4294901760
  %v5734 = vsub.f32 %v3602, %v5733
  %5735 = vmatpush.msra.mxu0 %v5734
  %v5736 = vand.u32 %v3601, 4294901760
  %v5737 = vsub.f32 %v3601, %v5736
  %5738 = vmatpush.msra.mxu0 %v5737
  %v5739 = vand.u32 %v3600, 4294901760
  %v5740 = vsub.f32 %v3600, %v5739
  %5741 = vmatpush.msra.mxu0 %v5740
  %v5742 = vand.u32 %v3509, 4294901760
  %v5743 = vsub.f32 %v3509, %v5742
  %5744 = vmatmul.f32.gmra.mxu0 %v5743
  %v5745 = vpop.f32.mrf.mxu0
  %v5746 = vadd.f32 %v5544, %v5745
  %v5747 = vand.u32 %v3511, 4294901760
  %v5748 = vsub.f32 %v3511, %v5747
  %5749 = vmatmul.f32.gmra.mxu0 %v5748
  %v5750 = vpop.f32.mrf.mxu0
  %v5751 = vadd.f32 %v5548, %v5750
  %v5752 = vand.u32 %v3513, 4294901760
  %v5753 = vsub.f32 %v3513, %v5752
  %5754 = vmatmul.f32.gmra.mxu0 %v5753
  %v5755 = vpop.f32.mrf.mxu0
  %v5756 = vadd.f32 %v5552, %v5755
  %v5757 = vand.u32 %v3515, 4294901760
  %v5758 = vsub.f32 %v3515, %v5757
  %5759 = vmatmul.f32.gmra.mxu0 %v5758
  %v5760 = vpop.f32.mrf.mxu0
  %v5761 = vadd.f32 %v5556, %v5760
  %v5762 = vand.u32 %v3517, 4294901760
  %v5763 = vsub.f32 %v3517, %v5762
  %5764 = vmatmul.f32.gmra.mxu0 %v5763
  %v5765 = vpop.f32.mrf.mxu0
  %v5766 = vadd.f32 %v5560, %v5765
  %v5767 = vand.u32 %v3519, 4294901760
  %v5768 = vsub.f32 %v3519, %v5767
  %5769 = vmatmul.f32.gmra.mxu0 %v5768
  %v5770 = vpop.f32.mrf.mxu0
  %v5771 = vadd.f32 %v5564, %v5770
  %v5772 = vand.u32 %v3521, 4294901760
  %v5773 = vsub.f32 %v3521, %v5772
  %5774 = vmatmul.f32.gmra.mxu0 %v5773
  %v5775 = vpop.f32.mrf.mxu0
  %v5776 = vadd.f32 %v5568, %v5775
  %v5777 = vand.u32 %v3523, 4294901760
  %v5778 = vsub.f32 %v3523, %v5777
  %5779 = vmatmul.f32.gmra.mxu0 %v5778
  %v5780 = vpop.f32.mrf.mxu0
  %v5781 = vadd.f32 %v5572, %v5780
  %v5782 = vand.u32 %v3525, 4294901760
  %v5783 = vsub.f32 %v3525, %v5782
  %5784 = vmatmul.f32.gmra.mxu0 %v5783
  %v5785 = vpop.f32.mrf.mxu0
  %v5786 = vadd.f32 %v5576, %v5785
  %v5787 = vand.u32 %v3527, 4294901760
  %v5788 = vsub.f32 %v3527, %v5787
  %5789 = vmatmul.f32.gmra.mxu0 %v5788
  %v5790 = vpop.f32.mrf.mxu0
  %v5791 = vadd.f32 %v5580, %v5790
  %v5792 = vand.u32 %v3529, 4294901760
  %v5793 = vsub.f32 %v3529, %v5792
  %5794 = vmatmul.f32.gmra.mxu0 %v5793
  %v5795 = vpop.f32.mrf.mxu0
  %v5796 = vadd.f32 %v5584, %v5795
  %v5797 = vand.u32 %v3531, 4294901760
  %v5798 = vsub.f32 %v3531, %v5797
  %5799 = vmatmul.f32.gmra.mxu0 %v5798
  %v5800 = vpop.f32.mrf.mxu0
  %v5801 = vadd.f32 %v5588, %v5800
  %v5802 = vand.u32 %v3533, 4294901760
  %v5803 = vsub.f32 %v3533, %v5802
  %5804 = vmatmul.f32.gmra.mxu0 %v5803
  %v5805 = vpop.f32.mrf.mxu0
  %v5806 = vadd.f32 %v5592, %v5805
  %v5807 = vand.u32 %v3535, 4294901760
  %v5808 = vsub.f32 %v3535, %v5807
  %5809 = vmatmul.f32.gmra.mxu0 %v5808
  %v5810 = vpop.f32.mrf.mxu0
  %v5811 = vadd.f32 %v5596, %v5810
  %v5812 = vand.u32 %v3537, 4294901760
  %v5813 = vsub.f32 %v3537, %v5812
  %5814 = vmatmul.f32.gmra.mxu0 %v5813
  %v5815 = vpop.f32.mrf.mxu0
  %v5816 = vadd.f32 %v5600, %v5815
  %v5817 = vand.u32 %v3539, 4294901760
  %v5818 = vsub.f32 %v3539, %v5817
  %5819 = vmatmul.f32.gmra.mxu0 %v5818
  %v5820 = vpop.f32.mrf.mxu0
  %v5821 = vadd.f32 %v5604, %v5820
  %v5822 = vand.u32 %v3541, 4294901760
  %v5823 = vsub.f32 %v3541, %v5822
  %5824 = vmatmul.f32.gmra.mxu0 %v5823
  %v5825 = vpop.f32.mrf.mxu0
  %v5826 = vadd.f32 %v5608, %v5825
  %v5827 = vand.u32 %v3543, 4294901760
  %v5828 = vsub.f32 %v3543, %v5827
  %5829 = vmatmul.f32.gmra.mxu0 %v5828
  %v5830 = vpop.f32.mrf.mxu0
  %v5831 = vadd.f32 %v5612, %v5830
  %v5832 = vand.u32 %v3545, 4294901760
  %v5833 = vsub.f32 %v3545, %v5832
  %5834 = vmatmul.f32.gmra.mxu0 %v5833
  %v5835 = vpop.f32.mrf.mxu0
  %v5836 = vadd.f32 %v5616, %v5835
  %v5837 = vand.u32 %v3547, 4294901760
  %v5838 = vsub.f32 %v3547, %v5837
  %5839 = vmatmul.f32.gmra.mxu0 %v5838
  %v5840 = vpop.f32.mrf.mxu0
  %v5841 = vadd.f32 %v5620, %v5840
  %v5842 = vand.u32 %v3549, 4294901760
  %v5843 = vsub.f32 %v3549, %v5842
  %5844 = vmatmul.f32.gmra.mxu0 %v5843
  %v5845 = vpop.f32.mrf.mxu0
  %v5846 = vadd.f32 %v5624, %v5845
  %v5847 = vand.u32 %v3551, 4294901760
  %v5848 = vsub.f32 %v3551, %v5847
  %5849 = vmatmul.f32.gmra.mxu0 %v5848
  %v5850 = vpop.f32.mrf.mxu0
  %v5851 = vadd.f32 %v5628, %v5850
  %v5852 = vand.u32 %v3553, 4294901760
  %v5853 = vsub.f32 %v3553, %v5852
  %5854 = vmatmul.f32.gmra.mxu0 %v5853
  %v5855 = vpop.f32.mrf.mxu0
  %v5856 = vadd.f32 %v5632, %v5855
  %v5857 = vand.u32 %v3555, 4294901760
  %v5858 = vsub.f32 %v3555, %v5857
  %5859 = vmatmul.f32.gmra.mxu0 %v5858
  %v5860 = vpop.f32.mrf.mxu0
  %v5861 = vadd.f32 %v5636, %v5860
  %v5862 = vand.u32 %v3557, 4294901760
  %v5863 = vsub.f32 %v3557, %v5862
  %5864 = vmatmul.f32.gmra.mxu0 %v5863
  %v5865 = vpop.f32.mrf.mxu0
  %v5866 = vadd.f32 %v5640, %v5865
  %v5867 = vand.u32 %v3559, 4294901760
  %v5868 = vsub.f32 %v3559, %v5867
  %5869 = vmatmul.f32.gmra.mxu0 %v5868
  %v5870 = vpop.f32.mrf.mxu0
  %v5871 = vadd.f32 %v5644, %v5870
  %v5872 = vand.u32 %v3561, 4294901760
  %v5873 = vsub.f32 %v3561, %v5872
  %5874 = vmatmul.f32.gmra.mxu0 %v5873
  %v5875 = vpop.f32.mrf.mxu0
  %v5876 = vadd.f32 %v5648, %v5875
  %v5877 = vand.u32 %v3563, 4294901760
  %v5878 = vsub.f32 %v3563, %v5877
  %5879 = vmatmul.f32.gmra.mxu0 %v5878
  %v5880 = vpop.f32.mrf.mxu0
  %v5881 = vadd.f32 %v5652, %v5880
  %v5882 = vand.u32 %v3565, 4294901760
  %v5883 = vsub.f32 %v3565, %v5882
  %5884 = vmatmul.f32.gmra.mxu0 %v5883
  %v5885 = vpop.f32.mrf.mxu0
  %v5886 = vadd.f32 %v5656, %v5885
  %v5887 = vand.u32 %v3567, 4294901760
  %v5888 = vsub.f32 %v3567, %v5887
  %5889 = vmatmul.f32.gmra.mxu0 %v5888
  %v5890 = vpop.f32.mrf.mxu0
  %v5891 = vadd.f32 %v5660, %v5890
  %v5892 = vand.u32 %v3569, 4294901760
  %v5893 = vsub.f32 %v3569, %v5892
  %5894 = vmatmul.f32.gmra.mxu0 %v5893
  %v5895 = vpop.f32.mrf.mxu0
  %v5896 = vadd.f32 %v5664, %v5895
  %v5897 = vand.u32 %v3571, 4294901760
  %v5898 = vsub.f32 %v3571, %v5897
  %5899 = vmatmul.f32.gmra.mxu0 %v5898
  %v5900 = vpop.f32.mrf.mxu0
  %v5901 = vadd.f32 %v5668, %v5900
  %v5902 = vand.u32 %v3573, 4294901760
  %v5903 = vsub.f32 %v3573, %v5902
  %5904 = vmatmul.f32.gmra.mxu0 %v5903
  %v5905 = vpop.f32.mrf.mxu0
  %v5906 = vadd.f32 %v5672, %v5905
  %v5907 = vand.u32 %v3575, 4294901760
  %v5908 = vsub.f32 %v3575, %v5907
  %5909 = vmatmul.f32.gmra.mxu0 %v5908
  %v5910 = vpop.f32.mrf.mxu0
  %v5911 = vadd.f32 %v5676, %v5910
  %v5912 = vand.u32 %v3577, 4294901760
  %v5913 = vsub.f32 %v3577, %v5912
  %5914 = vmatmul.f32.gmra.mxu0 %v5913
  %v5915 = vpop.f32.mrf.mxu0
  %v5916 = vadd.f32 %v5680, %v5915
  %v5917 = vand.u32 %v3579, 4294901760
  %v5918 = vsub.f32 %v3579, %v5917
  %5919 = vmatmul.f32.gmra.mxu0 %v5918
  %v5920 = vpop.f32.mrf.mxu0
  %v5921 = vadd.f32 %v5684, %v5920
  %v5922 = vand.u32 %v3581, 4294901760
  %v5923 = vsub.f32 %v3581, %v5922
  %5924 = vmatmul.f32.gmra.mxu0 %v5923
  %v5925 = vpop.f32.mrf.mxu0
  %v5926 = vadd.f32 %v5688, %v5925
  %v5927 = vand.u32 %v3583, 4294901760
  %v5928 = vsub.f32 %v3583, %v5927
  %5929 = vmatmul.f32.gmra.mxu0 %v5928
  %v5930 = vpop.f32.mrf.mxu0
  %v5931 = vadd.f32 %v5692, %v5930
  %5932 = vdwg.mxu0
  %v5933 = vand.u32 %v3615, 4294901760
  %5934 = vmatpush.msra.mxu0 %v5933
  %v5935 = vand.u32 %v3614, 4294901760
  %5936 = vmatpush.msra.mxu0 %v5935
  %v5937 = vand.u32 %v3613, 4294901760
  %5938 = vmatpush.msra.mxu0 %v5937
  %v5939 = vand.u32 %v3612, 4294901760
  %5940 = vmatpush.msra.mxu0 %v5939
  %v5941 = vand.u32 %v3611, 4294901760
  %5942 = vmatpush.msra.mxu0 %v5941
  %v5943 = vand.u32 %v3610, 4294901760
  %5944 = vmatpush.msra.mxu0 %v5943
  %v5945 = vand.u32 %v3609, 4294901760
  %5946 = vmatpush.msra.mxu0 %v5945
  %v5947 = vand.u32 %v3608, 4294901760
  %5948 = vmatpush.msra.mxu0 %v5947
  %v5949 = vand.u32 %v3607, 4294901760
  %5950 = vmatpush.msra.mxu0 %v5949
  %v5951 = vand.u32 %v3606, 4294901760
  %5952 = vmatpush.msra.mxu0 %v5951
  %v5953 = vand.u32 %v3605, 4294901760
  %5954 = vmatpush.msra.mxu0 %v5953
  %v5955 = vand.u32 %v3604, 4294901760
  %5956 = vmatpush.msra.mxu0 %v5955
  %v5957 = vand.u32 %v3603, 4294901760
  %5958 = vmatpush.msra.mxu0 %v5957
  %v5959 = vand.u32 %v3602, 4294901760
  %5960 = vmatpush.msra.mxu0 %v5959
  %v5961 = vand.u32 %v3601, 4294901760
  %5962 = vmatpush.msra.mxu0 %v5961
  %v5963 = vand.u32 %v3600, 4294901760
  %5964 = vmatpush.msra.mxu0 %v5963
  %v5965 = vand.u32 %v3509, 4294901760
  %v5966 = vsub.f32 %v3509, %v5965
  %v5967 = vand.u32 %v5966, 4294901760
  %5968 = vmatmul.f32.gmra.mxu0 %v5967
  %v5969 = vpop.f32.mrf.mxu0
  %v5970 = vadd.f32 %v5746, %v5969
  %v5971 = vand.u32 %v3511, 4294901760
  %v5972 = vsub.f32 %v3511, %v5971
  %v5973 = vand.u32 %v5972, 4294901760
  %5974 = vmatmul.f32.gmra.mxu0 %v5973
  %v5975 = vpop.f32.mrf.mxu0
  %v5976 = vadd.f32 %v5751, %v5975
  %v5977 = vand.u32 %v3513, 4294901760
  %v5978 = vsub.f32 %v3513, %v5977
  %v5979 = vand.u32 %v5978, 4294901760
  %5980 = vmatmul.f32.gmra.mxu0 %v5979
  %v5981 = vpop.f32.mrf.mxu0
  %v5982 = vadd.f32 %v5756, %v5981
  %v5983 = vand.u32 %v3515, 4294901760
  %v5984 = vsub.f32 %v3515, %v5983
  %v5985 = vand.u32 %v5984, 4294901760
  %5986 = vmatmul.f32.gmra.mxu0 %v5985
  %v5987 = vpop.f32.mrf.mxu0
  %v5988 = vadd.f32 %v5761, %v5987
  %v5989 = vand.u32 %v3517, 4294901760
  %v5990 = vsub.f32 %v3517, %v5989
  %v5991 = vand.u32 %v5990, 4294901760
  %5992 = vmatmul.f32.gmra.mxu0 %v5991
  %v5993 = vpop.f32.mrf.mxu0
  %v5994 = vadd.f32 %v5766, %v5993
  %v5995 = vand.u32 %v3519, 4294901760
  %v5996 = vsub.f32 %v3519, %v5995
  %v5997 = vand.u32 %v5996, 4294901760
  %5998 = vmatmul.f32.gmra.mxu0 %v5997
  %v5999 = vpop.f32.mrf.mxu0
  %v6000 = vadd.f32 %v5771, %v5999
  %v6001 = vand.u32 %v3521, 4294901760
  %v6002 = vsub.f32 %v3521, %v6001
  %v6003 = vand.u32 %v6002, 4294901760
  %6004 = vmatmul.f32.gmra.mxu0 %v6003
  %v6005 = vpop.f32.mrf.mxu0
  %v6006 = vadd.f32 %v5776, %v6005
  %v6007 = vand.u32 %v3523, 4294901760
  %v6008 = vsub.f32 %v3523, %v6007
  %v6009 = vand.u32 %v6008, 4294901760
  %6010 = vmatmul.f32.gmra.mxu0 %v6009
  %v6011 = vpop.f32.mrf.mxu0
  %v6012 = vadd.f32 %v5781, %v6011
  %v6013 = vand.u32 %v3525, 4294901760
  %v6014 = vsub.f32 %v3525, %v6013
  %v6015 = vand.u32 %v6014, 4294901760
  %6016 = vmatmul.f32.gmra.mxu0 %v6015
  %v6017 = vpop.f32.mrf.mxu0
  %v6018 = vadd.f32 %v5786, %v6017
  %v6019 = vand.u32 %v3527, 4294901760
  %v6020 = vsub.f32 %v3527, %v6019
  %v6021 = vand.u32 %v6020, 4294901760
  %6022 = vmatmul.f32.gmra.mxu0 %v6021
  %v6023 = vpop.f32.mrf.mxu0
  %v6024 = vadd.f32 %v5791, %v6023
  %v6025 = vand.u32 %v3529, 4294901760
  %v6026 = vsub.f32 %v3529, %v6025
  %v6027 = vand.u32 %v6026, 4294901760
  %6028 = vmatmul.f32.gmra.mxu0 %v6027
  %v6029 = vpop.f32.mrf.mxu0
  %v6030 = vadd.f32 %v5796, %v6029
  %v6031 = vand.u32 %v3531, 4294901760
  %v6032 = vsub.f32 %v3531, %v6031
  %v6033 = vand.u32 %v6032, 4294901760
  %6034 = vmatmul.f32.gmra.mxu0 %v6033
  %v6035 = vpop.f32.mrf.mxu0
  %v6036 = vadd.f32 %v5801, %v6035
  %v6037 = vand.u32 %v3533, 4294901760
  %v6038 = vsub.f32 %v3533, %v6037
  %v6039 = vand.u32 %v6038, 4294901760
  %6040 = vmatmul.f32.gmra.mxu0 %v6039
  %v6041 = vpop.f32.mrf.mxu0
  %v6042 = vadd.f32 %v5806, %v6041
  %v6043 = vand.u32 %v3535, 4294901760
  %v6044 = vsub.f32 %v3535, %v6043
  %v6045 = vand.u32 %v6044, 4294901760
  %6046 = vmatmul.f32.gmra.mxu0 %v6045
  %v6047 = vpop.f32.mrf.mxu0
  %v6048 = vadd.f32 %v5811, %v6047
  %v6049 = vand.u32 %v3537, 4294901760
  %v6050 = vsub.f32 %v3537, %v6049
  %v6051 = vand.u32 %v6050, 4294901760
  %6052 = vmatmul.f32.gmra.mxu0 %v6051
  %v6053 = vpop.f32.mrf.mxu0
  %v6054 = vadd.f32 %v5816, %v6053
  %v6055 = vand.u32 %v3539, 4294901760
  %v6056 = vsub.f32 %v3539, %v6055
  %v6057 = vand.u32 %v6056, 4294901760
  %6058 = vmatmul.f32.gmra.mxu0 %v6057
  %v6059 = vpop.f32.mrf.mxu0
  %v6060 = vadd.f32 %v5821, %v6059
  %v6061 = vand.u32 %v3541, 4294901760
  %v6062 = vsub.f32 %v3541, %v6061
  %v6063 = vand.u32 %v6062, 4294901760
  %6064 = vmatmul.f32.gmra.mxu0 %v6063
  %v6065 = vpop.f32.mrf.mxu0
  %v6066 = vadd.f32 %v5826, %v6065
  %v6067 = vand.u32 %v3543, 4294901760
  %v6068 = vsub.f32 %v3543, %v6067
  %v6069 = vand.u32 %v6068, 4294901760
  %6070 = vmatmul.f32.gmra.mxu0 %v6069
  %v6071 = vpop.f32.mrf.mxu0
  %v6072 = vadd.f32 %v5831, %v6071
  %v6073 = vand.u32 %v3545, 4294901760
  %v6074 = vsub.f32 %v3545, %v6073
  %v6075 = vand.u32 %v6074, 4294901760
  %6076 = vmatmul.f32.gmra.mxu0 %v6075
  %v6077 = vpop.f32.mrf.mxu0
  %v6078 = vadd.f32 %v5836, %v6077
  %v6079 = vand.u32 %v3547, 4294901760
  %v6080 = vsub.f32 %v3547, %v6079
  %v6081 = vand.u32 %v6080, 4294901760
  %6082 = vmatmul.f32.gmra.mxu0 %v6081
  %v6083 = vpop.f32.mrf.mxu0
  %v6084 = vadd.f32 %v5841, %v6083
  %v6085 = vand.u32 %v3549, 4294901760
  %v6086 = vsub.f32 %v3549, %v6085
  %v6087 = vand.u32 %v6086, 4294901760
  %6088 = vmatmul.f32.gmra.mxu0 %v6087
  %v6089 = vpop.f32.mrf.mxu0
  %v6090 = vadd.f32 %v5846, %v6089
  %v6091 = vand.u32 %v3551, 4294901760
  %v6092 = vsub.f32 %v3551, %v6091
  %v6093 = vand.u32 %v6092, 4294901760
  %6094 = vmatmul.f32.gmra.mxu0 %v6093
  %v6095 = vpop.f32.mrf.mxu0
  %v6096 = vadd.f32 %v5851, %v6095
  %v6097 = vand.u32 %v3553, 4294901760
  %v6098 = vsub.f32 %v3553, %v6097
  %v6099 = vand.u32 %v6098, 4294901760
  %6100 = vmatmul.f32.gmra.mxu0 %v6099
  %v6101 = vpop.f32.mrf.mxu0
  %v6102 = vadd.f32 %v5856, %v6101
  %v6103 = vand.u32 %v3555, 4294901760
  %v6104 = vsub.f32 %v3555, %v6103
  %v6105 = vand.u32 %v6104, 4294901760
  %6106 = vmatmul.f32.gmra.mxu0 %v6105
  %v6107 = vpop.f32.mrf.mxu0
  %v6108 = vadd.f32 %v5861, %v6107
  %v6109 = vand.u32 %v3557, 4294901760
  %v6110 = vsub.f32 %v3557, %v6109
  %v6111 = vand.u32 %v6110, 4294901760
  %6112 = vmatmul.f32.gmra.mxu0 %v6111
  %v6113 = vpop.f32.mrf.mxu0
  %v6114 = vadd.f32 %v5866, %v6113
  %v6115 = vand.u32 %v3559, 4294901760
  %v6116 = vsub.f32 %v3559, %v6115
  %v6117 = vand.u32 %v6116, 4294901760
  %6118 = vmatmul.f32.gmra.mxu0 %v6117
  %v6119 = vpop.f32.mrf.mxu0
  %v6120 = vadd.f32 %v5871, %v6119
  %v6121 = vand.u32 %v3561, 4294901760
  %v6122 = vsub.f32 %v3561, %v6121
  %v6123 = vand.u32 %v6122, 4294901760
  %6124 = vmatmul.f32.gmra.mxu0 %v6123
  %v6125 = vpop.f32.mrf.mxu0
  %v6126 = vadd.f32 %v5876, %v6125
  %v6127 = vand.u32 %v3563, 4294901760
  %v6128 = vsub.f32 %v3563, %v6127
  %v6129 = vand.u32 %v6128, 4294901760
  %6130 = vmatmul.f32.gmra.mxu0 %v6129
  %v6131 = vpop.f32.mrf.mxu0
  %v6132 = vadd.f32 %v5881, %v6131
  %v6133 = vand.u32 %v3565, 4294901760
  %v6134 = vsub.f32 %v3565, %v6133
  %v6135 = vand.u32 %v6134, 4294901760
  %6136 = vmatmul.f32.gmra.mxu0 %v6135
  %v6137 = vpop.f32.mrf.mxu0
  %v6138 = vadd.f32 %v5886, %v6137
  %v6139 = vand.u32 %v3567, 4294901760
  %v6140 = vsub.f32 %v3567, %v6139
  %v6141 = vand.u32 %v6140, 4294901760
  %6142 = vmatmul.f32.gmra.mxu0 %v6141
  %v6143 = vpop.f32.mrf.mxu0
  %v6144 = vadd.f32 %v5891, %v6143
  %v6145 = vand.u32 %v3569, 4294901760
  %v6146 = vsub.f32 %v3569, %v6145
  %v6147 = vand.u32 %v6146, 4294901760
  %6148 = vmatmul.f32.gmra.mxu0 %v6147
  %v6149 = vpop.f32.mrf.mxu0
  %v6150 = vadd.f32 %v5896, %v6149
  %v6151 = vand.u32 %v3571, 4294901760
  %v6152 = vsub.f32 %v3571, %v6151
  %v6153 = vand.u32 %v6152, 4294901760
  %6154 = vmatmul.f32.gmra.mxu0 %v6153
  %v6155 = vpop.f32.mrf.mxu0
  %v6156 = vadd.f32 %v5901, %v6155
  %v6157 = vand.u32 %v3573, 4294901760
  %v6158 = vsub.f32 %v3573, %v6157
  %v6159 = vand.u32 %v6158, 4294901760
  %6160 = vmatmul.f32.gmra.mxu0 %v6159
  %v6161 = vpop.f32.mrf.mxu0
  %v6162 = vadd.f32 %v5906, %v6161
  %v6163 = vand.u32 %v3575, 4294901760
  %v6164 = vsub.f32 %v3575, %v6163
  %v6165 = vand.u32 %v6164, 4294901760
  %6166 = vmatmul.f32.gmra.mxu0 %v6165
  %v6167 = vpop.f32.mrf.mxu0
  %v6168 = vadd.f32 %v5911, %v6167
  %v6169 = vand.u32 %v3577, 4294901760
  %v6170 = vsub.f32 %v3577, %v6169
  %v6171 = vand.u32 %v6170, 4294901760
  %6172 = vmatmul.f32.gmra.mxu0 %v6171
  %v6173 = vpop.f32.mrf.mxu0
  %v6174 = vadd.f32 %v5916, %v6173
  %v6175 = vand.u32 %v3579, 4294901760
  %v6176 = vsub.f32 %v3579, %v6175
  %v6177 = vand.u32 %v6176, 4294901760
  %6178 = vmatmul.f32.gmra.mxu0 %v6177
  %v6179 = vpop.f32.mrf.mxu0
  %v6180 = vadd.f32 %v5921, %v6179
  %v6181 = vand.u32 %v3581, 4294901760
  %v6182 = vsub.f32 %v3581, %v6181
  %v6183 = vand.u32 %v6182, 4294901760
  %6184 = vmatmul.f32.gmra.mxu0 %v6183
  %v6185 = vpop.f32.mrf.mxu0
  %v6186 = vadd.f32 %v5926, %v6185
  %v6187 = vand.u32 %v3583, 4294901760
  %v6188 = vsub.f32 %v3583, %v6187
  %v6189 = vand.u32 %v6188, 4294901760
  %6190 = vmatmul.f32.gmra.mxu0 %v6189
  %v6191 = vpop.f32.mrf.mxu0
  %v6192 = vadd.f32 %v5931, %v6191
  %6193 = vdwg.mxu0
  %v6194 = vand.u32 %v3615, 4294901760
  %v6195 = vsub.f32 %v3615, %v6194
  %v6196 = vand.u32 %v6195, 4294901760
  %6197 = vmatpush.msra.mxu0 %v6196
  %v6198 = vand.u32 %v3614, 4294901760
  %v6199 = vsub.f32 %v3614, %v6198
  %v6200 = vand.u32 %v6199, 4294901760
  %6201 = vmatpush.msra.mxu0 %v6200
  %v6202 = vand.u32 %v3613, 4294901760
  %v6203 = vsub.f32 %v3613, %v6202
  %v6204 = vand.u32 %v6203, 4294901760
  %6205 = vmatpush.msra.mxu0 %v6204
  %v6206 = vand.u32 %v3612, 4294901760
  %v6207 = vsub.f32 %v3612, %v6206
  %v6208 = vand.u32 %v6207, 4294901760
  %6209 = vmatpush.msra.mxu0 %v6208
  %v6210 = vand.u32 %v3611, 4294901760
  %v6211 = vsub.f32 %v3611, %v6210
  %v6212 = vand.u32 %v6211, 4294901760
  %6213 = vmatpush.msra.mxu0 %v6212
  %v6214 = vand.u32 %v3610, 4294901760
  %v6215 = vsub.f32 %v3610, %v6214
  %v6216 = vand.u32 %v6215, 4294901760
  %6217 = vmatpush.msra.mxu0 %v6216
  %v6218 = vand.u32 %v3609, 4294901760
  %v6219 = vsub.f32 %v3609, %v6218
  %v6220 = vand.u32 %v6219, 4294901760
  %6221 = vmatpush.msra.mxu0 %v6220
  %v6222 = vand.u32 %v3608, 4294901760
  %v6223 = vsub.f32 %v3608, %v6222
  %v6224 = vand.u32 %v6223, 4294901760
  %6225 = vmatpush.msra.mxu0 %v6224
  %v6226 = vand.u32 %v3607, 4294901760
  %v6227 = vsub.f32 %v3607, %v6226
  %v6228 = vand.u32 %v6227, 4294901760
  %6229 = vmatpush.msra.mxu0 %v6228
  %v6230 = vand.u32 %v3606, 4294901760
  %v6231 = vsub.f32 %v3606, %v6230
  %v6232 = vand.u32 %v6231, 4294901760
  %6233 = vmatpush.msra.mxu0 %v6232
  %v6234 = vand.u32 %v3605, 4294901760
  %v6235 = vsub.f32 %v3605, %v6234
  %v6236 = vand.u32 %v6235, 4294901760
  %6237 = vmatpush.msra.mxu0 %v6236
  %v6238 = vand.u32 %v3604, 4294901760
  %v6239 = vsub.f32 %v3604, %v6238
  %v6240 = vand.u32 %v6239, 4294901760
  %6241 = vmatpush.msra.mxu0 %v6240
  %v6242 = vand.u32 %v3603, 4294901760
  %v6243 = vsub.f32 %v3603, %v6242
  %v6244 = vand.u32 %v6243, 4294901760
  %6245 = vmatpush.msra.mxu0 %v6244
  %v6246 = vand.u32 %v3602, 4294901760
  %v6247 = vsub.f32 %v3602, %v6246
  %v6248 = vand.u32 %v6247, 4294901760
  %6249 = vmatpush.msra.mxu0 %v6248
  %v6250 = vand.u32 %v3601, 4294901760
  %v6251 = vsub.f32 %v3601, %v6250
  %v6252 = vand.u32 %v6251, 4294901760
  %6253 = vmatpush.msra.mxu0 %v6252
  %v6254 = vand.u32 %v3600, 4294901760
  %v6255 = vsub.f32 %v3600, %v6254
  %v6256 = vand.u32 %v6255, 4294901760
  %6257 = vmatpush.msra.mxu0 %v6256
  %v6258 = vand.u32 %v3509, 4294901760
  %6259 = vmatmul.f32.gmra.mxu0 %v6258
  %v6260 = vpop.f32.mrf.mxu0
  %v6261 = vadd.f32 %v5970, %v6260
  %v6262 = vand.u32 %v3511, 4294901760
  %6263 = vmatmul.f32.gmra.mxu0 %v6262
  %v6264 = vpop.f32.mrf.mxu0
  %v6265 = vadd.f32 %v5976, %v6264
  %v6266 = vand.u32 %v3513, 4294901760
  %6267 = vmatmul.f32.gmra.mxu0 %v6266
  %v6268 = vpop.f32.mrf.mxu0
  %v6269 = vadd.f32 %v5982, %v6268
  %v6270 = vand.u32 %v3515, 4294901760
  %6271 = vmatmul.f32.gmra.mxu0 %v6270
  %v6272 = vpop.f32.mrf.mxu0
  %v6273 = vadd.f32 %v5988, %v6272
  %v6274 = vand.u32 %v3517, 4294901760
  %6275 = vmatmul.f32.gmra.mxu0 %v6274
  %v6276 = vpop.f32.mrf.mxu0
  %v6277 = vadd.f32 %v5994, %v6276
  %v6278 = vand.u32 %v3519, 4294901760
  %6279 = vmatmul.f32.gmra.mxu0 %v6278
  %v6280 = vpop.f32.mrf.mxu0
  %v6281 = vadd.f32 %v6000, %v6280
  %v6282 = vand.u32 %v3521, 4294901760
  %6283 = vmatmul.f32.gmra.mxu0 %v6282
  %v6284 = vpop.f32.mrf.mxu0
  %v6285 = vadd.f32 %v6006, %v6284
  %v6286 = vand.u32 %v3523, 4294901760
  %6287 = vmatmul.f32.gmra.mxu0 %v6286
  %v6288 = vpop.f32.mrf.mxu0
  %v6289 = vadd.f32 %v6012, %v6288
  %v6290 = vand.u32 %v3525, 4294901760
  %6291 = vmatmul.f32.gmra.mxu0 %v6290
  %v6292 = vpop.f32.mrf.mxu0
  %v6293 = vadd.f32 %v6018, %v6292
  %v6294 = vand.u32 %v3527, 4294901760
  %6295 = vmatmul.f32.gmra.mxu0 %v6294
  %v6296 = vpop.f32.mrf.mxu0
  %v6297 = vadd.f32 %v6024, %v6296
  %v6298 = vand.u32 %v3529, 4294901760
  %6299 = vmatmul.f32.gmra.mxu0 %v6298
  %v6300 = vpop.f32.mrf.mxu0
  %v6301 = vadd.f32 %v6030, %v6300
  %v6302 = vand.u32 %v3531, 4294901760
  %6303 = vmatmul.f32.gmra.mxu0 %v6302
  %v6304 = vpop.f32.mrf.mxu0
  %v6305 = vadd.f32 %v6036, %v6304
  %v6306 = vand.u32 %v3533, 4294901760
  %6307 = vmatmul.f32.gmra.mxu0 %v6306
  %v6308 = vpop.f32.mrf.mxu0
  %v6309 = vadd.f32 %v6042, %v6308
  %v6310 = vand.u32 %v3535, 4294901760
  %6311 = vmatmul.f32.gmra.mxu0 %v6310
  %v6312 = vpop.f32.mrf.mxu0
  %v6313 = vadd.f32 %v6048, %v6312
  %v6314 = vand.u32 %v3537, 4294901760
  %6315 = vmatmul.f32.gmra.mxu0 %v6314
  %v6316 = vpop.f32.mrf.mxu0
  %v6317 = vadd.f32 %v6054, %v6316
  %v6318 = vand.u32 %v3539, 4294901760
  %6319 = vmatmul.f32.gmra.mxu0 %v6318
  %v6320 = vpop.f32.mrf.mxu0
  %v6321 = vadd.f32 %v6060, %v6320
  %v6322 = vand.u32 %v3541, 4294901760
  %6323 = vmatmul.f32.gmra.mxu0 %v6322
  %v6324 = vpop.f32.mrf.mxu0
  %v6325 = vadd.f32 %v6066, %v6324
  %v6326 = vand.u32 %v3543, 4294901760
  %6327 = vmatmul.f32.gmra.mxu0 %v6326
  %v6328 = vpop.f32.mrf.mxu0
  %v6329 = vadd.f32 %v6072, %v6328
  %v6330 = vand.u32 %v3545, 4294901760
  %6331 = vmatmul.f32.gmra.mxu0 %v6330
  %v6332 = vpop.f32.mrf.mxu0
  %v6333 = vadd.f32 %v6078, %v6332
  %v6334 = vand.u32 %v3547, 4294901760
  %6335 = vmatmul.f32.gmra.mxu0 %v6334
  %v6336 = vpop.f32.mrf.mxu0
  %v6337 = vadd.f32 %v6084, %v6336
  %v6338 = vand.u32 %v3549, 4294901760
  %6339 = vmatmul.f32.gmra.mxu0 %v6338
  %v6340 = vpop.f32.mrf.mxu0
  %v6341 = vadd.f32 %v6090, %v6340
  %v6342 = vand.u32 %v3551, 4294901760
  %6343 = vmatmul.f32.gmra.mxu0 %v6342
  %v6344 = vpop.f32.mrf.mxu0
  %v6345 = vadd.f32 %v6096, %v6344
  %v6346 = vand.u32 %v3553, 4294901760
  %6347 = vmatmul.f32.gmra.mxu0 %v6346
  %v6348 = vpop.f32.mrf.mxu0
  %v6349 = vadd.f32 %v6102, %v6348
  %v6350 = vand.u32 %v3555, 4294901760
  %6351 = vmatmul.f32.gmra.mxu0 %v6350
  %v6352 = vpop.f32.mrf.mxu0
  %v6353 = vadd.f32 %v6108, %v6352
  %v6354 = vand.u32 %v3557, 4294901760
  %6355 = vmatmul.f32.gmra.mxu0 %v6354
  %v6356 = vpop.f32.mrf.mxu0
  %v6357 = vadd.f32 %v6114, %v6356
  %v6358 = vand.u32 %v3559, 4294901760
  %6359 = vmatmul.f32.gmra.mxu0 %v6358
  %v6360 = vpop.f32.mrf.mxu0
  %v6361 = vadd.f32 %v6120, %v6360
  %v6362 = vand.u32 %v3561, 4294901760
  %6363 = vmatmul.f32.gmra.mxu0 %v6362
  %v6364 = vpop.f32.mrf.mxu0
  %v6365 = vadd.f32 %v6126, %v6364
  %v6366 = vand.u32 %v3563, 4294901760
  %6367 = vmatmul.f32.gmra.mxu0 %v6366
  %v6368 = vpop.f32.mrf.mxu0
  %v6369 = vadd.f32 %v6132, %v6368
  %v6370 = vand.u32 %v3565, 4294901760
  %6371 = vmatmul.f32.gmra.mxu0 %v6370
  %v6372 = vpop.f32.mrf.mxu0
  %v6373 = vadd.f32 %v6138, %v6372
  %v6374 = vand.u32 %v3567, 4294901760
  %6375 = vmatmul.f32.gmra.mxu0 %v6374
  %v6376 = vpop.f32.mrf.mxu0
  %v6377 = vadd.f32 %v6144, %v6376
  %v6378 = vand.u32 %v3569, 4294901760
  %6379 = vmatmul.f32.gmra.mxu0 %v6378
  %v6380 = vpop.f32.mrf.mxu0
  %v6381 = vadd.f32 %v6150, %v6380
  %v6382 = vand.u32 %v3571, 4294901760
  %6383 = vmatmul.f32.gmra.mxu0 %v6382
  %v6384 = vpop.f32.mrf.mxu0
  %v6385 = vadd.f32 %v6156, %v6384
  %v6386 = vand.u32 %v3573, 4294901760
  %6387 = vmatmul.f32.gmra.mxu0 %v6386
  %v6388 = vpop.f32.mrf.mxu0
  %v6389 = vadd.f32 %v6162, %v6388
  %v6390 = vand.u32 %v3575, 4294901760
  %6391 = vmatmul.f32.gmra.mxu0 %v6390
  %v6392 = vpop.f32.mrf.mxu0
  %v6393 = vadd.f32 %v6168, %v6392
  %v6394 = vand.u32 %v3577, 4294901760
  %6395 = vmatmul.f32.gmra.mxu0 %v6394
  %v6396 = vpop.f32.mrf.mxu0
  %v6397 = vadd.f32 %v6174, %v6396
  %v6398 = vand.u32 %v3579, 4294901760
  %6399 = vmatmul.f32.gmra.mxu0 %v6398
  %v6400 = vpop.f32.mrf.mxu0
  %v6401 = vadd.f32 %v6180, %v6400
  %v6402 = vand.u32 %v3581, 4294901760
  %6403 = vmatmul.f32.gmra.mxu0 %v6402
  %v6404 = vpop.f32.mrf.mxu0
  %v6405 = vadd.f32 %v6186, %v6404
  %v6406 = vand.u32 %v3583, 4294901760
  %6407 = vmatmul.f32.gmra.mxu0 %v6406
  %v6408 = vpop.f32.mrf.mxu0
  %v6409 = vadd.f32 %v6192, %v6408
  %6410 = vdwg.mxu0
  %v6411 = vand.u32 %v3615, 4294901760
  %6412 = vmatpush.msra.mxu0 %v6411
  %v6413 = vand.u32 %v3614, 4294901760
  %6414 = vmatpush.msra.mxu0 %v6413
  %v6415 = vand.u32 %v3613, 4294901760
  %6416 = vmatpush.msra.mxu0 %v6415
  %v6417 = vand.u32 %v3612, 4294901760
  %6418 = vmatpush.msra.mxu0 %v6417
  %v6419 = vand.u32 %v3611, 4294901760
  %6420 = vmatpush.msra.mxu0 %v6419
  %v6421 = vand.u32 %v3610, 4294901760
  %6422 = vmatpush.msra.mxu0 %v6421
  %v6423 = vand.u32 %v3609, 4294901760
  %6424 = vmatpush.msra.mxu0 %v6423
  %v6425 = vand.u32 %v3608, 4294901760
  %6426 = vmatpush.msra.mxu0 %v6425
  %v6427 = vand.u32 %v3607, 4294901760
  %6428 = vmatpush.msra.mxu0 %v6427
  %v6429 = vand.u32 %v3606, 4294901760
  %6430 = vmatpush.msra.mxu0 %v6429
  %v6431 = vand.u32 %v3605, 4294901760
  %6432 = vmatpush.msra.mxu0 %v6431
  %v6433 = vand.u32 %v3604, 4294901760
  %6434 = vmatpush.msra.mxu0 %v6433
  %v6435 = vand.u32 %v3603, 4294901760
  %6436 = vmatpush.msra.mxu0 %v6435
  %v6437 = vand.u32 %v3602, 4294901760
  %6438 = vmatpush.msra.mxu0 %v6437
  %v6439 = vand.u32 %v3601, 4294901760
  %6440 = vmatpush.msra.mxu0 %v6439
  %v6441 = vand.u32 %v3600, 4294901760
  %6442 = vmatpush.msra.mxu0 %v6441
  %v6443 = vand.u32 %v3509, 4294901760
  %6444 = vmatmul.f32.gmra.mxu0 %v6443
  %v6445 = vpop.f32.mrf.mxu0
  %v6446 = vadd.f32 %v6261, %v6445
  %v6447 = vand.u32 %v3511, 4294901760
  %6448 = vmatmul.f32.gmra.mxu0 %v6447
  %v6449 = vpop.f32.mrf.mxu0
  %v6450 = vadd.f32 %v6265, %v6449
  %v6451 = vand.u32 %v3513, 4294901760
  %6452 = vmatmul.f32.gmra.mxu0 %v6451
  %v6453 = vpop.f32.mrf.mxu0
  %v6454 = vadd.f32 %v6269, %v6453
  %v6455 = vand.u32 %v3515, 4294901760
  %6456 = vmatmul.f32.gmra.mxu0 %v6455
  %v6457 = vpop.f32.mrf.mxu0
  %v6458 = vadd.f32 %v6273, %v6457
  %v6459 = vand.u32 %v3517, 4294901760
  %6460 = vmatmul.f32.gmra.mxu0 %v6459
  %v6461 = vpop.f32.mrf.mxu0
  %v6462 = vadd.f32 %v6277, %v6461
  %v6463 = vand.u32 %v3519, 4294901760
  %6464 = vmatmul.f32.gmra.mxu0 %v6463
  %v6465 = vpop.f32.mrf.mxu0
  %v6466 = vadd.f32 %v6281, %v6465
  %v6467 = vand.u32 %v3521, 4294901760
  %6468 = vmatmul.f32.gmra.mxu0 %v6467
  %v6469 = vpop.f32.mrf.mxu0
  %v6470 = vadd.f32 %v6285, %v6469
  %v6471 = vand.u32 %v3523, 4294901760
  %6472 = vmatmul.f32.gmra.mxu0 %v6471
  %v6473 = vpop.f32.mrf.mxu0
  %v6474 = vadd.f32 %v6289, %v6473
  %v6475 = vand.u32 %v3525, 4294901760
  %6476 = vmatmul.f32.gmra.mxu0 %v6475
  %v6477 = vpop.f32.mrf.mxu0
  %v6478 = vadd.f32 %v6293, %v6477
  %v6479 = vand.u32 %v3527, 4294901760
  %6480 = vmatmul.f32.gmra.mxu0 %v6479
  %v6481 = vpop.f32.mrf.mxu0
  %v6482 = vadd.f32 %v6297, %v6481
  %v6483 = vand.u32 %v3529, 4294901760
  %6484 = vmatmul.f32.gmra.mxu0 %v6483
  %v6485 = vpop.f32.mrf.mxu0
  %v6486 = vadd.f32 %v6301, %v6485
  %v6487 = vand.u32 %v3531, 4294901760
  %6488 = vmatmul.f32.gmra.mxu0 %v6487
  %v6489 = vpop.f32.mrf.mxu0
  %v6490 = vadd.f32 %v6305, %v6489
  %v6491 = vand.u32 %v3533, 4294901760
  %6492 = vmatmul.f32.gmra.mxu0 %v6491
  %v6493 = vpop.f32.mrf.mxu0
  %v6494 = vadd.f32 %v6309, %v6493
  %v6495 = vand.u32 %v3535, 4294901760
  %6496 = vmatmul.f32.gmra.mxu0 %v6495
  %v6497 = vpop.f32.mrf.mxu0
  %v6498 = vadd.f32 %v6313, %v6497
  %v6499 = vand.u32 %v3537, 4294901760
  %6500 = vmatmul.f32.gmra.mxu0 %v6499
  %v6501 = vpop.f32.mrf.mxu0
  %v6502 = vadd.f32 %v6317, %v6501
  %v6503 = vand.u32 %v3539, 4294901760
  %6504 = vmatmul.f32.gmra.mxu0 %v6503
  %v6505 = vpop.f32.mrf.mxu0
  %v6506 = vadd.f32 %v6321, %v6505
  %v6507 = vand.u32 %v3541, 4294901760
  %6508 = vmatmul.f32.gmra.mxu0 %v6507
  %v6509 = vpop.f32.mrf.mxu0
  %v6510 = vadd.f32 %v6325, %v6509
  %v6511 = vand.u32 %v3543, 4294901760
  %6512 = vmatmul.f32.gmra.mxu0 %v6511
  %v6513 = vpop.f32.mrf.mxu0
  %v6514 = vadd.f32 %v6329, %v6513
  %v6515 = vand.u32 %v3545, 4294901760
  %6516 = vmatmul.f32.gmra.mxu0 %v6515
  %v6517 = vpop.f32.mrf.mxu0
  %v6518 = vadd.f32 %v6333, %v6517
  %v6519 = vand.u32 %v3547, 4294901760
  %6520 = vmatmul.f32.gmra.mxu0 %v6519
  %v6521 = vpop.f32.mrf.mxu0
  %v6522 = vadd.f32 %v6337, %v6521
  %v6523 = vand.u32 %v3549, 4294901760
  %6524 = vmatmul.f32.gmra.mxu0 %v6523
  %v6525 = vpop.f32.mrf.mxu0
  %v6526 = vadd.f32 %v6341, %v6525
  %v6527 = vand.u32 %v3551, 4294901760
  %6528 = vmatmul.f32.gmra.mxu0 %v6527
  %v6529 = vpop.f32.mrf.mxu0
  %v6530 = vadd.f32 %v6345, %v6529
  %v6531 = vand.u32 %v3553, 4294901760
  %6532 = vmatmul.f32.gmra.mxu0 %v6531
  %v6533 = vpop.f32.mrf.mxu0
  %v6534 = vadd.f32 %v6349, %v6533
  %v6535 = vand.u32 %v3555, 4294901760
  %6536 = vmatmul.f32.gmra.mxu0 %v6535
  %v6537 = vpop.f32.mrf.mxu0
  %v6538 = vadd.f32 %v6353, %v6537
  %v6539 = vand.u32 %v3557, 4294901760
  %6540 = vmatmul.f32.gmra.mxu0 %v6539
  %v6541 = vpop.f32.mrf.mxu0
  %v6542 = vadd.f32 %v6357, %v6541
  %v6543 = vand.u32 %v3559, 4294901760
  %6544 = vmatmul.f32.gmra.mxu0 %v6543
  %v6545 = vpop.f32.mrf.mxu0
  %v6546 = vadd.f32 %v6361, %v6545
  %v6547 = vand.u32 %v3561, 4294901760
  %6548 = vmatmul.f32.gmra.mxu0 %v6547
  %v6549 = vpop.f32.mrf.mxu0
  %v6550 = vadd.f32 %v6365, %v6549
  %v6551 = vand.u32 %v3563, 4294901760
  %6552 = vmatmul.f32.gmra.mxu0 %v6551
  %v6553 = vpop.f32.mrf.mxu0
  %v6554 = vadd.f32 %v6369, %v6553
  %v6555 = vand.u32 %v3565, 4294901760
  %6556 = vmatmul.f32.gmra.mxu0 %v6555
  %v6557 = vpop.f32.mrf.mxu0
  %v6558 = vadd.f32 %v6373, %v6557
  %v6559 = vand.u32 %v3567, 4294901760
  %6560 = vmatmul.f32.gmra.mxu0 %v6559
  %v6561 = vpop.f32.mrf.mxu0
  %v6562 = vadd.f32 %v6377, %v6561
  %v6563 = vand.u32 %v3569, 4294901760
  %6564 = vmatmul.f32.gmra.mxu0 %v6563
  %v6565 = vpop.f32.mrf.mxu0
  %v6566 = vadd.f32 %v6381, %v6565
  %v6567 = vand.u32 %v3571, 4294901760
  %6568 = vmatmul.f32.gmra.mxu0 %v6567
  %v6569 = vpop.f32.mrf.mxu0
  %v6570 = vadd.f32 %v6385, %v6569
  %v6571 = vand.u32 %v3573, 4294901760
  %6572 = vmatmul.f32.gmra.mxu0 %v6571
  %v6573 = vpop.f32.mrf.mxu0
  %v6574 = vadd.f32 %v6389, %v6573
  %v6575 = vand.u32 %v3575, 4294901760
  %6576 = vmatmul.f32.gmra.mxu0 %v6575
  %v6577 = vpop.f32.mrf.mxu0
  %v6578 = vadd.f32 %v6393, %v6577
  %v6579 = vand.u32 %v3577, 4294901760
  %6580 = vmatmul.f32.gmra.mxu0 %v6579
  %v6581 = vpop.f32.mrf.mxu0
  %v6582 = vadd.f32 %v6397, %v6581
  %v6583 = vand.u32 %v3579, 4294901760
  %6584 = vmatmul.f32.gmra.mxu0 %v6583
  %v6585 = vpop.f32.mrf.mxu0
  %v6586 = vadd.f32 %v6401, %v6585
  %v6587 = vand.u32 %v3581, 4294901760
  %6588 = vmatmul.f32.gmra.mxu0 %v6587
  %v6589 = vpop.f32.mrf.mxu0
  %v6590 = vadd.f32 %v6405, %v6589
  %v6591 = vand.u32 %v3583, 4294901760
  %6592 = vmatmul.f32.gmra.mxu0 %v6591
  %v6593 = vpop.f32.mrf.mxu0
  %v6594 = vadd.f32 %v6409, %v6593
  %6595 = vdwg.mxu0
  %vm6596 = vcmask 703488
  %6597 = vst.msk [vmem:[%s7] sm:$0xff] %vm6596, %v6446
  %6598 = vst.msk [vmem:[%s7 + $0x8] sm:$0xff] %vm6596, %v6450
  %6599 = vst.msk [vmem:[%s7 + $0x10] sm:$0xff] %vm6596, %v6454
  %6600 = vst.msk [vmem:[%s7 + $0x18] sm:$0xff] %vm6596, %v6458
  %6601 = vst.msk [vmem:[%s7 + $0x20] sm:$0xff] %vm6596, %v6462
  %6602 = vst.msk [vmem:[%s7 + $0x28] sm:$0xff] %vm6596, %v6466
  %6603 = vst.msk [vmem:[%s7 + $0x30] sm:$0xff] %vm6596, %v6470
  %6604 = vst.msk [vmem:[%s7 + $0x38] sm:$0xff] %vm6596, %v6474
  %6605 = vst.msk [vmem:[%s7 + $0x40] sm:$0xff] %vm6596, %v6478
  %6606 = vst.msk [vmem:[%s7 + $0x48] sm:$0xff] %vm6596, %v6482
  %6607 = vst.msk [vmem:[%s7 + $0x50] sm:$0xff] %vm6596, %v6486
  %6608 = vst.msk [vmem:[%s7 + $0x58] sm:$0xff] %vm6596, %v6490
  %6609 = vst.msk [vmem:[%s7 + $0x60] sm:$0xff] %vm6596, %v6494
  %6610 = vst.msk [vmem:[%s7 + $0x68] sm:$0xff] %vm6596, %v6498
  %6611 = vst.msk [vmem:[%s7 + $0x70] sm:$0xff] %vm6596, %v6502
  %6612 = vst.msk [vmem:[%s7 + $0x78] sm:$0xff] %vm6596, %v6506
  %6613 = vst.msk [vmem:[%s7 + $0x80] sm:$0xff] %vm6596, %v6510
  %6614 = vst.msk [vmem:[%s7 + $0x88] sm:$0xff] %vm6596, %v6514
  %6615 = vst.msk [vmem:[%s7 + $0x90] sm:$0xff] %vm6596, %v6518
  %6616 = vst.msk [vmem:[%s7 + $0x98] sm:$0xff] %vm6596, %v6522
  %6617 = vst.msk [vmem:[%s7 + $0xa0] sm:$0xff] %vm6596, %v6526
  %6618 = vst.msk [vmem:[%s7 + $0xa8] sm:$0xff] %vm6596, %v6530
  %6619 = vst.msk [vmem:[%s7 + $0xb0] sm:$0xff] %vm6596, %v6534
  %6620 = vst.msk [vmem:[%s7 + $0xb8] sm:$0xff] %vm6596, %v6538
  %6621 = vst.msk [vmem:[%s7 + $0xc0] sm:$0xff] %vm6596, %v6542
  %6622 = vst.msk [vmem:[%s7 + $0xc8] sm:$0xff] %vm6596, %v6546
  %6623 = vst.msk [vmem:[%s7 + $0xd0] sm:$0xff] %vm6596, %v6550
  %6624 = vst.msk [vmem:[%s7 + $0xd8] sm:$0xff] %vm6596, %v6554
  %6625 = vst.msk [vmem:[%s7 + $0xe0] sm:$0xff] %vm6596, %v6558
  %6626 = vst.msk [vmem:[%s7 + $0xe8] sm:$0xff] %vm6596, %v6562
  %6627 = vst.msk [vmem:[%s7 + $0xf0] sm:$0xff] %vm6596, %v6566
  %6628 = vst.msk [vmem:[%s7 + $0xf8] sm:$0xff] %vm6596, %v6570
  %6629 = vst.msk [vmem:[%s7 + $0x100] sm:$0xff] %vm6596, %v6574
  %6630 = vst.msk [vmem:[%s7 + $0x108] sm:$0xff] %vm6596, %v6578
  %6631 = vst.msk [vmem:[%s7 + $0x110] sm:$0xff] %vm6596, %v6582
  %6632 = vst.msk [vmem:[%s7 + $0x118] sm:$0xff] %vm6596, %v6586
  %6633 = vst.msk [vmem:[%s7 + $0x120] sm:$0xff] %vm6596, %v6590
  %6634 = vst.msk [vmem:[%s7 + $0x128] sm:$0xff] %vm6596, %v6594
  // Predicated region
  $region30: #{tpu_custom_call.1} parent=0 // pred_check
    _
  $region31: #{tpu_custom_call.1} parent=0 // pred_check_branch
    %6636 = sbr.rel (0) target = $region33
  $region32: #{tpu_custom_call.1} parent=0 // pred_region
    _
  $region33: #{tpu_custom_call.1} parent=0 // pred_fallthru
    _
  // Predicated region
  $region34: #{tpu_custom_call.1} parent=0 // pred_check
    _
  $region35: #{tpu_custom_call.1} parent=0 // pred_check_branch
    %6638 = sbr.rel (0) target = $region37
  $region36: #{tpu_custom_call.1} parent=0 // pred_region
    _
  $region37: #{tpu_custom_call.1} parent=0 // pred_fallthru
    _

</llo_original>
